<compile_context>
chip_gen: v7x
topology: tpu7x:2x2x1
jax: 0.10.0
libtpu: 0.0.40
codegen_flags: <defaults>
</compile_context>

<pallas_src>
import numpy as np
import jax
import jax.numpy as jnp
from jax.experimental import pallas as pl
from jax.experimental.pallas import tpu as pltpu


# ----------------------------------------------------------------------------
# Fused Pallas kernel (one grid step = TB images)
# ----------------------------------------------------------------------------
def _fused_kernel(x_ref, tw1_ref, sc1_ref, sh1_ref, tw2_ref, sc2_ref, sh2_ref,
                  s1_ref, s2_ref, w1_ref, b1_ref, w2_ref, b2_ref,
                  w3_ref, b3_ref, w4_ref, b4_ref, o_ref):
    f32, bf16 = jnp.float32, jnp.bfloat16
    TB = o_ref.shape[0]                                        # images / step

    # ---- conv1 (3x3, 3->16) + BN + ReLU : one merged-K Toeplitz matmul ------
    # x_ref : [TB*28, 128]  rows = image*28 + h, lanes = w*3 + cin (pad -> 128)
    X = x_ref[...]                                             # bf16
    R = X.shape[0]                                             # TB*28
    op1 = jnp.concatenate([X[0:R - 2], X[1:R - 1], X[2:R]], axis=1)     # [R-2, 384]
    y1 = jnp.dot(op1, tw1_ref[...], preferred_element_type=f32)         # [R-2, 512]
    y1 = jnp.maximum(y1 * sc1_ref[...] + sh1_ref[...], 0.0).astype(bf16)

    # ---- maxpool 2x2 #1 -----------------------------------------------------
    # W-max: 16-lane shifted max (stride-2 W-decimation is folded into tw2).
    # H-max: row-shifted max; H-decimation + cross-image compaction via the
    # 0/1 selection matmul s1 ([TB*13, R-3]) on the MXU.
    sh16 = jnp.concatenate([y1[:, 16:], jnp.zeros((R - 2, 16), bf16)], axis=1)
    m1 = jnp.maximum(y1, sh16)                                 # [R-2, 512]
    m1 = jnp.maximum(m1[0:R - 3], m1[1:R - 2])                 # [R-3, 512]
    a1 = jnp.dot(s1_ref[...], m1, preferred_element_type=f32).astype(bf16)  # [TB*13, 512]

    # ---- conv2 (3x3, 16->32) + BN + ReLU : one merged-K Toeplitz matmul -----
    R1 = a1.shape[0]                                           # TB*13
    op2 = jnp.concatenate([a1[0:R1 - 2], a1[1:R1 - 1], a1[2:R1]], axis=1)  # [R1-2, 1536]
    y2 = jnp.dot(op2, tw2_ref[...], preferred_element_type=f32)           # [R1-2, 384]
    y2 = jnp.maximum(y2 * sc2_ref[...] + sh2_ref[...], 0.0).astype(bf16)

    # ---- maxpool 2x2 #2 + flatten into [TB, 1920] (aligned 384-lane chunks) --
    sh32 = jnp.concatenate([y2[:, 32:], jnp.zeros((R1 - 2, 32), bf16)], axis=1)
    m2 = jnp.maximum(y2, sh32)                                 # [R1-2, 384]
    m2 = jnp.maximum(m2[0:R1 - 3], m2[1:R1 - 2])               # [R1-3, 384]
    chunks = []
    for hp in range(5):                                        # pooled H rows
        sel = s2_ref[hp * TB:(hp + 1) * TB, :]                 # [TB, R1-3]
        chunks.append(jnp.dot(sel, m2, preferred_element_type=f32).astype(bf16))
    h = jnp.concatenate(chunks, axis=1)                        # [TB, 1920]

    # ---- classifier: 3x(Linear+ReLU) + Linear + log_softmax (Dropout = id) --
    h = jnp.maximum(jnp.dot(h, w1_ref[...], preferred_element_type=f32)
                    + b1_ref[...], 0.0).astype(bf16)
    h = jnp.maximum(jnp.dot(h, w2_ref[...], preferred_element_type=f32)
                    + b2_ref[...], 0.0).astype(bf16)
    h = jnp.maximum(jnp.dot(h, w3_ref[...], preferred_element_type=f32)
                    + b3_ref[...], 0.0).astype(bf16)
    logits = jnp.dot(h, w4_ref[...], preferred_element_type=f32) + b4_ref[...]  # [TB, 128]
    z = logits - jnp.max(logits, axis=1, keepdims=True)        # padded lanes = -1e30
    o_ref[...] = z - jnp.log(jnp.sum(jnp.exp(z), axis=1, keepdims=True))


def _const_spec(shape):
    zeros = (0,) * len(shape)
    return pl.BlockSpec(shape, lambda b: zeros)


def _selectors(tb):
    """0/1 row-selection matrices (bf16) doing pool H-decimation + compaction."""
    s1 = np.zeros((tb * 13, tb * 28 - 3), np.float32)
    for t in range(tb):
        for hp in range(13):
            s1[t * 13 + hp, t * 28 + 2 * hp] = 1.0
    s2 = np.zeros((5 * tb, tb * 13 - 3), np.float32)
    for hp in range(5):
        for t in range(tb):
            s2[hp * tb + t, t * 13 + 2 * hp] = 1.0
    return jnp.asarray(s1, jnp.bfloat16), jnp.asarray(s2, jnp.bfloat16)


@jax.jit
def cnn_forward(packed, x_nchw):
    """Pallas implementation of CNN_model_crop28.forward (inference mode)."""
    B = x_nchw.shape[0]
    TB = B + (B % 2) if B <= 8 else 8        # even batch tile per grid step
    Bp = ((B + TB - 1) // TB) * TB           # padded batch
    nsteps = Bp // TB                        # >= 2 for B > 8 -> both v7x TCs busy

    # Boundary layout plumbing only: NCHW -> [Bp*28, 128] bf16 slab,
    # rows = image*28 + h, lanes = w*3 + c (zero-padded 84 -> 128).
    x = jnp.transpose(x_nchw, (0, 2, 3, 1)).reshape(B, 28, 84)
    x = jnp.pad(x, ((0, Bp - B), (0, 0), (0, 128 - 84)))
    x = x.reshape(Bp * 28, 128).astype(jnp.bfloat16)

    s1, s2 = _selectors(TB)
    args = (x, packed["tw1"], packed["sc1"], packed["sh1"],
            packed["tw2"], packed["sc2"], packed["sh2"], s1, s2,
            packed["w1"], packed["b1"], packed["w2"], packed["b2"],
            packed["w3"], packed["b3"], packed["w4"], packed["b4"])
    in_specs = [pl.BlockSpec((TB * 28, 128), lambda b: (b, 0))] + \
               [_const_spec(a.shape) for a in args[1:]]

    out = pl.pallas_call(
        _fused_kernel,
        out_shape=jax.ShapeDtypeStruct((Bp, 128), jnp.float32),
        grid=(nsteps,),
        in_specs=in_specs,
        out_specs=pl.BlockSpec((TB, 128), lambda b: (b, 0)),
        compiler_params=pltpu.CompilerParams(
            dimension_semantics=("parallel",)),   # batch tiles across TCs (v7x)
    )(*args)
    return out[:B, :2]


# ----------------------------------------------------------------------------
# Offline parameter packing (numpy, once): BN folding, merged-K block-Toeplitz
# conv weights, pool-decimation folding, fc1 row permutation, 128-lane padding.
# ----------------------------------------------------------------------------
def pack_params(raw, eps=1e-5):
    f = lambda k: np.asarray(raw[k], np.float32)
    p = {}
    C0, C1, C2 = 3, 16, 32
    WO1, WO2 = 26, 11                                    # conv output widths

    # conv1 + bn1 -> one [384, 512] block-Toeplitz matrix (3 dy-chunks of 128
    # input lanes); output lanes = w_out*16 + c_out (416 used, padded to 512).
    W1 = f("conv1_w")                                    # [16, 3, 3, 3] (co,ci,kh,kw)
    sc = f("bn1_g") / np.sqrt(f("bn1_v") + eps)
    sh = f("bn1_b") + (f("conv1_b") - f("bn1_m")) * sc
    tw1 = np.zeros((3 * 128, 512), np.float32)
    for dy in range(3):
        for wo in range(WO1):
            for dx in range(3):
                r0 = dy * 128 + (wo + dx) * C0
                tw1[r0:r0 + C0, wo * C1:(wo + 1) * C1] = W1[:, :, dy, dx].T
    p["tw1"] = jnp.asarray(tw1, jnp.bfloat16)
    v = np.zeros((1, 512), np.float32); v[0, :WO1 * C1] = np.tile(sc, WO1)
    p["sc1"] = jnp.asarray(v)
    v = np.zeros((1, 512), np.float32); v[0, :WO1 * C1] = np.tile(sh, WO1)
    p["sh1"] = jnp.asarray(v)

    # conv2 + bn2 -> one [1536, 384] block-Toeplitz matrix; input lanes are the
    # UN-decimated pool1 map (25 w-positions x 16ch per 512-lane dy-chunk); only
    # even w rows carry weight -> pool1 W-decimation is free.
    W2 = f("conv2_w")                                    # [32, 16, 3, 3]
    sc = f("bn2_g") / np.sqrt(f("bn2_v") + eps)
    sh = f("bn2_b") + (f("conv2_b") - f("bn2_m")) * sc
    tw2 = np.zeros((3 * 512, 384), np.float32)
    for dy in range(3):
        for wo in range(WO2):
            for dx in range(3):
                r0 = dy * 512 + 2 * (wo + dx) * C1
                tw2[r0:r0 + C1, wo * C2:(wo + 1) * C2] = W2[:, :, dy, dx].T
    p["tw2"] = jnp.asarray(tw2, jnp.bfloat16)
    v = np.zeros((1, 384), np.float32); v[0, :WO2 * C2] = np.tile(sc, WO2)
    p["sc2"] = jnp.asarray(v)
    v = np.zeros((1, 384), np.float32); v[0, :WO2 * C2] = np.tile(sh, WO2)
    p["sh2"] = jnp.asarray(v)

    # fc1: rows permuted from torch (c,h,w) flatten order to the kernel's
    # [5 x 384-lane chunk] slab (h chunk, undecimated w, c); odd-w rows stay
    # zero (pool2 W-decimation). Output padded 120 -> 128 lanes.
    fc1 = f("fc1_w")                                     # [120, 800]
    Wf1 = np.zeros((5 * 384, 128), np.float32)
    for hp in range(5):
        for wf in range(5):
            r0 = hp * 384 + (2 * wf) * C2
            cols = np.arange(C2) * 25 + hp * 5 + wf      # torch flatten indices
            Wf1[r0:r0 + C2, :120] = fc1[:, cols].T
    p["w1"] = jnp.asarray(Wf1, jnp.bfloat16)
    b = np.zeros((1, 128), np.float32); b[0, :120] = f("fc1_b")
    p["b1"] = jnp.asarray(b)

    W = np.zeros((128, 128), np.float32); W[:120, :84] = f("fc2_w").T
    p["w2"] = jnp.asarray(W, jnp.bfloat16)
    b = np.zeros((1, 128), np.float32); b[0, :84] = f("fc2_b")
    p["b2"] = jnp.asarray(b)

    W = np.zeros((128, 128), np.float32); W[:84, :32] = f("fc3_w").T
    p["w3"] = jnp.asarray(W, jnp.bfloat16)
    b = np.zeros((1, 128), np.float32); b[0, :32] = f("fc3_b")
    p["b3"] = jnp.asarray(b)

    # fc4 padded to 128 output lanes; padded-lane bias pinned to -1e30 so the
    # in-kernel log_softmax over the full 128-lane vreg ignores them.
    W = np.zeros((128, 128), np.float32); W[:32, :2] = f("fc4_w").T
    p["w4"] = jnp.asarray(W, jnp.bfloat16)
    b = np.full((1, 128), -1e30, np.float32); b[0, :2] = f("fc4_b")
    p["b4"] = jnp.asarray(b)
    return p


def init_raw_params(key):
    ks = jax.random.split(key, 20)
    n = lambda i, shape, s: jax.random.normal(ks[i], shape, jnp.float32) * s
    u = lambda i, shape, lo, hi: jax.random.uniform(ks[i], shape, jnp.float32, lo, hi)
    return {
        "conv1_w": n(0, (16, 3, 3, 3), 0.1),  "conv1_b": n(1, (16,), 0.1),
        "bn1_g": u(2, (16,), 0.8, 1.2),       "bn1_b": n(3, (16,), 0.1),
        "bn1_m": n(4, (16,), 0.1),            "bn1_v": u(5, (16,), 0.5, 1.5),
        "conv2_w": n(6, (32, 16, 3, 3), 0.1), "conv2_b": n(7, (32,), 0.1),
        "bn2_g": u(8, (32,), 0.8, 1.2),       "bn2_b": n(9, (32,), 0.1),
        "bn2_m": n(10, (32,), 0.1),           "bn2_v": u(11, (32,), 0.5, 1.5),
        "fc1_w": n(12, (120, 800), 0.05),     "fc1_b": n(13, (120,), 0.05),
        "fc2_w": n(14, (84, 120), 0.05),      "fc2_b": n(15, (84,), 0.05),
        "fc3_w": n(16, (32, 84), 0.05),       "fc3_b": n(17, (32,), 0.05),
        "fc4_w": n(18, (2, 32), 0.05),        "fc4_b": n(19, (2,), 0.05),
    }


# ----------------------------------------------------------------------------
# Pure-JAX reference with the original (unfolded) PyTorch parameterization.
# ----------------------------------------------------------------------------
@jax.jit
def reference_forward(raw, x, eps=1e-5):
    def bn(y, g, b, m, v):
        return ((y - m[None, :, None, None]) / jnp.sqrt(v + eps)[None, :, None, None]
                * g[None, :, None, None] + b[None, :, None, None])

    def pool(y):  # NCHW MaxPool2d(2,2), floor division of spatial dims
        B, C, H, W = y.shape
        Hp, Wp = H // 2, W // 2
        return y[:, :, :2 * Hp, :2 * Wp].reshape(B, C, Hp, 2, Wp, 2).max(axis=(3, 5))

    y = jax.lax.conv_general_dilated(x, raw["conv1_w"], (1, 1), "VALID",
                                     dimension_numbers=("NCHW", "OIHW", "NCHW"))
    y = y + raw["conv1_b"][None, :, None, None]
    y = jnp.maximum(bn(y, raw["bn1_g"], raw["bn1_b"], raw["bn1_m"], raw["bn1_v"]), 0.0)
    y = pool(y)
    y = jax.lax.conv_general_dilated(y, raw["conv2_w"], (1, 1), "VALID",
                                     dimension_numbers=("NCHW", "OIHW", "NCHW"))
    y = y + raw["conv2_b"][None, :, None, None]
    y = jnp.maximum(bn(y, raw["bn2_g"], raw["bn2_b"], raw["bn2_m"], raw["bn2_v"]), 0.0)
    y = pool(y)
    h = y.reshape(y.shape[0], -1)                        # torch .view(-1, 800): (C,H,W)
    h = jnp.maximum(h @ raw["fc1_w"].T + raw["fc1_b"], 0.0)
    h = jnp.maximum(h @ raw["fc2_w"].T + raw["fc2_b"], 0.0)
    h = jnp.maximum(h @ raw["fc3_w"].T + raw["fc3_b"], 0.0)
    logits = h @ raw["fc4_w"].T + raw["fc4_b"]
    return jax.nn.log_softmax(logits, axis=1)


if __name__ == "__main__":
    key = jax.random.PRNGKey(0)
    pkey, xkey = jax.random.split(key)
    raw = init_raw_params(pkey)
    packed = pack_params(raw)
    # Input required by the module: 28x28 RGB images, NCHW, batch = 2.
    x = jax.random.normal(xkey, (2, 3, 28, 28), jnp.float32)

    out = jax.block_until_ready(cnn_forward(packed, x))
    ref = jax.block_until_ready(reference_forward(raw, x))

    assert out.shape == (2, 2), f"unexpected output shape {out.shape}"
    assert bool(jnp.all(jnp.isfinite(out))), "non-finite values in output"
    if not np.allclose(np.asarray(out), np.asarray(ref), atol=5e-2, rtol=5e-2):
        raise AssertionError(
            f"Pallas output diverges from reference: max |diff| = "
            f"{float(jnp.max(jnp.abs(out - ref)))}"
        )
    print("KERNEL_OK")
</pallas_src>

<mosaic_0001>
module attributes {stable_mosaic.version = 11 : i64} {
  func.func @_fused_kernel(%arg0: i32, %arg1: memref<56x128xbf16, #tpu.memory_space<vmem>>, %arg2: memref<384x512xbf16, #tpu.memory_space<vmem>>, %arg3: memref<1x512xf32, #tpu.memory_space<vmem>>, %arg4: memref<1x512xf32, #tpu.memory_space<vmem>>, %arg5: memref<1536x384xbf16, #tpu.memory_space<vmem>>, %arg6: memref<1x384xf32, #tpu.memory_space<vmem>>, %arg7: memref<1x384xf32, #tpu.memory_space<vmem>>, %arg8: memref<26x53xbf16, #tpu.memory_space<vmem>>, %arg9: memref<10x23xbf16, #tpu.memory_space<vmem>>, %arg10: memref<1920x128xbf16, #tpu.memory_space<vmem>>, %arg11: memref<1x128xf32, #tpu.memory_space<vmem>>, %arg12: memref<128x128xbf16, #tpu.memory_space<vmem>>, %arg13: memref<1x128xf32, #tpu.memory_space<vmem>>, %arg14: memref<128x128xbf16, #tpu.memory_space<vmem>>, %arg15: memref<1x128xf32, #tpu.memory_space<vmem>>, %arg16: memref<128x128xbf16, #tpu.memory_space<vmem>>, %arg17: memref<1x128xf32, #tpu.memory_space<vmem>>, %arg18: memref<2x128xf32, #tpu.memory_space<vmem>>) attributes {dimension_semantics = [#tpu.dimension_semantics<parallel>], iteration_bounds = array<i64: 1>, scalar_prefetch = 0 : i64, scratch_operands = 0 : i64, tpu.core_type = #tpu.core_type<tc>, window_params = [{transform_indices = @transform_0, window_bounds = array<i64: 56, 128>}, {pipeline_mode = #tpu.pipeline_mode<synchronous>, transform_indices = @transform_1, window_bounds = array<i64: 384, 512>}, {pipeline_mode = #tpu.pipeline_mode<synchronous>, transform_indices = @transform_2, window_bounds = array<i64: 1, 512>}, {pipeline_mode = #tpu.pipeline_mode<synchronous>, transform_indices = @transform_3, window_bounds = array<i64: 1, 512>}, {pipeline_mode = #tpu.pipeline_mode<synchronous>, transform_indices = @transform_4, window_bounds = array<i64: 1536, 384>}, {pipeline_mode = #tpu.pipeline_mode<synchronous>, transform_indices = @transform_5, window_bounds = array<i64: 1, 384>}, {pipeline_mode = #tpu.pipeline_mode<synchronous>, transform_indices = @transform_6, window_bounds = array<i64: 1, 384>}, {pipeline_mode = #tpu.pipeline_mode<synchronous>, transform_indices = @transform_7, window_bounds = array<i64: 26, 53>}, {pipeline_mode = #tpu.pipeline_mode<synchronous>, transform_indices = @transform_8, window_bounds = array<i64: 10, 23>}, {pipeline_mode = #tpu.pipeline_mode<synchronous>, transform_indices = @transform_9, window_bounds = array<i64: 1920, 128>}, {pipeline_mode = #tpu.pipeline_mode<synchronous>, transform_indices = @transform_10, window_bounds = array<i64: 1, 128>}, {pipeline_mode = #tpu.pipeline_mode<synchronous>, transform_indices = @transform_11, window_bounds = array<i64: 128, 128>}, {pipeline_mode = #tpu.pipeline_mode<synchronous>, transform_indices = @transform_12, window_bounds = array<i64: 1, 128>}, {pipeline_mode = #tpu.pipeline_mode<synchronous>, transform_indices = @transform_13, window_bounds = array<i64: 128, 128>}, {pipeline_mode = #tpu.pipeline_mode<synchronous>, transform_indices = @transform_14, window_bounds = array<i64: 1, 128>}, {pipeline_mode = #tpu.pipeline_mode<synchronous>, transform_indices = @transform_15, window_bounds = array<i64: 128, 128>}, {pipeline_mode = #tpu.pipeline_mode<synchronous>, transform_indices = @transform_16, window_bounds = array<i64: 1, 128>}, {transform_indices = @transform_17, window_bounds = array<i64: 2, 128>}]} {
    %c0 = arith.constant 0 : index
    %c0_0 = arith.constant 0 : index
    %0 = vector.load %arg1[%c0, %c0_0] : memref<56x128xbf16, #tpu.memory_space<vmem>>, vector<56x128xbf16>
    %1 = vector.extract_strided_slice %0 {offsets = [0, 0], sizes = [54, 128], strides = [1, 1]} : vector<56x128xbf16> to vector<54x128xbf16>
    %2 = vector.extract_strided_slice %0 {offsets = [1, 0], sizes = [54, 128], strides = [1, 1]} : vector<56x128xbf16> to vector<54x128xbf16>
    %3 = vector.extract_strided_slice %0 {offsets = [2, 0], sizes = [54, 128], strides = [1, 1]} : vector<56x128xbf16> to vector<54x128xbf16>
    %4 = tpu.concatenate %1, %2, %3 in 1 : vector<54x128xbf16>, vector<54x128xbf16>, vector<54x128xbf16> -> vector<54x384xbf16>
    %c0_1 = arith.constant 0 : index
    %c0_2 = arith.constant 0 : index
    %5 = vector.load %arg2[%c0_1, %c0_2] : memref<384x512xbf16, #tpu.memory_space<vmem>>, vector<384x512xbf16>
    %cst = arith.constant dense<0.000000e+00> : vector<54x512xf32>
    %6 = tpu.matmul %4, %5, %cst {dimension_numbers = #tpu.dot_dimension_numbers<[1], [0], [0], [1], [0, 0, 1, 1], [], []>} : vector<54x384xbf16>, vector<384x512xbf16>, vector<54x512xf32> -> vector<54x512xf32>
    %c0_3 = arith.constant 0 : index
    %c0_4 = arith.constant 0 : index
    %7 = vector.load %arg3[%c0_3, %c0_4] : memref<1x512xf32, #tpu.memory_space<vmem>>, vector<1x512xf32>
    %8 = vector.broadcast %7 : vector<1x512xf32> to vector<54x512xf32>
    %9 = arith.mulf %6, %8 : vector<54x512xf32>
    %c0_5 = arith.constant 0 : index
    %c0_6 = arith.constant 0 : index
    %10 = vector.load %arg4[%c0_5, %c0_6] : memref<1x512xf32, #tpu.memory_space<vmem>>, vector<1x512xf32>
    %11 = vector.broadcast %10 : vector<1x512xf32> to vector<54x512xf32>
    %12 = arith.addf %9, %11 : vector<54x512xf32>
    %cst_7 = arith.constant 0.000000e+00 : f32
    %13 = vector.broadcast %cst_7 : f32 to vector<54x512xf32>
    %14 = arith.maximumf %12, %13 : vector<54x512xf32>
    %15 = arith.truncf %14 : vector<54x512xf32> to vector<54x512xbf16>
    %16 = vector.extract_strided_slice %15 {offsets = [0, 16], sizes = [54, 496], strides = [1, 1]} : vector<54x512xbf16> to vector<54x496xbf16>
    %cst_8 = arith.constant 0.000000e+00 : bf16
    %17 = vector.broadcast %cst_8 : bf16 to vector<54x16xbf16>
    %18 = tpu.concatenate %16, %17 in 1 : vector<54x496xbf16>, vector<54x16xbf16> -> vector<54x512xbf16>
    %19 = arith.maximumf %15, %18 : vector<54x512xbf16>
    %20 = vector.extract_strided_slice %19 {offsets = [0, 0], sizes = [53, 512], strides = [1, 1]} : vector<54x512xbf16> to vector<53x512xbf16>
    %21 = vector.extract_strided_slice %19 {offsets = [1, 0], sizes = [53, 512], strides = [1, 1]} : vector<54x512xbf16> to vector<53x512xbf16>
    %22 = arith.maximumf %20, %21 : vector<53x512xbf16>
    %c0_9 = arith.constant 0 : index
    %c0_10 = arith.constant 0 : index
    %23 = vector.load %arg8[%c0_9, %c0_10] : memref<26x53xbf16, #tpu.memory_space<vmem>>, vector<26x53xbf16>
    %cst_11 = arith.constant dense<0.000000e+00> : vector<26x512xf32>
    %24 = tpu.matmul %23, %22, %cst_11 {dimension_numbers = #tpu.dot_dimension_numbers<[1], [0], [0], [1], [0, 0, 1, 1], [], []>} : vector<26x53xbf16>, vector<53x512xbf16>, vector<26x512xf32> -> vector<26x512xf32>
    %25 = arith.truncf %24 : vector<26x512xf32> to vector<26x512xbf16>
    %26 = vector.extract_strided_slice %25 {offsets = [0, 0], sizes = [24, 512], strides = [1, 1]} : vector<26x512xbf16> to vector<24x512xbf16>
    %27 = vector.extract_strided_slice %25 {offsets = [1, 0], sizes = [24, 512], strides = [1, 1]} : vector<26x512xbf16> to vector<24x512xbf16>
    %28 = vector.extract_strided_slice %25 {offsets = [2, 0], sizes = [24, 512], strides = [1, 1]} : vector<26x512xbf16> to vector<24x512xbf16>
    %29 = tpu.concatenate %26, %27, %28 in 1 : vector<24x512xbf16>, vector<24x512xbf16>, vector<24x512xbf16> -> vector<24x1536xbf16>
    %c0_12 = arith.constant 0 : index
    %c0_13 = arith.constant 0 : index
    %30 = vector.load %arg5[%c0_12, %c0_13] : memref<1536x384xbf16, #tpu.memory_space<vmem>>, vector<1536x384xbf16>
    %cst_14 = arith.constant dense<0.000000e+00> : vector<24x384xf32>
    %31 = tpu.matmul %29, %30, %cst_14 {dimension_numbers = #tpu.dot_dimension_numbers<[1], [0], [0], [1], [0, 0, 1, 1], [], []>} : vector<24x1536xbf16>, vector<1536x384xbf16>, vector<24x384xf32> -> vector<24x384xf32>
    %c0_15 = arith.constant 0 : index
    %c0_16 = arith.constant 0 : index
    %32 = vector.load %arg6[%c0_15, %c0_16] : memref<1x384xf32, #tpu.memory_space<vmem>>, vector<1x384xf32>
    %33 = vector.broadcast %32 : vector<1x384xf32> to vector<24x384xf32>
    %34 = arith.mulf %31, %33 : vector<24x384xf32>
    %c0_17 = arith.constant 0 : index
    %c0_18 = arith.constant 0 : index
    %35 = vector.load %arg7[%c0_17, %c0_18] : memref<1x384xf32, #tpu.memory_space<vmem>>, vector<1x384xf32>
    %36 = vector.broadcast %35 : vector<1x384xf32> to vector<24x384xf32>
    %37 = arith.addf %34, %36 : vector<24x384xf32>
    %cst_19 = arith.constant 0.000000e+00 : f32
    %38 = vector.broadcast %cst_19 : f32 to vector<24x384xf32>
    %39 = arith.maximumf %37, %38 : vector<24x384xf32>
    %40 = arith.truncf %39 : vector<24x384xf32> to vector<24x384xbf16>
    %41 = vector.extract_strided_slice %40 {offsets = [0, 32], sizes = [24, 352], strides = [1, 1]} : vector<24x384xbf16> to vector<24x352xbf16>
    %cst_20 = arith.constant 0.000000e+00 : bf16
    %42 = vector.broadcast %cst_20 : bf16 to vector<24x32xbf16>
    %43 = tpu.concatenate %41, %42 in 1 : vector<24x352xbf16>, vector<24x32xbf16> -> vector<24x384xbf16>
    %44 = arith.maximumf %40, %43 : vector<24x384xbf16>
    %45 = vector.extract_strided_slice %44 {offsets = [0, 0], sizes = [23, 384], strides = [1, 1]} : vector<24x384xbf16> to vector<23x384xbf16>
    %46 = vector.extract_strided_slice %44 {offsets = [1, 0], sizes = [23, 384], strides = [1, 1]} : vector<24x384xbf16> to vector<23x384xbf16>
    %47 = arith.maximumf %45, %46 : vector<23x384xbf16>
    %c0_21 = arith.constant 0 : index
    %c0_22 = arith.constant 0 : index
    %48 = vector.load %arg9[%c0_21, %c0_22] : memref<10x23xbf16, #tpu.memory_space<vmem>>, vector<2x23xbf16>
    %cst_23 = arith.constant dense<0.000000e+00> : vector<2x384xf32>
    %49 = tpu.matmul %48, %47, %cst_23 {dimension_numbers = #tpu.dot_dimension_numbers<[1], [0], [0], [1], [0, 0, 1, 1], [], []>} : vector<2x23xbf16>, vector<23x384xbf16>, vector<2x384xf32> -> vector<2x384xf32>
    %50 = arith.truncf %49 : vector<2x384xf32> to vector<2x384xbf16>
    %c2 = arith.constant 2 : index
    %c0_24 = arith.constant 0 : index
    %51 = vector.load %arg9[%c2, %c0_24] : memref<10x23xbf16, #tpu.memory_space<vmem>>, vector<2x23xbf16>
    %cst_25 = arith.constant dense<0.000000e+00> : vector<2x384xf32>
    %52 = tpu.matmul %51, %47, %cst_25 {dimension_numbers = #tpu.dot_dimension_numbers<[1], [0], [0], [1], [0, 0, 1, 1], [], []>} : vector<2x23xbf16>, vector<23x384xbf16>, vector<2x384xf32> -> vector<2x384xf32>
    %53 = arith.truncf %52 : vector<2x384xf32> to vector<2x384xbf16>
    %c4 = arith.constant 4 : index
    %c0_26 = arith.constant 0 : index
    %54 = vector.load %arg9[%c4, %c0_26] : memref<10x23xbf16, #tpu.memory_space<vmem>>, vector<2x23xbf16>
    %cst_27 = arith.constant dense<0.000000e+00> : vector<2x384xf32>
    %55 = tpu.matmul %54, %47, %cst_27 {dimension_numbers = #tpu.dot_dimension_numbers<[1], [0], [0], [1], [0, 0, 1, 1], [], []>} : vector<2x23xbf16>, vector<23x384xbf16>, vector<2x384xf32> -> vector<2x384xf32>
    %56 = arith.truncf %55 : vector<2x384xf32> to vector<2x384xbf16>
    %c6 = arith.constant 6 : index
    %c0_28 = arith.constant 0 : index
    %57 = vector.load %arg9[%c6, %c0_28] : memref<10x23xbf16, #tpu.memory_space<vmem>>, vector<2x23xbf16>
    %cst_29 = arith.constant dense<0.000000e+00> : vector<2x384xf32>
    %58 = tpu.matmul %57, %47, %cst_29 {dimension_numbers = #tpu.dot_dimension_numbers<[1], [0], [0], [1], [0, 0, 1, 1], [], []>} : vector<2x23xbf16>, vector<23x384xbf16>, vector<2x384xf32> -> vector<2x384xf32>
    %59 = arith.truncf %58 : vector<2x384xf32> to vector<2x384xbf16>
    %c8 = arith.constant 8 : index
    %c0_30 = arith.constant 0 : index
    %60 = vector.load %arg9[%c8, %c0_30] : memref<10x23xbf16, #tpu.memory_space<vmem>>, vector<2x23xbf16>
    %cst_31 = arith.constant dense<0.000000e+00> : vector<2x384xf32>
    %61 = tpu.matmul %60, %47, %cst_31 {dimension_numbers = #tpu.dot_dimension_numbers<[1], [0], [0], [1], [0, 0, 1, 1], [], []>} : vector<2x23xbf16>, vector<23x384xbf16>, vector<2x384xf32> -> vector<2x384xf32>
    %62 = arith.truncf %61 : vector<2x384xf32> to vector<2x384xbf16>
    %63 = tpu.concatenate %50, %53, %56, %59, %62 in 1 : vector<2x384xbf16>, vector<2x384xbf16>, vector<2x384xbf16>, vector<2x384xbf16>, vector<2x384xbf16> -> vector<2x1920xbf16>
    %c0_32 = arith.constant 0 : index
    %c0_33 = arith.constant 0 : index
    %64 = vector.load %arg10[%c0_32, %c0_33] : memref<1920x128xbf16, #tpu.memory_space<vmem>>, vector<1920x128xbf16>
    %cst_34 = arith.constant dense<0.000000e+00> : vector<2x128xf32>
    %65 = tpu.matmul %63, %64, %cst_34 {dimension_numbers = #tpu.dot_dimension_numbers<[1], [0], [0], [1], [0, 0, 1, 1], [], []>} : vector<2x1920xbf16>, vector<1920x128xbf16>, vector<2x128xf32> -> vector<2x128xf32>
    %c0_35 = arith.constant 0 : index
    %c0_36 = arith.constant 0 : index
    %66 = vector.load %arg11[%c0_35, %c0_36] : memref<1x128xf32, #tpu.memory_space<vmem>>, vector<1x128xf32>
    %67 = vector.broadcast %66 : vector<1x128xf32> to vector<2x128xf32>
    %68 = arith.addf %65, %67 : vector<2x128xf32>
    %cst_37 = arith.constant 0.000000e+00 : f32
    %69 = vector.broadcast %cst_37 : f32 to vector<2x128xf32>
    %70 = arith.maximumf %68, %69 : vector<2x128xf32>
    %71 = arith.truncf %70 : vector<2x128xf32> to vector<2x128xbf16>
    %c0_38 = arith.constant 0 : index
    %c0_39 = arith.constant 0 : index
    %72 = vector.load %arg12[%c0_38, %c0_39] : memref<128x128xbf16, #tpu.memory_space<vmem>>, vector<128x128xbf16>
    %cst_40 = arith.constant dense<0.000000e+00> : vector<2x128xf32>
    %73 = tpu.matmul %71, %72, %cst_40 {dimension_numbers = #tpu.dot_dimension_numbers<[1], [0], [0], [1], [0, 0, 1, 1], [], []>} : vector<2x128xbf16>, vector<128x128xbf16>, vector<2x128xf32> -> vector<2x128xf32>
    %c0_41 = arith.constant 0 : index
    %c0_42 = arith.constant 0 : index
    %74 = vector.load %arg13[%c0_41, %c0_42] : memref<1x128xf32, #tpu.memory_space<vmem>>, vector<1x128xf32>
    %75 = vector.broadcast %74 : vector<1x128xf32> to vector<2x128xf32>
    %76 = arith.addf %73, %75 : vector<2x128xf32>
    %cst_43 = arith.constant 0.000000e+00 : f32
    %77 = vector.broadcast %cst_43 : f32 to vector<2x128xf32>
    %78 = arith.maximumf %76, %77 : vector<2x128xf32>
    %79 = arith.truncf %78 : vector<2x128xf32> to vector<2x128xbf16>
    %c0_44 = arith.constant 0 : index
    %c0_45 = arith.constant 0 : index
    %80 = vector.load %arg14[%c0_44, %c0_45] : memref<128x128xbf16, #tpu.memory_space<vmem>>, vector<128x128xbf16>
    %cst_46 = arith.constant dense<0.000000e+00> : vector<2x128xf32>
    %81 = tpu.matmul %79, %80, %cst_46 {dimension_numbers = #tpu.dot_dimension_numbers<[1], [0], [0], [1], [0, 0, 1, 1], [], []>} : vector<2x128xbf16>, vector<128x128xbf16>, vector<2x128xf32> -> vector<2x128xf32>
    %c0_47 = arith.constant 0 : index
    %c0_48 = arith.constant 0 : index
    %82 = vector.load %arg15[%c0_47, %c0_48] : memref<1x128xf32, #tpu.memory_space<vmem>>, vector<1x128xf32>
    %83 = vector.broadcast %82 : vector<1x128xf32> to vector<2x128xf32>
    %84 = arith.addf %81, %83 : vector<2x128xf32>
    %cst_49 = arith.constant 0.000000e+00 : f32
    %85 = vector.broadcast %cst_49 : f32 to vector<2x128xf32>
    %86 = arith.maximumf %84, %85 : vector<2x128xf32>
    %87 = arith.truncf %86 : vector<2x128xf32> to vector<2x128xbf16>
    %c0_50 = arith.constant 0 : index
    %c0_51 = arith.constant 0 : index
    %88 = vector.load %arg16[%c0_50, %c0_51] : memref<128x128xbf16, #tpu.memory_space<vmem>>, vector<128x128xbf16>
    %cst_52 = arith.constant dense<0.000000e+00> : vector<2x128xf32>
    %89 = tpu.matmul %87, %88, %cst_52 {dimension_numbers = #tpu.dot_dimension_numbers<[1], [0], [0], [1], [0, 0, 1, 1], [], []>} : vector<2x128xbf16>, vector<128x128xbf16>, vector<2x128xf32> -> vector<2x128xf32>
    %c0_53 = arith.constant 0 : index
    %c0_54 = arith.constant 0 : index
    %90 = vector.load %arg17[%c0_53, %c0_54] : memref<1x128xf32, #tpu.memory_space<vmem>>, vector<1x128xf32>
    %91 = vector.broadcast %90 : vector<1x128xf32> to vector<2x128xf32>
    %92 = arith.addf %89, %91 : vector<2x128xf32>
    %cst_55 = arith.constant dense<0xFF800000> : vector<2xf32>
    %93 = vector.multi_reduction <maximumf>, %92, %cst_55 [1] : vector<2x128xf32> to vector<2xf32>
    %94 = vector.shape_cast %93 : vector<2xf32> to vector<2x1xf32>
    %95 = vector.broadcast %94 : vector<2x1xf32> to vector<2x128xf32>
    %96 = arith.subf %92, %95 : vector<2x128xf32>
    %97 = math.exp %96 : vector<2x128xf32>
    %cst_56 = arith.constant dense<0.000000e+00> : vector<2xf32>
    %98 = vector.multi_reduction <add>, %97, %cst_56 [1] : vector<2x128xf32> to vector<2xf32>
    %99 = vector.shape_cast %98 : vector<2xf32> to vector<2x1xf32>
    %100 = math.log %99 : vector<2x1xf32>
    %101 = vector.broadcast %100 : vector<2x1xf32> to vector<2x128xf32>
    %102 = arith.subf %96, %101 : vector<2x128xf32>
    %c0_57 = arith.constant 0 : index
    %c0_58 = arith.constant 0 : index
    %103 = vector.load %arg18[%c0_57, %c0_58] : memref<2x128xf32, #tpu.memory_space<vmem>>, vector<2x128xf32>
    tpu.vector_store %arg18[%c0_57, %c0_58], %102 {strides = array<i32>} : memref<2x128xf32, #tpu.memory_space<vmem>>, vector<2x128xf32>,
    return
  }
  func.func @transform_0(%arg0: i32) -> (i32, i32) {
    %c0_i32 = arith.constant 0 : i32
    %c0_i32_0 = arith.constant 0 : i32
    return %arg0, %c0_i32 : i32, i32
  }
  func.func @transform_1(%arg0: i32) -> (i32, i32) {
    %c0_i32 = arith.constant 0 : i32
    %c0_i32_0 = arith.constant 0 : i32
    %c0_i32_1 = arith.constant 0 : i32
    return %c0_i32, %c0_i32_0 : i32, i32
  }
  func.func @transform_2(%arg0: i32) -> (i32, i32) {
    %c0_i32 = arith.constant 0 : i32
    %c0_i32_0 = arith.constant 0 : i32
    %c0_i32_1 = arith.constant 0 : i32
    return %c0_i32, %c0_i32_0 : i32, i32
  }
  func.func @transform_3(%arg0: i32) -> (i32, i32) {
    %c0_i32 = arith.constant 0 : i32
    %c0_i32_0 = arith.constant 0 : i32
    %c0_i32_1 = arith.constant 0 : i32
    return %c0_i32, %c0_i32_0 : i32, i32
  }
  func.func @transform_4(%arg0: i32) -> (i32, i32) {
    %c0_i32 = arith.constant 0 : i32
    %c0_i32_0 = arith.constant 0 : i32
    %c0_i32_1 = arith.constant 0 : i32
    return %c0_i32, %c0_i32_0 : i32, i32
  }
  func.func @transform_5(%arg0: i32) -> (i32, i32) {
    %c0_i32 = arith.constant 0 : i32
    %c0_i32_0 = arith.constant 0 : i32
    %c0_i32_1 = arith.constant 0 : i32
    return %c0_i32, %c0_i32_0 : i32, i32
  }
  func.func @transform_6(%arg0: i32) -> (i32, i32) {
    %c0_i32 = arith.constant 0 : i32
    %c0_i32_0 = arith.constant 0 : i32
    %c0_i32_1 = arith.constant 0 : i32
    return %c0_i32, %c0_i32_0 : i32, i32
  }
  func.func @transform_7(%arg0: i32) -> (i32, i32) {
    %c0_i32 = arith.constant 0 : i32
    %c0_i32_0 = arith.constant 0 : i32
    %c0_i32_1 = arith.constant 0 : i32
    return %c0_i32, %c0_i32_0 : i32, i32
  }
  func.func @transform_8(%arg0: i32) -> (i32, i32) {
    %c0_i32 = arith.constant 0 : i32
    %c0_i32_0 = arith.constant 0 : i32
    %c0_i32_1 = arith.constant 0 : i32
    return %c0_i32, %c0_i32_0 : i32, i32
  }
  func.func @transform_9(%arg0: i32) -> (i32, i32) {
    %c0_i32 = arith.constant 0 : i32
    %c0_i32_0 = arith.constant 0 : i32
    %c0_i32_1 = arith.constant 0 : i32
    return %c0_i32, %c0_i32_0 : i32, i32
  }
  func.func @transform_10(%arg0: i32) -> (i32, i32) {
    %c0_i32 = arith.constant 0 : i32
    %c0_i32_0 = arith.constant 0 : i32
    %c0_i32_1 = arith.constant 0 : i32
    return %c0_i32, %c0_i32_0 : i32, i32
  }
  func.func @transform_11(%arg0: i32) -> (i32, i32) {
    %c0_i32 = arith.constant 0 : i32
    %c0_i32_0 = arith.constant 0 : i32
    %c0_i32_1 = arith.constant 0 : i32
    return %c0_i32, %c0_i32_0 : i32, i32
  }
  func.func @transform_12(%arg0: i32) -> (i32, i32) {
    %c0_i32 = arith.constant 0 : i32
    %c0_i32_0 = arith.constant 0 : i32
    %c0_i32_1 = arith.constant 0 : i32
    return %c0_i32, %c0_i32_0 : i32, i32
  }
  func.func @transform_13(%arg0: i32) -> (i32, i32) {
    %c0_i32 = arith.constant 0 : i32
    %c0_i32_0 = arith.constant 0 : i32
    %c0_i32_1 = arith.constant 0 : i32
    return %c0_i32, %c0_i32_0 : i32, i32
  }
  func.func @transform_14(%arg0: i32) -> (i32, i32) {
    %c0_i32 = arith.constant 0 : i32
    %c0_i32_0 = arith.constant 0 : i32
    %c0_i32_1 = arith.constant 0 : i32
    return %c0_i32, %c0_i32_0 : i32, i32
  }
  func.func @transform_15(%arg0: i32) -> (i32, i32) {
    %c0_i32 = arith.constant 0 : i32
    %c0_i32_0 = arith.constant 0 : i32
    %c0_i32_1 = arith.constant 0 : i32
    return %c0_i32, %c0_i32_0 : i32, i32
  }
  func.func @transform_16(%arg0: i32) -> (i32, i32) {
    %c0_i32 = arith.constant 0 : i32
    %c0_i32_0 = arith.constant 0 : i32
    %c0_i32_1 = arith.constant 0 : i32
    return %c0_i32, %c0_i32_0 : i32, i32
  }
  func.func @transform_17(%arg0: i32) -> (i32, i32) {
    %c0_i32 = arith.constant 0 : i32
    %c0_i32_0 = arith.constant 0 : i32
    return %arg0, %c0_i32 : i32, i32
  }
}

</mosaic_0001>

<llo_original>
// kernel: cnn_forward.1
$region0: #{cnn_forward.1}
  #allocation0 [shape = 'u32[]', space=smem, size = 0x4, offset = 0x4, fixed_abs, tag = 'smem constant byte address 0x4 - core index']
  #allocation1 [shape = 'u32[144,128]{1,0:T(1,128)}', space=vmem, size = 0x12000, scoped, tag = 'internal scratch']
  %s0 = inlined_call_operand.vmem [shape: bf16[56,128], index: 0, kind: input, shape index: {}]
  %s1 = inlined_call_operand.hbm [shape: bf16[384,512], index: 1, kind: input, shape index: {}]
  %s2 = inlined_call_operand.hbm [shape: f32[1,512], index: 2, kind: input, shape index: {}]
  %s3 = inlined_call_operand.hbm [shape: f32[1,512], index: 3, kind: input, shape index: {}]
  %s4 = inlined_call_operand.hbm [shape: bf16[1536,384], index: 4, kind: input, shape index: {}]
  %s5 = inlined_call_operand.hbm [shape: f32[1,384], index: 5, kind: input, shape index: {}]
  %s6 = inlined_call_operand.hbm [shape: f32[1,384], index: 6, kind: input, shape index: {}]
  %s7 = inlined_call_operand.hbm [shape: bf16[26,53], index: 7, kind: input, shape index: {}]
  %s8 = inlined_call_operand.hbm [shape: bf16[10,23], index: 8, kind: input, shape index: {}]
  %s9 = inlined_call_operand.hbm [shape: bf16[1920,128], index: 9, kind: input, shape index: {}]
  %s10 = inlined_call_operand.hbm [shape: f32[1,128], index: 10, kind: input, shape index: {}]
  %s11 = inlined_call_operand.hbm [shape: bf16[128,128], index: 11, kind: input, shape index: {}]
  %s12 = inlined_call_operand.hbm [shape: f32[1,128], index: 12, kind: input, shape index: {}]
  %s13 = inlined_call_operand.hbm [shape: bf16[128,128], index: 13, kind: input, shape index: {}]
  %s14 = inlined_call_operand.hbm [shape: f32[1,128], index: 14, kind: input, shape index: {}]
  %s15 = inlined_call_operand.hbm [shape: bf16[128,128], index: 15, kind: input, shape index: {}]
  %s16 = inlined_call_operand.hbm [shape: f32[1,128], index: 16, kind: input, shape index: {}]
  %s17 = inlined_call_operand.hbm [shape: f32[2,128], index: 17, kind: output, shape index: {}]
  %s18 = sld [smem:[#allocation0]]
  $region142: #{cnn_forward.1} parent=0
    _
  %s20 = ssub.s32 1, %s18
  %s21 = scalar_select 0, %s20, %s18
  $region1: #{cnn_forward.1} parent=0
    #allocation2 [shape = 'u8[393216]{0}', space=vmem, size = 0x60000, scoped, tag = 'input window, operand 1, single buffered']
    #allocation3 [shape = 's32[1]{0}', space=sflag, size = 0x4, scoped, tag = 'scoped memory for cnn_forward.1']
    #allocation4 [shape = 's32[1]{0}', space=sflag, size = 0x4, scoped, tag = 'scoped memory for cnn_forward.1']
    #allocation5 [shape = 'u8[2048]{0}', space=vmem, size = 0x800, scoped, tag = 'input window, operand 2, single buffered']
    #allocation6 [shape = 's32[1]{0}', space=sflag, size = 0x4, scoped, tag = 'scoped memory for cnn_forward.1']
    #allocation7 [shape = 'u8[2048]{0}', space=vmem, size = 0x800, scoped, tag = 'input window, operand 3, single buffered']
    #allocation8 [shape = 'u8[1179648]{0}', space=vmem, size = 0x120000, scoped, tag = 'input window, operand 4, single buffered']
    #allocation9 [shape = 's32[1]{0}', space=sflag, size = 0x4, scoped, tag = 'scoped memory for cnn_forward.1']
    #allocation10 [shape = 'u8[1536]{0}', space=vmem, size = 0x800, scoped, tag = 'input window, operand 5, single buffered']
    #allocation11 [shape = 'u8[1536]{0}', space=vmem, size = 0x800, scoped, tag = 'input window, operand 6, single buffered']
    #allocation12 [shape = 's32[1]{0}', space=sflag, size = 0x4, scoped, tag = 'scoped memory for cnn_forward.1']
    #allocation13 [shape = 'u8[8192]{0}', space=vmem, size = 0x2000, scoped, tag = 'input window, operand 7, single buffered']
    #allocation14 [shape = 'u8[4096]{0}', space=vmem, size = 0x1000, scoped, tag = 'input window, operand 8, single buffered']
    #allocation15 [shape = 's32[1]{0}', space=sflag, size = 0x4, scoped, tag = 'scoped memory for cnn_forward.1']
    #allocation16 [shape = 'u8[491520]{0}', space=vmem, size = 0x78000, scoped, tag = 'input window, operand 9, single buffered']
    #allocation17 [shape = 'u8[512]{0}', space=vmem, size = 0x400, scoped, tag = 'input window, operand 10, single buffered']
    #allocation18 [shape = 's32[1]{0}', space=sflag, size = 0x4, scoped, tag = 'scoped memory for cnn_forward.1']
    #allocation19 [shape = 'u8[32768]{0}', space=vmem, size = 0x8000, scoped, tag = 'input window, operand 11, single buffered']
    #allocation20 [shape = 'u8[512]{0}', space=vmem, size = 0x400, scoped, tag = 'input window, operand 12, single buffered']
    #allocation21 [shape = 's32[1]{0}', space=sflag, size = 0x4, scoped, tag = 'scoped memory for cnn_forward.1']
    #allocation22 [shape = 'u8[32768]{0}', space=vmem, size = 0x8000, scoped, tag = 'input window, operand 13, single buffered']
    #allocation23 [shape = 'u8[512]{0}', space=vmem, size = 0x400, scoped, tag = 'input window, operand 14, single buffered']
    #allocation24 [shape = 's32[1]{0}', space=sflag, size = 0x4, scoped, tag = 'scoped memory for cnn_forward.1']
    #allocation25 [shape = 'u8[32768]{0}', space=vmem, size = 0x8000, scoped, tag = 'input window, operand 15, single buffered']
    #allocation26 [shape = 'u8[512]{0}', space=vmem, size = 0x400, scoped, tag = 'input window, operand 16, single buffered']
    #allocation27 [shape = 's32[1]{0}', space=sflag, size = 0x4, scoped, tag = 'scoped memory for cnn_forward.1']
    #allocation28 [shape = 'u8[1024]{0}', space=vmem, size = 0x400, scoped, tag = 'output window, operand 0, single buffered']
    %22 = vsyncpa [#allocation3], 0
    %23 = vsyncpa [#allocation6], 0
    %24 = vsyncpa [#allocation9], 0
    %25 = vsyncpa [#allocation12], 0
    %26 = vsyncpa [#allocation15], 0
    %27 = vsyncpa [#allocation18], 0
    %28 = vsyncpa [#allocation21], 0
    %29 = vsyncpa [#allocation24], 0
    %30 = vsyncpa [#allocation27], 0
    %31 = vsyncpa [#allocation4], 0
    // Predicated region
    $region2: #{cnn_forward.1} parent=1 // pred_check
      _
    $region3: #{cnn_forward.1} parent=1 // pred_check_branch
      %33 = sbr.rel (0) target = $region5
    $region4: #{cnn_forward.1} parent=1 // pred_region
      _
    $region5: #{cnn_forward.1} parent=1 // pred_fallthru
      _
    // Predicated region
    $region6: #{cnn_forward.1} parent=1 // pred_check
      _
    $region7: #{cnn_forward.1} parent=1 // pred_check_branch
      %35 = sbr.rel (0) target = $region9
    $region8: #{cnn_forward.1} parent=1 // pred_region
      %s37 = ssub.s32 12288, 12288
      %38 = vsyncadd [#allocation3], %s37
      %s39 = sshll.u32 [#allocation2], 4
      %s40 = int_to_ptr.vmem [resolvable:$true] %s39
      %45 = dma.hbm_to_vmem [thread:$0]  %s1, 12288, %s40, [#allocation3], 256, 256, 16
    $region9: #{cnn_forward.1} parent=1 // pred_fallthru
      _
    // Predicated region
    $region10: #{cnn_forward.1} parent=1 // pred_check
      _
    $region11: #{cnn_forward.1} parent=1 // pred_check_branch
      %47 = sbr.rel (0) target = $region13
    $region12: #{cnn_forward.1} parent=1 // pred_region
      %s49 = ssub.s32 64, 64
      %50 = vsyncadd [#allocation6], %s49
      %s52 = sshll.u32 [#allocation5], 4
      %s53 = int_to_ptr.vmem [resolvable:$true] %s52
      %55 = dma.hbm_to_vmem [thread:$0]  %s2, 64, %s53, [#allocation6]
    $region13: #{cnn_forward.1} parent=1 // pred_fallthru
      _
    // Predicated region
    $region14: #{cnn_forward.1} parent=1 // pred_check
      _
    $region15: #{cnn_forward.1} parent=1 // pred_check_branch
      %57 = sbr.rel (0) target = $region17
    $region16: #{cnn_forward.1} parent=1 // pred_region
      %s59 = ssub.s32 64, 64
      %60 = vsyncadd [#allocation6], %s59
      %s62 = sshll.u32 [#allocation7], 4
      %s63 = int_to_ptr.vmem [resolvable:$true] %s62
      %65 = dma.hbm_to_vmem [thread:$0]  %s3, 64, %s63, [#allocation6]
    $region17: #{cnn_forward.1} parent=1 // pred_fallthru
      _
    // Predicated region
    $region18: #{cnn_forward.1} parent=1 // pred_check
      _
    $region19: #{cnn_forward.1} parent=1 // pred_check_branch
      %67 = sbr.rel (0) target = $region21
    $region20: #{cnn_forward.1} parent=1 // pred_region
      %s69 = ssub.s32 36864, 36864
      %70 = vsyncadd [#allocation9], %s69
      %s71 = sshll.u32 [#allocation8], 4
      %s72 = int_to_ptr.vmem [resolvable:$true] %s71
      %77 = dma.hbm_to_vmem [thread:$0]  %s4, 36864, %s72, [#allocation9], 192, 192, 12
    $region21: #{cnn_forward.1} parent=1 // pred_fallthru
      _
    // Predicated region
    $region22: #{cnn_forward.1} parent=1 // pred_check
      _
    $region23: #{cnn_forward.1} parent=1 // pred_check_branch
      %79 = sbr.rel (0) target = $region25
    $region24: #{cnn_forward.1} parent=1 // pred_region
      %s81 = ssub.s32 48, 48
      %82 = vsyncadd [#allocation9], %s81
      %s84 = sshll.u32 [#allocation10], 4
      %s85 = int_to_ptr.vmem [resolvable:$true] %s84
      %87 = dma.hbm_to_vmem [thread:$0]  %s5, 48, %s85, [#allocation9]
    $region25: #{cnn_forward.1} parent=1 // pred_fallthru
      _
    // Predicated region
    $region26: #{cnn_forward.1} parent=1 // pred_check
      _
    $region27: #{cnn_forward.1} parent=1 // pred_check_branch
      %89 = sbr.rel (0) target = $region29
    $region28: #{cnn_forward.1} parent=1 // pred_region
      %s91 = ssub.s32 48, 48
      %92 = vsyncadd [#allocation12], %s91
      %s94 = sshll.u32 [#allocation11], 4
      %s95 = int_to_ptr.vmem [resolvable:$true] %s94
      %97 = dma.hbm_to_vmem [thread:$0]  %s6, 48, %s95, [#allocation12]
    $region29: #{cnn_forward.1} parent=1 // pred_fallthru
      _
    // Predicated region
    $region30: #{cnn_forward.1} parent=1 // pred_check
      _
    $region31: #{cnn_forward.1} parent=1 // pred_check_branch
      %99 = sbr.rel (0) target = $region33
    $region32: #{cnn_forward.1} parent=1 // pred_region
      %s101 = ssub.s32 256, 256
      %102 = vsyncadd [#allocation12], %s101
      %s103 = sshll.u32 [#allocation13], 4
      %s104 = int_to_ptr.vmem [resolvable:$true] %s103
      %109 = dma.hbm_to_vmem [thread:$0]  %s7, 256, %s104, [#allocation12], 64, 64, 4
    $region33: #{cnn_forward.1} parent=1 // pred_fallthru
      _
    // Predicated region
    $region34: #{cnn_forward.1} parent=1 // pred_check
      _
    $region35: #{cnn_forward.1} parent=1 // pred_check_branch
      %111 = sbr.rel (0) target = $region37
    $region36: #{cnn_forward.1} parent=1 // pred_region
      %s113 = ssub.s32 128, 128
      %114 = vsyncadd [#allocation15], %s113
      %s115 = sshll.u32 [#allocation14], 4
      %s116 = int_to_ptr.vmem [resolvable:$true] %s115
      %121 = dma.hbm_to_vmem [thread:$0]  %s8, 128, %s116, [#allocation15], 64, 64, 4
    $region37: #{cnn_forward.1} parent=1 // pred_fallthru
      _
    // Predicated region
    $region38: #{cnn_forward.1} parent=1 // pred_check
      _
    $region39: #{cnn_forward.1} parent=1 // pred_check_branch
      %123 = sbr.rel (0) target = $region41
    $region40: #{cnn_forward.1} parent=1 // pred_region
      %s125 = ssub.s32 15360, 15360
      %126 = vsyncadd [#allocation15], %s125
      %s127 = sshll.u32 [#allocation16], 4
      %s128 = int_to_ptr.vmem [resolvable:$true] %s127
      %133 = dma.hbm_to_vmem [thread:$0]  %s9, 15360, %s128, [#allocation15], 64, 64, 4
    $region41: #{cnn_forward.1} parent=1 // pred_fallthru
      _
    // Predicated region
    $region42: #{cnn_forward.1} parent=1 // pred_check
      _
    $region43: #{cnn_forward.1} parent=1 // pred_check_branch
      %135 = sbr.rel (0) target = $region45
    $region44: #{cnn_forward.1} parent=1 // pred_region
      %s137 = ssub.s32 16, 16
      %138 = vsyncadd [#allocation18], %s137
      %s140 = sshll.u32 [#allocation17], 4
      %s141 = int_to_ptr.vmem [resolvable:$true] %s140
      %143 = dma.hbm_to_vmem [thread:$0]  %s10, 16, %s141, [#allocation18]
    $region45: #{cnn_forward.1} parent=1 // pred_fallthru
      _
    // Predicated region
    $region46: #{cnn_forward.1} parent=1 // pred_check
      _
    $region47: #{cnn_forward.1} parent=1 // pred_check_branch
      %145 = sbr.rel (0) target = $region49
    $region48: #{cnn_forward.1} parent=1 // pred_region
      %s147 = ssub.s32 1024, 1024
      %148 = vsyncadd [#allocation18], %s147
      %s149 = sshll.u32 [#allocation19], 4
      %s150 = int_to_ptr.vmem [resolvable:$true] %s149
      %155 = dma.hbm_to_vmem [thread:$0]  %s11, 1024, %s150, [#allocation18], 64, 64, 4
    $region49: #{cnn_forward.1} parent=1 // pred_fallthru
      _
    // Predicated region
    $region50: #{cnn_forward.1} parent=1 // pred_check
      _
    $region51: #{cnn_forward.1} parent=1 // pred_check_branch
      %157 = sbr.rel (0) target = $region53
    $region52: #{cnn_forward.1} parent=1 // pred_region
      %s159 = ssub.s32 16, 16
      %160 = vsyncadd [#allocation21], %s159
      %s162 = sshll.u32 [#allocation20], 4
      %s163 = int_to_ptr.vmem [resolvable:$true] %s162
      %165 = dma.hbm_to_vmem [thread:$0]  %s12, 16, %s163, [#allocation21]
    $region53: #{cnn_forward.1} parent=1 // pred_fallthru
      _
    // Predicated region
    $region54: #{cnn_forward.1} parent=1 // pred_check
      _
    $region55: #{cnn_forward.1} parent=1 // pred_check_branch
      %167 = sbr.rel (0) target = $region57
    $region56: #{cnn_forward.1} parent=1 // pred_region
      %s169 = ssub.s32 1024, 1024
      %170 = vsyncadd [#allocation21], %s169
      %s171 = sshll.u32 [#allocation22], 4
      %s172 = int_to_ptr.vmem [resolvable:$true] %s171
      %177 = dma.hbm_to_vmem [thread:$0]  %s13, 1024, %s172, [#allocation21], 64, 64, 4
    $region57: #{cnn_forward.1} parent=1 // pred_fallthru
      _
    // Predicated region
    $region58: #{cnn_forward.1} parent=1 // pred_check
      _
    $region59: #{cnn_forward.1} parent=1 // pred_check_branch
      %179 = sbr.rel (0) target = $region61
    $region60: #{cnn_forward.1} parent=1 // pred_region
      %s181 = ssub.s32 16, 16
      %182 = vsyncadd [#allocation24], %s181
      %s184 = sshll.u32 [#allocation23], 4
      %s185 = int_to_ptr.vmem [resolvable:$true] %s184
      %187 = dma.hbm_to_vmem [thread:$0]  %s14, 16, %s185, [#allocation24]
    $region61: #{cnn_forward.1} parent=1 // pred_fallthru
      _
    // Predicated region
    $region62: #{cnn_forward.1} parent=1 // pred_check
      _
    $region63: #{cnn_forward.1} parent=1 // pred_check_branch
      %189 = sbr.rel (0) target = $region65
    $region64: #{cnn_forward.1} parent=1 // pred_region
      %s191 = ssub.s32 1024, 1024
      %192 = vsyncadd [#allocation24], %s191
      %s193 = sshll.u32 [#allocation25], 4
      %s194 = int_to_ptr.vmem [resolvable:$true] %s193
      %199 = dma.hbm_to_vmem [thread:$0]  %s15, 1024, %s194, [#allocation24], 64, 64, 4
    $region65: #{cnn_forward.1} parent=1 // pred_fallthru
      _
    // Predicated region
    $region66: #{cnn_forward.1} parent=1 // pred_check
      _
    $region67: #{cnn_forward.1} parent=1 // pred_check_branch
      %201 = sbr.rel (0) target = $region69
    $region68: #{cnn_forward.1} parent=1 // pred_region
      %s203 = ssub.s32 16, 16
      %204 = vsyncadd [#allocation27], %s203
      %s206 = sshll.u32 [#allocation26], 4
      %s207 = int_to_ptr.vmem [resolvable:$true] %s206
      %209 = dma.hbm_to_vmem [thread:$0]  %s16, 16, %s207, [#allocation27]
    $region69: #{cnn_forward.1} parent=1 // pred_fallthru
      _
    // Predicated region
    $region70: #{cnn_forward.1} parent=1 // pred_check
      _
    $region71: #{cnn_forward.1} parent=1 // pred_check_branch
      %211 = sbr.rel (0) target = $region73
    $region72: #{cnn_forward.1} parent=1 // pred_region
      %212 = dma.done [#allocation3], 12288
    $region73: #{cnn_forward.1} parent=1 // pred_fallthru
      _
    // Predicated region
    $region74: #{cnn_forward.1} parent=1 // pred_check
      _
    $region75: #{cnn_forward.1} parent=1 // pred_check_branch
      %214 = sbr.rel (0) target = $region77
    $region76: #{cnn_forward.1} parent=1 // pred_region
      %215 = dma.done [#allocation6], 64
    $region77: #{cnn_forward.1} parent=1 // pred_fallthru
      _
    // Predicated region
    $region78: #{cnn_forward.1} parent=1 // pred_check
      _
    $region79: #{cnn_forward.1} parent=1 // pred_check_branch
      %217 = sbr.rel (0) target = $region81
    $region80: #{cnn_forward.1} parent=1 // pred_region
      %218 = dma.done [#allocation6], 64
    $region81: #{cnn_forward.1} parent=1 // pred_fallthru
      _
    // Predicated region
    $region82: #{cnn_forward.1} parent=1 // pred_check
      _
    $region83: #{cnn_forward.1} parent=1 // pred_check_branch
      %220 = sbr.rel (0) target = $region85
    $region84: #{cnn_forward.1} parent=1 // pred_region
      %221 = dma.done [#allocation9], 36864
    $region85: #{cnn_forward.1} parent=1 // pred_fallthru
      _
    // Predicated region
    $region86: #{cnn_forward.1} parent=1 // pred_check
      _
    $region87: #{cnn_forward.1} parent=1 // pred_check_branch
      %223 = sbr.rel (0) target = $region89
    $region88: #{cnn_forward.1} parent=1 // pred_region
      %224 = dma.done [#allocation9], 48
    $region89: #{cnn_forward.1} parent=1 // pred_fallthru
      _
    // Predicated region
    $region90: #{cnn_forward.1} parent=1 // pred_check
      _
    $region91: #{cnn_forward.1} parent=1 // pred_check_branch
      %226 = sbr.rel (0) target = $region93
    $region92: #{cnn_forward.1} parent=1 // pred_region
      %227 = dma.done [#allocation12], 48
    $region93: #{cnn_forward.1} parent=1 // pred_fallthru
      _
    // Predicated region
    $region94: #{cnn_forward.1} parent=1 // pred_check
      _
    $region95: #{cnn_forward.1} parent=1 // pred_check_branch
      %229 = sbr.rel (0) target = $region97
    $region96: #{cnn_forward.1} parent=1 // pred_region
      %230 = dma.done [#allocation12], 256
    $region97: #{cnn_forward.1} parent=1 // pred_fallthru
      _
    // Predicated region
    $region98: #{cnn_forward.1} parent=1 // pred_check
      _
    $region99: #{cnn_forward.1} parent=1 // pred_check_branch
      %232 = sbr.rel (0) target = $region101
    $region100: #{cnn_forward.1} parent=1 // pred_region
      %233 = dma.done [#allocation15], 128
    $region101: #{cnn_forward.1} parent=1 // pred_fallthru
      _
    // Predicated region
    $region102: #{cnn_forward.1} parent=1 // pred_check
      _
    $region103: #{cnn_forward.1} parent=1 // pred_check_branch
      %235 = sbr.rel (0) target = $region105
    $region104: #{cnn_forward.1} parent=1 // pred_region
      %236 = dma.done [#allocation15], 15360
    $region105: #{cnn_forward.1} parent=1 // pred_fallthru
      _
    // Predicated region
    $region106: #{cnn_forward.1} parent=1 // pred_check
      _
    $region107: #{cnn_forward.1} parent=1 // pred_check_branch
      %238 = sbr.rel (0) target = $region109
    $region108: #{cnn_forward.1} parent=1 // pred_region
      %239 = dma.done [#allocation18], 16
    $region109: #{cnn_forward.1} parent=1 // pred_fallthru
      _
    // Predicated region
    $region110: #{cnn_forward.1} parent=1 // pred_check
      _
    $region111: #{cnn_forward.1} parent=1 // pred_check_branch
      %241 = sbr.rel (0) target = $region113
    $region112: #{cnn_forward.1} parent=1 // pred_region
      %242 = dma.done [#allocation18], 1024
    $region113: #{cnn_forward.1} parent=1 // pred_fallthru
      _
    // Predicated region
    $region114: #{cnn_forward.1} parent=1 // pred_check
      _
    $region115: #{cnn_forward.1} parent=1 // pred_check_branch
      %244 = sbr.rel (0) target = $region117
    $region116: #{cnn_forward.1} parent=1 // pred_region
      %245 = dma.done [#allocation21], 16
    $region117: #{cnn_forward.1} parent=1 // pred_fallthru
      _
    // Predicated region
    $region118: #{cnn_forward.1} parent=1 // pred_check
      _
    $region119: #{cnn_forward.1} parent=1 // pred_check_branch
      %247 = sbr.rel (0) target = $region121
    $region120: #{cnn_forward.1} parent=1 // pred_region
      %248 = dma.done [#allocation21], 1024
    $region121: #{cnn_forward.1} parent=1 // pred_fallthru
      _
    // Predicated region
    $region122: #{cnn_forward.1} parent=1 // pred_check
      _
    $region123: #{cnn_forward.1} parent=1 // pred_check_branch
      %250 = sbr.rel (0) target = $region125
    $region124: #{cnn_forward.1} parent=1 // pred_region
      %251 = dma.done [#allocation24], 16
    $region125: #{cnn_forward.1} parent=1 // pred_fallthru
      _
    // Predicated region
    $region126: #{cnn_forward.1} parent=1 // pred_check
      _
    $region127: #{cnn_forward.1} parent=1 // pred_check_branch
      %253 = sbr.rel (0) target = $region129
    $region128: #{cnn_forward.1} parent=1 // pred_region
      %254 = dma.done [#allocation24], 1024
    $region129: #{cnn_forward.1} parent=1 // pred_fallthru
      _
    // Predicated region
    $region130: #{cnn_forward.1} parent=1 // pred_check
      _
    $region131: #{cnn_forward.1} parent=1 // pred_check_branch
      %256 = sbr.rel (0) target = $region133
    $region132: #{cnn_forward.1} parent=1 // pred_region
      %257 = dma.done [#allocation27], 16
    $region133: #{cnn_forward.1} parent=1 // pred_fallthru
      _
    %v259 = vld [vmem:[%s0] sm:$0xf]
    %v260 = vld [vmem:[%s0 + $0x4] sm:$0xf]
    %v261 = vld [vmem:[%s0 + $0x8] sm:$0xf]
    %v262 = vld [vmem:[%s0 + $0xc] sm:$0xf]
    %v263 = vld [vmem:[%s0 + $0x10] sm:$0xf]
    %v264 = vld [vmem:[%s0 + $0x14] sm:$0xf]
    %v265 = vld [vmem:[%s0 + $0x18] sm:$0xf]
    %v273 = vunpack.c.l.b16 %v259
    %v274 = vunpack.c.l.b16 %v260
    %v275 = vunpack.c.l.b16 %v261
    %v276 = vunpack.c.l.b16 %v262
    %v277 = vunpack.c.l.b16 %v263
    %v278 = vunpack.c.l.b16 %v264
    %v279 = vunpack.c.l.b16 %v265
    %v280 = vpack.c.b16 %v274, %v273
    %v281 = vpack.c.b16 %v276, %v275
    %v282 = vpack.c.b16 %v278, %v277
    %v283 = vpack.c.b16 %v279, %v279
    %vm288 = vsmask.f32 7424
    %v290 = vshrl.u32 %v280, 16
    %v292 = vshll.u32 %v280, 16
    %v294 = vrot.slane %v292, 1
    %v295 = vor.u32 %v290, %v294
    %v297 = vshll.u32 %v281, 16
    %v299 = vrot.slane %v297, 1
    %v300 = vsel %vm288, %v295, %v299
    %v301 = vshrl.u32 %v281, 16
    %v303 = vor.u32 %v301, %v299
    %v305 = vshll.u32 %v282, 16
    %v307 = vrot.slane %v305, 1
    %v308 = vsel %vm288, %v303, %v307
    %v309 = vshrl.u32 %v282, 16
    %v311 = vor.u32 %v309, %v307
    %v313 = vshll.u32 %v283, 16
    %v315 = vrot.slane %v313, 1
    %v316 = vsel %vm288, %v311, %v315
    %v317 = vshrl.u32 %v283, 16
    %v319 = vor.u32 %v317, %v315
    %vm324 = vcmask 1046528
    %v325 = vrot.slane %v280, 1
    %v326 = vrot.slane %v281, 1
    %v327 = vsel %vm324, %v325, %v326
    %v328 = vrot.slane %v282, 1
    %v329 = vsel %vm324, %v326, %v328
    %v330 = vrot.slane %v283, 1
    %v331 = vsel %vm324, %v328, %v330
    %v336 = vld [vmem:[#allocation2] sm:$0xff]
    %v337 = vld [vmem:[#allocation2 + $0x8] sm:$0xff]
    %v338 = vld [vmem:[#allocation2 + $0x10] sm:$0xff]
    %v339 = vld [vmem:[#allocation2 + $0x18] sm:$0xff]
    %v340 = vld [vmem:[#allocation2 + $0x20] sm:$0xff]
    %v341 = vld [vmem:[#allocation2 + $0x28] sm:$0xff]
    %v342 = vld [vmem:[#allocation2 + $0x30] sm:$0xff]
    %v343 = vld [vmem:[#allocation2 + $0x38] sm:$0xff]
    %v344 = vld [vmem:[#allocation2 + $0x40] sm:$0xff]
    %v345 = vld [vmem:[#allocation2 + $0x48] sm:$0xff]
    %v346 = vld [vmem:[#allocation2 + $0x50] sm:$0xff]
    %v347 = vld [vmem:[#allocation2 + $0x58] sm:$0xff]
    %v348 = vld [vmem:[#allocation2 + $0x60] sm:$0xff]
    %v349 = vld [vmem:[#allocation2 + $0x68] sm:$0xff]
    %v350 = vld [vmem:[#allocation2 + $0x70] sm:$0xff]
    %v351 = vld [vmem:[#allocation2 + $0x78] sm:$0xff]
    %v352 = vld [vmem:[#allocation2 + $0x80] sm:$0xff]
    %v353 = vld [vmem:[#allocation2 + $0x88] sm:$0xff]
    %v354 = vld [vmem:[#allocation2 + $0x90] sm:$0xff]
    %v355 = vld [vmem:[#allocation2 + $0x98] sm:$0xff]
    %v356 = vld [vmem:[#allocation2 + $0xa0] sm:$0xff]
    %v357 = vld [vmem:[#allocation2 + $0xa8] sm:$0xff]
    %v358 = vld [vmem:[#allocation2 + $0xb0] sm:$0xff]
    %v359 = vld [vmem:[#allocation2 + $0xb8] sm:$0xff]
    %v360 = vld [vmem:[#allocation2 + $0xc0] sm:$0xff]
    %v361 = vld [vmem:[#allocation2 + $0xc8] sm:$0xff]
    %v362 = vld [vmem:[#allocation2 + $0xd0] sm:$0xff]
    %v363 = vld [vmem:[#allocation2 + $0xd8] sm:$0xff]
    %v364 = vld [vmem:[#allocation2 + $0xe0] sm:$0xff]
    %v365 = vld [vmem:[#allocation2 + $0xe8] sm:$0xff]
    %v366 = vld [vmem:[#allocation2 + $0xf0] sm:$0xff]
    %v367 = vld [vmem:[#allocation2 + $0xf8] sm:$0xff]
    %v368 = vld [vmem:[#allocation2 + $0x100] sm:$0xff]
    %v369 = vld [vmem:[#allocation2 + $0x108] sm:$0xff]
    %v370 = vld [vmem:[#allocation2 + $0x110] sm:$0xff]
    %v371 = vld [vmem:[#allocation2 + $0x118] sm:$0xff]
    %v372 = vld [vmem:[#allocation2 + $0x120] sm:$0xff]
    %v373 = vld [vmem:[#allocation2 + $0x128] sm:$0xff]
    %v374 = vld [vmem:[#allocation2 + $0x130] sm:$0xff]
    %v375 = vld [vmem:[#allocation2 + $0x138] sm:$0xff]
    %v376 = vld [vmem:[#allocation2 + $0x140] sm:$0xff]
    %v377 = vld [vmem:[#allocation2 + $0x148] sm:$0xff]
    %v378 = vld [vmem:[#allocation2 + $0x150] sm:$0xff]
    %v379 = vld [vmem:[#allocation2 + $0x158] sm:$0xff]
    %v380 = vld [vmem:[#allocation2 + $0x160] sm:$0xff]
    %v381 = vld [vmem:[#allocation2 + $0x168] sm:$0xff]
    %v382 = vld [vmem:[#allocation2 + $0x170] sm:$0xff]
    %v383 = vld [vmem:[#allocation2 + $0x178] sm:$0xff]
    %v384 = vld [vmem:[#allocation2 + $0x180] sm:$0xff]
    %v385 = vld [vmem:[#allocation2 + $0x188] sm:$0xff]
    %v386 = vld [vmem:[#allocation2 + $0x190] sm:$0xff]
    %v387 = vld [vmem:[#allocation2 + $0x198] sm:$0xff]
    %v388 = vld [vmem:[#allocation2 + $0x1a0] sm:$0xff]
    %v389 = vld [vmem:[#allocation2 + $0x1a8] sm:$0xff]
    %v390 = vld [vmem:[#allocation2 + $0x1b0] sm:$0xff]
    %v391 = vld [vmem:[#allocation2 + $0x1b8] sm:$0xff]
    %v392 = vld [vmem:[#allocation2 + $0x1c0] sm:$0xff]
    %v393 = vld [vmem:[#allocation2 + $0x1c8] sm:$0xff]
    %v394 = vld [vmem:[#allocation2 + $0x1d0] sm:$0xff]
    %v395 = vld [vmem:[#allocation2 + $0x1d8] sm:$0xff]
    %v396 = vld [vmem:[#allocation2 + $0x1e0] sm:$0xff]
    %v397 = vld [vmem:[#allocation2 + $0x1e8] sm:$0xff]
    %v398 = vld [vmem:[#allocation2 + $0x1f0] sm:$0xff]
    %v399 = vld [vmem:[#allocation2 + $0x1f8] sm:$0xff]
    %v400 = vld [vmem:[#allocation2 + $0x200] sm:$0xff]
    %v401 = vld [vmem:[#allocation2 + $0x208] sm:$0xff]
    %v402 = vld [vmem:[#allocation2 + $0x210] sm:$0xff]
    %v403 = vld [vmem:[#allocation2 + $0x218] sm:$0xff]
    %v404 = vld [vmem:[#allocation2 + $0x220] sm:$0xff]
    %v405 = vld [vmem:[#allocation2 + $0x228] sm:$0xff]
    %v406 = vld [vmem:[#allocation2 + $0x230] sm:$0xff]
    %v407 = vld [vmem:[#allocation2 + $0x238] sm:$0xff]
    %v408 = vld [vmem:[#allocation2 + $0x240] sm:$0xff]
    %v409 = vld [vmem:[#allocation2 + $0x248] sm:$0xff]
    %v410 = vld [vmem:[#allocation2 + $0x250] sm:$0xff]
    %v411 = vld [vmem:[#allocation2 + $0x258] sm:$0xff]
    %v412 = vld [vmem:[#allocation2 + $0x260] sm:$0xff]
    %v413 = vld [vmem:[#allocation2 + $0x268] sm:$0xff]
    %v414 = vld [vmem:[#allocation2 + $0x270] sm:$0xff]
    %v415 = vld [vmem:[#allocation2 + $0x278] sm:$0xff]
    %v416 = vld [vmem:[#allocation2 + $0x280] sm:$0xff]
    %v417 = vld [vmem:[#allocation2 + $0x288] sm:$0xff]
    %v418 = vld [vmem:[#allocation2 + $0x290] sm:$0xff]
    %v419 = vld [vmem:[#allocation2 + $0x298] sm:$0xff]
    %v420 = vld [vmem:[#allocation2 + $0x2a0] sm:$0xff]
    %v421 = vld [vmem:[#allocation2 + $0x2a8] sm:$0xff]
    %v422 = vld [vmem:[#allocation2 + $0x2b0] sm:$0xff]
    %v423 = vld [vmem:[#allocation2 + $0x2b8] sm:$0xff]
    %v424 = vld [vmem:[#allocation2 + $0x2c0] sm:$0xff]
    %v425 = vld [vmem:[#allocation2 + $0x2c8] sm:$0xff]
    %v426 = vld [vmem:[#allocation2 + $0x2d0] sm:$0xff]
    %v427 = vld [vmem:[#allocation2 + $0x2d8] sm:$0xff]
    %v428 = vld [vmem:[#allocation2 + $0x2e0] sm:$0xff]
    %v429 = vld [vmem:[#allocation2 + $0x2e8] sm:$0xff]
    %v430 = vld [vmem:[#allocation2 + $0x2f0] sm:$0xff]
    %v431 = vld [vmem:[#allocation2 + $0x2f8] sm:$0xff]
    %v528 = vunpack.c.l.b16 %v336
    %v529 = vunpack.c.h.b16 %v336
    %v530 = vunpack.c.l.b16 %v337
    %v531 = vunpack.c.h.b16 %v337
    %v532 = vunpack.c.l.b16 %v338
    %v533 = vunpack.c.h.b16 %v338
    %v534 = vunpack.c.l.b16 %v339
    %v535 = vunpack.c.h.b16 %v339
    %v536 = vunpack.c.l.b16 %v340
    %v537 = vunpack.c.h.b16 %v340
    %v538 = vunpack.c.l.b16 %v341
    %v539 = vunpack.c.h.b16 %v341
    %v540 = vunpack.c.l.b16 %v342
    %v541 = vunpack.c.h.b16 %v342
    %v542 = vunpack.c.l.b16 %v343
    %v543 = vunpack.c.h.b16 %v343
    %v544 = vunpack.c.l.b16 %v344
    %v545 = vunpack.c.h.b16 %v344
    %v546 = vunpack.c.l.b16 %v345
    %v547 = vunpack.c.h.b16 %v345
    %v548 = vunpack.c.l.b16 %v346
    %v549 = vunpack.c.h.b16 %v346
    %v550 = vunpack.c.l.b16 %v347
    %v551 = vunpack.c.h.b16 %v347
    %v552 = vunpack.c.l.b16 %v348
    %v553 = vunpack.c.h.b16 %v348
    %v554 = vunpack.c.l.b16 %v349
    %v555 = vunpack.c.h.b16 %v349
    %v556 = vunpack.c.l.b16 %v350
    %v557 = vunpack.c.h.b16 %v350
    %v558 = vunpack.c.l.b16 %v351
    %v559 = vunpack.c.h.b16 %v351
    %v560 = vunpack.c.l.b16 %v352
    %v561 = vunpack.c.h.b16 %v352
    %v562 = vunpack.c.l.b16 %v353
    %v563 = vunpack.c.h.b16 %v353
    %v564 = vunpack.c.l.b16 %v354
    %v565 = vunpack.c.h.b16 %v354
    %v566 = vunpack.c.l.b16 %v355
    %v567 = vunpack.c.h.b16 %v355
    %v568 = vunpack.c.l.b16 %v356
    %v569 = vunpack.c.h.b16 %v356
    %v570 = vunpack.c.l.b16 %v357
    %v571 = vunpack.c.h.b16 %v357
    %v572 = vunpack.c.l.b16 %v358
    %v573 = vunpack.c.h.b16 %v358
    %v574 = vunpack.c.l.b16 %v359
    %v575 = vunpack.c.h.b16 %v359
    %v576 = vunpack.c.l.b16 %v360
    %v577 = vunpack.c.h.b16 %v360
    %v578 = vunpack.c.l.b16 %v361
    %v579 = vunpack.c.h.b16 %v361
    %v580 = vunpack.c.l.b16 %v362
    %v581 = vunpack.c.h.b16 %v362
    %v582 = vunpack.c.l.b16 %v363
    %v583 = vunpack.c.h.b16 %v363
    %v584 = vunpack.c.l.b16 %v364
    %v585 = vunpack.c.h.b16 %v364
    %v586 = vunpack.c.l.b16 %v365
    %v587 = vunpack.c.h.b16 %v365
    %v588 = vunpack.c.l.b16 %v366
    %v589 = vunpack.c.h.b16 %v366
    %v590 = vunpack.c.l.b16 %v367
    %v591 = vunpack.c.h.b16 %v367
    %v592 = vunpack.c.l.b16 %v368
    %v593 = vunpack.c.h.b16 %v368
    %v594 = vunpack.c.l.b16 %v369
    %v595 = vunpack.c.h.b16 %v369
    %v596 = vunpack.c.l.b16 %v370
    %v597 = vunpack.c.h.b16 %v370
    %v598 = vunpack.c.l.b16 %v371
    %v599 = vunpack.c.h.b16 %v371
    %v600 = vunpack.c.l.b16 %v372
    %v601 = vunpack.c.h.b16 %v372
    %v602 = vunpack.c.l.b16 %v373
    %v603 = vunpack.c.h.b16 %v373
    %v604 = vunpack.c.l.b16 %v374
    %v605 = vunpack.c.h.b16 %v374
    %v606 = vunpack.c.l.b16 %v375
    %v607 = vunpack.c.h.b16 %v375
    %v608 = vunpack.c.l.b16 %v376
    %v609 = vunpack.c.h.b16 %v376
    %v610 = vunpack.c.l.b16 %v377
    %v611 = vunpack.c.h.b16 %v377
    %v612 = vunpack.c.l.b16 %v378
    %v613 = vunpack.c.h.b16 %v378
    %v614 = vunpack.c.l.b16 %v379
    %v615 = vunpack.c.h.b16 %v379
    %v616 = vunpack.c.l.b16 %v380
    %v617 = vunpack.c.h.b16 %v380
    %v618 = vunpack.c.l.b16 %v381
    %v619 = vunpack.c.h.b16 %v381
    %v620 = vunpack.c.l.b16 %v382
    %v621 = vunpack.c.h.b16 %v382
    %v622 = vunpack.c.l.b16 %v383
    %v623 = vunpack.c.h.b16 %v383
    %v624 = vunpack.c.l.b16 %v384
    %v625 = vunpack.c.h.b16 %v384
    %v626 = vunpack.c.l.b16 %v385
    %v627 = vunpack.c.h.b16 %v385
    %v628 = vunpack.c.l.b16 %v386
    %v629 = vunpack.c.h.b16 %v386
    %v630 = vunpack.c.l.b16 %v387
    %v631 = vunpack.c.h.b16 %v387
    %v632 = vunpack.c.l.b16 %v388
    %v633 = vunpack.c.h.b16 %v388
    %v634 = vunpack.c.l.b16 %v389
    %v635 = vunpack.c.h.b16 %v389
    %v636 = vunpack.c.l.b16 %v390
    %v637 = vunpack.c.h.b16 %v390
    %v638 = vunpack.c.l.b16 %v391
    %v639 = vunpack.c.h.b16 %v391
    %v640 = vunpack.c.l.b16 %v392
    %v641 = vunpack.c.h.b16 %v392
    %v642 = vunpack.c.l.b16 %v393
    %v643 = vunpack.c.h.b16 %v393
    %v644 = vunpack.c.l.b16 %v394
    %v645 = vunpack.c.h.b16 %v394
    %v646 = vunpack.c.l.b16 %v395
    %v647 = vunpack.c.h.b16 %v395
    %v648 = vunpack.c.l.b16 %v396
    %v649 = vunpack.c.h.b16 %v396
    %v650 = vunpack.c.l.b16 %v397
    %v651 = vunpack.c.h.b16 %v397
    %v652 = vunpack.c.l.b16 %v398
    %v653 = vunpack.c.h.b16 %v398
    %v654 = vunpack.c.l.b16 %v399
    %v655 = vunpack.c.h.b16 %v399
    %v656 = vunpack.c.l.b16 %v400
    %v657 = vunpack.c.h.b16 %v400
    %v658 = vunpack.c.l.b16 %v401
    %v659 = vunpack.c.h.b16 %v401
    %v660 = vunpack.c.l.b16 %v402
    %v661 = vunpack.c.h.b16 %v402
    %v662 = vunpack.c.l.b16 %v403
    %v663 = vunpack.c.h.b16 %v403
    %v664 = vunpack.c.l.b16 %v404
    %v665 = vunpack.c.h.b16 %v404
    %v666 = vunpack.c.l.b16 %v405
    %v667 = vunpack.c.h.b16 %v405
    %v668 = vunpack.c.l.b16 %v406
    %v669 = vunpack.c.h.b16 %v406
    %v670 = vunpack.c.l.b16 %v407
    %v671 = vunpack.c.h.b16 %v407
    %v672 = vunpack.c.l.b16 %v408
    %v673 = vunpack.c.h.b16 %v408
    %v674 = vunpack.c.l.b16 %v409
    %v675 = vunpack.c.h.b16 %v409
    %v676 = vunpack.c.l.b16 %v410
    %v677 = vunpack.c.h.b16 %v410
    %v678 = vunpack.c.l.b16 %v411
    %v679 = vunpack.c.h.b16 %v411
    %v680 = vunpack.c.l.b16 %v412
    %v681 = vunpack.c.h.b16 %v412
    %v682 = vunpack.c.l.b16 %v413
    %v683 = vunpack.c.h.b16 %v413
    %v684 = vunpack.c.l.b16 %v414
    %v685 = vunpack.c.h.b16 %v414
    %v686 = vunpack.c.l.b16 %v415
    %v687 = vunpack.c.h.b16 %v415
    %v688 = vunpack.c.l.b16 %v416
    %v689 = vunpack.c.h.b16 %v416
    %v690 = vunpack.c.l.b16 %v417
    %v691 = vunpack.c.h.b16 %v417
    %v692 = vunpack.c.l.b16 %v418
    %v693 = vunpack.c.h.b16 %v418
    %v694 = vunpack.c.l.b16 %v419
    %v695 = vunpack.c.h.b16 %v419
    %v696 = vunpack.c.l.b16 %v420
    %v697 = vunpack.c.h.b16 %v420
    %v698 = vunpack.c.l.b16 %v421
    %v699 = vunpack.c.h.b16 %v421
    %v700 = vunpack.c.l.b16 %v422
    %v701 = vunpack.c.h.b16 %v422
    %v702 = vunpack.c.l.b16 %v423
    %v703 = vunpack.c.h.b16 %v423
    %v704 = vunpack.c.l.b16 %v424
    %v705 = vunpack.c.h.b16 %v424
    %v706 = vunpack.c.l.b16 %v425
    %v707 = vunpack.c.h.b16 %v425
    %v708 = vunpack.c.l.b16 %v426
    %v709 = vunpack.c.h.b16 %v426
    %v710 = vunpack.c.l.b16 %v427
    %v711 = vunpack.c.h.b16 %v427
    %v712 = vunpack.c.l.b16 %v428
    %v713 = vunpack.c.h.b16 %v428
    %v714 = vunpack.c.l.b16 %v429
    %v715 = vunpack.c.h.b16 %v429
    %v716 = vunpack.c.l.b16 %v430
    %v717 = vunpack.c.h.b16 %v430
    %v718 = vunpack.c.l.b16 %v431
    %v719 = vunpack.c.h.b16 %v431
    %v720 = vpack.c.b16 %v532, %v528
    %v721 = vpack.c.b16 %v533, %v529
    %v722 = vpack.c.b16 %v534, %v530
    %v723 = vpack.c.b16 %v535, %v531
    %v724 = vpack.c.b16 %v540, %v536
    %v725 = vpack.c.b16 %v541, %v537
    %v726 = vpack.c.b16 %v542, %v538
    %v727 = vpack.c.b16 %v543, %v539
    %v728 = vpack.c.b16 %v548, %v544
    %v729 = vpack.c.b16 %v549, %v545
    %v730 = vpack.c.b16 %v550, %v546
    %v731 = vpack.c.b16 %v551, %v547
    %v732 = vpack.c.b16 %v556, %v552
    %v733 = vpack.c.b16 %v557, %v553
    %v734 = vpack.c.b16 %v558, %v554
    %v735 = vpack.c.b16 %v559, %v555
    %v736 = vpack.c.b16 %v564, %v560
    %v737 = vpack.c.b16 %v565, %v561
    %v738 = vpack.c.b16 %v566, %v562
    %v739 = vpack.c.b16 %v567, %v563
    %v740 = vpack.c.b16 %v572, %v568
    %v741 = vpack.c.b16 %v573, %v569
    %v742 = vpack.c.b16 %v574, %v570
    %v743 = vpack.c.b16 %v575, %v571
    %v744 = vpack.c.b16 %v580, %v576
    %v745 = vpack.c.b16 %v581, %v577
    %v746 = vpack.c.b16 %v582, %v578
    %v747 = vpack.c.b16 %v583, %v579
    %v748 = vpack.c.b16 %v588, %v584
    %v749 = vpack.c.b16 %v589, %v585
    %v750 = vpack.c.b16 %v590, %v586
    %v751 = vpack.c.b16 %v591, %v587
    %v752 = vpack.c.b16 %v596, %v592
    %v753 = vpack.c.b16 %v597, %v593
    %v754 = vpack.c.b16 %v598, %v594
    %v755 = vpack.c.b16 %v599, %v595
    %v756 = vpack.c.b16 %v604, %v600
    %v757 = vpack.c.b16 %v605, %v601
    %v758 = vpack.c.b16 %v606, %v602
    %v759 = vpack.c.b16 %v607, %v603
    %v760 = vpack.c.b16 %v612, %v608
    %v761 = vpack.c.b16 %v613, %v609
    %v762 = vpack.c.b16 %v614, %v610
    %v763 = vpack.c.b16 %v615, %v611
    %v764 = vpack.c.b16 %v620, %v616
    %v765 = vpack.c.b16 %v621, %v617
    %v766 = vpack.c.b16 %v622, %v618
    %v767 = vpack.c.b16 %v623, %v619
    %v768 = vpack.c.b16 %v628, %v624
    %v769 = vpack.c.b16 %v629, %v625
    %v770 = vpack.c.b16 %v630, %v626
    %v771 = vpack.c.b16 %v631, %v627
    %v772 = vpack.c.b16 %v636, %v632
    %v773 = vpack.c.b16 %v637, %v633
    %v774 = vpack.c.b16 %v638, %v634
    %v775 = vpack.c.b16 %v639, %v635
    %v776 = vpack.c.b16 %v644, %v640
    %v777 = vpack.c.b16 %v645, %v641
    %v778 = vpack.c.b16 %v646, %v642
    %v779 = vpack.c.b16 %v647, %v643
    %v780 = vpack.c.b16 %v652, %v648
    %v781 = vpack.c.b16 %v653, %v649
    %v782 = vpack.c.b16 %v654, %v650
    %v783 = vpack.c.b16 %v655, %v651
    %v784 = vpack.c.b16 %v660, %v656
    %v785 = vpack.c.b16 %v661, %v657
    %v786 = vpack.c.b16 %v662, %v658
    %v787 = vpack.c.b16 %v663, %v659
    %v788 = vpack.c.b16 %v668, %v664
    %v789 = vpack.c.b16 %v669, %v665
    %v790 = vpack.c.b16 %v670, %v666
    %v791 = vpack.c.b16 %v671, %v667
    %v792 = vpack.c.b16 %v676, %v672
    %v793 = vpack.c.b16 %v677, %v673
    %v794 = vpack.c.b16 %v678, %v674
    %v795 = vpack.c.b16 %v679, %v675
    %v796 = vpack.c.b16 %v684, %v680
    %v797 = vpack.c.b16 %v685, %v681
    %v798 = vpack.c.b16 %v686, %v682
    %v799 = vpack.c.b16 %v687, %v683
    %v800 = vpack.c.b16 %v692, %v688
    %v801 = vpack.c.b16 %v693, %v689
    %v802 = vpack.c.b16 %v694, %v690
    %v803 = vpack.c.b16 %v695, %v691
    %v804 = vpack.c.b16 %v700, %v696
    %v805 = vpack.c.b16 %v701, %v697
    %v806 = vpack.c.b16 %v702, %v698
    %v807 = vpack.c.b16 %v703, %v699
    %v808 = vpack.c.b16 %v708, %v704
    %v809 = vpack.c.b16 %v709, %v705
    %v810 = vpack.c.b16 %v710, %v706
    %v811 = vpack.c.b16 %v711, %v707
    %v812 = vpack.c.b16 %v716, %v712
    %v813 = vpack.c.b16 %v717, %v713
    %v814 = vpack.c.b16 %v718, %v714
    %v815 = vpack.c.b16 %v719, %v715
    %912 = vmatprep.subr.bf16.mxu0 %v721
    %913 = vmatpush1.bf16.msra.mxu0 %v720
    %914 = vmatprep.subr.bf16.mxu0 %v725
    %915 = vmatpush1.bf16.msra.mxu0 %v724
    %916 = vmatprep.subr.bf16.mxu0 %v729
    %917 = vmatpush1.bf16.msra.mxu0 %v728
    %918 = vmatprep.subr.bf16.mxu0 %v733
    %919 = vmatpush1.bf16.msra.mxu0 %v732
    %920 = vmatprep.subr.bf16.mxu0 %v737
    %921 = vmatpush1.bf16.msra.mxu0 %v736
    %922 = vmatprep.subr.bf16.mxu0 %v741
    %923 = vmatpush1.bf16.msra.mxu0 %v740
    %924 = vmatprep.subr.bf16.mxu0 %v745
    %925 = vmatpush1.bf16.msra.mxu0 %v744
    %926 = vmatprep.subr.bf16.mxu0 %v749
    %927 = vmatpush1.bf16.msra.mxu0 %v748
    %928 = vmatprep.subr.bf16.mxu0 %v753
    %929 = vmatpush1.bf16.msra.mxu0 %v752
    %930 = vmatprep.subr.bf16.mxu0 %v757
    %931 = vmatpush1.bf16.msra.mxu0 %v756
    %932 = vmatprep.subr.bf16.mxu0 %v761
    %933 = vmatpush1.bf16.msra.mxu0 %v760
    %934 = vmatprep.subr.bf16.mxu0 %v765
    %935 = vmatpush1.bf16.msra.mxu0 %v764
    %936 = vmatprep.subr.bf16.mxu0 %v769
    %937 = vmatpush1.bf16.msra.mxu0 %v768
    %938 = vmatprep.subr.bf16.mxu0 %v773
    %939 = vmatpush1.bf16.msra.mxu0 %v772
    %940 = vmatprep.subr.bf16.mxu0 %v777
    %941 = vmatpush1.bf16.msra.mxu0 %v776
    %942 = vmatprep.subr.bf16.mxu0 %v781
    %943 = vmatpush1.bf16.msra.mxu0 %v780
    %944 = vmatprep.mubr.bf16.mxu0 %v300
    %945 = vmatmul.mubr.bf16.gmra.mrb[0].mxu0 %v280
    %v946 = vpop.f32.mrb[0].mxu0
    %v947 = vadd.f32 0.0, %v946
    %v948 = vpop.f32.mrb[0].mxu0
    %v949 = vadd.f32 0.0, %v948
    %v950 = vpop.f32.mrb[0].mxu0
    %v951 = vadd.f32 0.0, %v950
    %v952 = vpop.f32.mrb[0].mxu0
    %v953 = vadd.f32 0.0, %v952
    %954 = vmatprep.mubr.bf16.mxu0 %v308
    %955 = vmatmul.mubr.bf16.gmra.mrb[0].mxu0 %v281
    %v956 = vpop.f32.mrb[0].mxu0
    %v957 = vadd.f32 0.0, %v956
    %v958 = vpop.f32.mrb[0].mxu0
    %v959 = vadd.f32 0.0, %v958
    %v960 = vpop.f32.mrb[0].mxu0
    %v961 = vadd.f32 0.0, %v960
    %v962 = vpop.f32.mrb[0].mxu0
    %v963 = vadd.f32 0.0, %v962
    %964 = vmatprep.mubr.bf16.mxu0 %v316
    %965 = vmatmul.mubr.bf16.gmra.mrb[0].mxu0 %v282
    %v966 = vpop.f32.mrb[0].mxu0
    %v967 = vadd.f32 0.0, %v966
    %v968 = vpop.f32.mrb[0].mxu0
    %v969 = vadd.f32 0.0, %v968
    %v970 = vpop.f32.mrb[0].mxu0
    %v971 = vadd.f32 0.0, %v970
    %v972 = vpop.f32.mrb[0].mxu0
    %v973 = vadd.f32 0.0, %v972
    %974 = vmatprep.mubr.bf16.mxu0 %v319
    %975 = vmatmul.mubr.bf16.gmra.mrb[0].mxu0 %v283
    %v976 = vpop.f32.mrb[0].mxu0
    %v977 = vadd.f32 0.0, %v976
    %v978 = vpop.f32.mrb[0].mxu0
    %v979 = vadd.f32 0.0, %v978
    %v980 = vpop.f32.mrb[0].mxu0
    %v981 = vpop.f32.mrb[0].mxu0
    %982 = vdwg.mxu0
    %983 = vmatprep.subr.bf16.mxu0 %v785
    %984 = vmatpush1.bf16.msra.mxu0 %v784
    %985 = vmatprep.subr.bf16.mxu0 %v789
    %986 = vmatpush1.bf16.msra.mxu0 %v788
    %987 = vmatprep.subr.bf16.mxu0 %v793
    %988 = vmatpush1.bf16.msra.mxu0 %v792
    %989 = vmatprep.subr.bf16.mxu0 %v797
    %990 = vmatpush1.bf16.msra.mxu0 %v796
    %991 = vmatprep.subr.bf16.mxu0 %v801
    %992 = vmatpush1.bf16.msra.mxu0 %v800
    %993 = vmatprep.subr.bf16.mxu0 %v805
    %994 = vmatpush1.bf16.msra.mxu0 %v804
    %995 = vmatprep.subr.bf16.mxu0 %v809
    %996 = vmatpush1.bf16.msra.mxu0 %v808
    %997 = vmatprep.subr.bf16.mxu0 %v813
    %998 = vmatpush1.bf16.msra.mxu0 %v812
    %999 = vmatprep.subr.bf16.mxu0 0
    %1000 = vmatpush1.bf16.msra.mxu0 0
    %1001 = vmatprep.subr.bf16.mxu0 0
    %1002 = vmatpush1.bf16.msra.mxu0 0
    %1003 = vmatprep.subr.bf16.mxu0 0
    %1004 = vmatpush1.bf16.msra.mxu0 0
    %1005 = vmatprep.subr.bf16.mxu0 0
    %1006 = vmatpush1.bf16.msra.mxu0 0
    %1007 = vmatprep.subr.bf16.mxu0 0
    %1008 = vmatpush1.bf16.msra.mxu0 0
    %1009 = vmatprep.subr.bf16.mxu0 0
    %1010 = vmatpush1.bf16.msra.mxu0 0
    %1011 = vmatprep.subr.bf16.mxu0 0
    %1012 = vmatpush1.bf16.msra.mxu0 0
    %1013 = vmatprep.subr.bf16.mxu0 0
    %1014 = vmatpush1.bf16.msra.mxu0 0
    %1015 = vmatprep.mubr.bf16.mxu0 0
    %1016 = vmatmul.mubr.bf16.gmra.mrb[0].mxu0 %v327
    %v1017 = vpop.f32.mrb[0].mxu0
    %v1018 = vadd.f32 %v947, %v1017
    %v1019 = vpop.f32.mrb[0].mxu0
    %v1020 = vadd.f32 %v949, %v1019
    %v1021 = vpop.f32.mrb[0].mxu0
    %v1022 = vadd.f32 %v951, %v1021
    %v1023 = vpop.f32.mrb[0].mxu0
    %v1024 = vadd.f32 %v953, %v1023
    %1025 = vmatprep.mubr.bf16.mxu0 0
    %1026 = vmatmul.mubr.bf16.gmra.mrb[0].mxu0 %v329
    %v1027 = vpop.f32.mrb[0].mxu0
    %v1028 = vadd.f32 %v957, %v1027
    %v1029 = vpop.f32.mrb[0].mxu0
    %v1030 = vadd.f32 %v959, %v1029
    %v1031 = vpop.f32.mrb[0].mxu0
    %v1032 = vadd.f32 %v961, %v1031
    %v1033 = vpop.f32.mrb[0].mxu0
    %v1034 = vadd.f32 %v963, %v1033
    %1035 = vmatprep.mubr.bf16.mxu0 0
    %1036 = vmatmul.mubr.bf16.gmra.mrb[0].mxu0 %v331
    %v1037 = vpop.f32.mrb[0].mxu0
    %v1038 = vadd.f32 %v967, %v1037
    %v1039 = vpop.f32.mrb[0].mxu0
    %v1040 = vadd.f32 %v969, %v1039
    %v1041 = vpop.f32.mrb[0].mxu0
    %v1042 = vadd.f32 %v971, %v1041
    %v1043 = vpop.f32.mrb[0].mxu0
    %v1044 = vadd.f32 %v973, %v1043
    %1045 = vmatprep.mubr.bf16.mxu0 0
    %1046 = vmatmul.mubr.bf16.gmra.mrb[0].mxu0 %v330
    %v1047 = vpop.f32.mrb[0].mxu0
    %v1048 = vadd.f32 %v977, %v1047
    %v1049 = vpop.f32.mrb[0].mxu0
    %v1050 = vadd.f32 %v979, %v1049
    %v1051 = vpop.f32.mrb[0].mxu0
    %v1052 = vpop.f32.mrb[0].mxu0
    %1053 = vdwg.mxu0
    %1054 = vmatprep.subr.bf16.mxu0 %v723
    %1055 = vmatpush1.bf16.msra.mxu0 %v722
    %1056 = vmatprep.subr.bf16.mxu0 %v727
    %1057 = vmatpush1.bf16.msra.mxu0 %v726
    %1058 = vmatprep.subr.bf16.mxu0 %v731
    %1059 = vmatpush1.bf16.msra.mxu0 %v730
    %1060 = vmatprep.subr.bf16.mxu0 %v735
    %1061 = vmatpush1.bf16.msra.mxu0 %v734
    %1062 = vmatprep.subr.bf16.mxu0 %v739
    %1063 = vmatpush1.bf16.msra.mxu0 %v738
    %1064 = vmatprep.subr.bf16.mxu0 %v743
    %1065 = vmatpush1.bf16.msra.mxu0 %v742
    %1066 = vmatprep.subr.bf16.mxu0 %v747
    %1067 = vmatpush1.bf16.msra.mxu0 %v746
    %1068 = vmatprep.subr.bf16.mxu0 %v751
    %1069 = vmatpush1.bf16.msra.mxu0 %v750
    %1070 = vmatprep.subr.bf16.mxu0 %v755
    %1071 = vmatpush1.bf16.msra.mxu0 %v754
    %1072 = vmatprep.subr.bf16.mxu0 %v759
    %1073 = vmatpush1.bf16.msra.mxu0 %v758
    %1074 = vmatprep.subr.bf16.mxu0 %v763
    %1075 = vmatpush1.bf16.msra.mxu0 %v762
    %1076 = vmatprep.subr.bf16.mxu0 %v767
    %1077 = vmatpush1.bf16.msra.mxu0 %v766
    %1078 = vmatprep.subr.bf16.mxu0 %v771
    %1079 = vmatpush1.bf16.msra.mxu0 %v770
    %1080 = vmatprep.subr.bf16.mxu0 %v775
    %1081 = vmatpush1.bf16.msra.mxu0 %v774
    %1082 = vmatprep.subr.bf16.mxu0 %v779
    %1083 = vmatpush1.bf16.msra.mxu0 %v778
    %1084 = vmatprep.subr.bf16.mxu0 %v783
    %1085 = vmatpush1.bf16.msra.mxu0 %v782
    %1086 = vmatprep.mubr.bf16.mxu0 %v300
    %1087 = vmatmul.mubr.bf16.gmra.mrb[0].mxu0 %v280
    %v1088 = vpop.f32.mrb[0].mxu0
    %v1089 = vadd.f32 0.0, %v1088
    %v1090 = vpop.f32.mrb[0].mxu0
    %v1091 = vadd.f32 0.0, %v1090
    %v1092 = vpop.f32.mrb[0].mxu0
    %v1093 = vadd.f32 0.0, %v1092
    %v1094 = vpop.f32.mrb[0].mxu0
    %v1095 = vadd.f32 0.0, %v1094
    %1096 = vmatprep.mubr.bf16.mxu0 %v308
    %1097 = vmatmul.mubr.bf16.gmra.mrb[0].mxu0 %v281
    %v1098 = vpop.f32.mrb[0].mxu0
    %v1099 = vadd.f32 0.0, %v1098
    %v1100 = vpop.f32.mrb[0].mxu0
    %v1101 = vadd.f32 0.0, %v1100
    %v1102 = vpop.f32.mrb[0].mxu0
    %v1103 = vadd.f32 0.0, %v1102
    %v1104 = vpop.f32.mrb[0].mxu0
    %v1105 = vadd.f32 0.0, %v1104
    %1106 = vmatprep.mubr.bf16.mxu0 %v316
    %1107 = vmatmul.mubr.bf16.gmra.mrb[0].mxu0 %v282
    %v1108 = vpop.f32.mrb[0].mxu0
    %v1109 = vadd.f32 0.0, %v1108
    %v1110 = vpop.f32.mrb[0].mxu0
    %v1111 = vadd.f32 0.0, %v1110
    %v1112 = vpop.f32.mrb[0].mxu0
    %v1113 = vadd.f32 0.0, %v1112
    %v1114 = vpop.f32.mrb[0].mxu0
    %v1115 = vadd.f32 0.0, %v1114
    %1116 = vmatprep.mubr.bf16.mxu0 %v319
    %1117 = vmatmul.mubr.bf16.gmra.mrb[0].mxu0 %v283
    %v1118 = vpop.f32.mrb[0].mxu0
    %v1119 = vadd.f32 0.0, %v1118
    %v1120 = vpop.f32.mrb[0].mxu0
    %v1121 = vadd.f32 0.0, %v1120
    %v1122 = vpop.f32.mrb[0].mxu0
    %v1123 = vpop.f32.mrb[0].mxu0
    %1124 = vdwg.mxu0
    %1125 = vmatprep.subr.bf16.mxu0 %v787
    %1126 = vmatpush1.bf16.msra.mxu0 %v786
    %1127 = vmatprep.subr.bf16.mxu0 %v791
    %1128 = vmatpush1.bf16.msra.mxu0 %v790
    %1129 = vmatprep.subr.bf16.mxu0 %v795
    %1130 = vmatpush1.bf16.msra.mxu0 %v794
    %1131 = vmatprep.subr.bf16.mxu0 %v799
    %1132 = vmatpush1.bf16.msra.mxu0 %v798
    %1133 = vmatprep.subr.bf16.mxu0 %v803
    %1134 = vmatpush1.bf16.msra.mxu0 %v802
    %1135 = vmatprep.subr.bf16.mxu0 %v807
    %1136 = vmatpush1.bf16.msra.mxu0 %v806
    %1137 = vmatprep.subr.bf16.mxu0 %v811
    %1138 = vmatpush1.bf16.msra.mxu0 %v810
    %1139 = vmatprep.subr.bf16.mxu0 %v815
    %1140 = vmatpush1.bf16.msra.mxu0 %v814
    %1141 = vmatprep.subr.bf16.mxu0 0
    %1142 = vmatpush1.bf16.msra.mxu0 0
    %1143 = vmatprep.subr.bf16.mxu0 0
    %1144 = vmatpush1.bf16.msra.mxu0 0
    %1145 = vmatprep.subr.bf16.mxu0 0
    %1146 = vmatpush1.bf16.msra.mxu0 0
    %1147 = vmatprep.subr.bf16.mxu0 0
    %1148 = vmatpush1.bf16.msra.mxu0 0
    %1149 = vmatprep.subr.bf16.mxu0 0
    %1150 = vmatpush1.bf16.msra.mxu0 0
    %1151 = vmatprep.subr.bf16.mxu0 0
    %1152 = vmatpush1.bf16.msra.mxu0 0
    %1153 = vmatprep.subr.bf16.mxu0 0
    %1154 = vmatpush1.bf16.msra.mxu0 0
    %1155 = vmatprep.subr.bf16.mxu0 0
    %1156 = vmatpush1.bf16.msra.mxu0 0
    %1157 = vmatprep.mubr.bf16.mxu0 0
    %1158 = vmatmul.mubr.bf16.gmra.mrb[0].mxu0 %v327
    %v1159 = vpop.f32.mrb[0].mxu0
    %v1160 = vadd.f32 %v1089, %v1159
    %v1161 = vpop.f32.mrb[0].mxu0
    %v1162 = vadd.f32 %v1091, %v1161
    %v1163 = vpop.f32.mrb[0].mxu0
    %v1164 = vadd.f32 %v1093, %v1163
    %v1165 = vpop.f32.mrb[0].mxu0
    %v1166 = vadd.f32 %v1095, %v1165
    %1167 = vmatprep.mubr.bf16.mxu0 0
    %1168 = vmatmul.mubr.bf16.gmra.mrb[0].mxu0 %v329
    %v1169 = vpop.f32.mrb[0].mxu0
    %v1170 = vadd.f32 %v1099, %v1169
    %v1171 = vpop.f32.mrb[0].mxu0
    %v1172 = vadd.f32 %v1101, %v1171
    %v1173 = vpop.f32.mrb[0].mxu0
    %v1174 = vadd.f32 %v1103, %v1173
    %v1175 = vpop.f32.mrb[0].mxu0
    %v1176 = vadd.f32 %v1105, %v1175
    %1177 = vmatprep.mubr.bf16.mxu0 0
    %1178 = vmatmul.mubr.bf16.gmra.mrb[0].mxu0 %v331
    %v1179 = vpop.f32.mrb[0].mxu0
    %v1180 = vadd.f32 %v1109, %v1179
    %v1181 = vpop.f32.mrb[0].mxu0
    %v1182 = vadd.f32 %v1111, %v1181
    %v1183 = vpop.f32.mrb[0].mxu0
    %v1184 = vadd.f32 %v1113, %v1183
    %v1185 = vpop.f32.mrb[0].mxu0
    %v1186 = vadd.f32 %v1115, %v1185
    %1187 = vmatprep.mubr.bf16.mxu0 0
    %1188 = vmatmul.mubr.bf16.gmra.mrb[0].mxu0 %v330
    %v1189 = vpop.f32.mrb[0].mxu0
    %v1190 = vadd.f32 %v1119, %v1189
    %v1191 = vpop.f32.mrb[0].mxu0
    %v1192 = vadd.f32 %v1121, %v1191
    %v1193 = vpop.f32.mrb[0].mxu0
    %v1194 = vpop.f32.mrb[0].mxu0
    %1195 = vdwg.mxu0
    %v1196 = vld [vmem:[#allocation5] sm:$0xf]
    %v1198 = vlaneseq
    %v1199 = vshrl.u32 %v1198, 7
    %v1200 = vsub.s32 0, %v1199
    %v1201 = vrot.slane %v1196, %v1200
    %v1202 = vlaneseq
    %v1203 = vshrl.u32 %v1202, 7
    %v1204 = vsub.s32 1, %v1203
    %v1205 = vrot.slane %v1196, %v1204
    %v1206 = vlaneseq
    %v1207 = vshrl.u32 %v1206, 7
    %v1208 = vsub.s32 2, %v1207
    %v1209 = vrot.slane %v1196, %v1208
    %v1210 = vlaneseq
    %v1211 = vshrl.u32 %v1210, 7
    %v1212 = vsub.s32 3, %v1211
    %v1213 = vrot.slane %v1196, %v1212
    %v1218 = vmul.f32 %v1018, %v1201
    %v1219 = vmul.f32 %v1020, %v1205
    %v1220 = vmul.f32 %v1160, %v1209
    %v1221 = vmul.f32 %v1162, %v1213
    %v1222 = vmul.f32 %v1022, %v1201
    %v1223 = vmul.f32 %v1024, %v1205
    %v1224 = vmul.f32 %v1164, %v1209
    %v1225 = vmul.f32 %v1166, %v1213
    %v1226 = vmul.f32 %v1028, %v1201
    %v1227 = vmul.f32 %v1030, %v1205
    %v1228 = vmul.f32 %v1170, %v1209
    %v1229 = vmul.f32 %v1172, %v1213
    %v1230 = vmul.f32 %v1032, %v1201
    %v1231 = vmul.f32 %v1034, %v1205
    %v1232 = vmul.f32 %v1174, %v1209
    %v1233 = vmul.f32 %v1176, %v1213
    %v1234 = vmul.f32 %v1038, %v1201
    %v1235 = vmul.f32 %v1040, %v1205
    %v1236 = vmul.f32 %v1180, %v1209
    %v1237 = vmul.f32 %v1182, %v1213
    %v1238 = vmul.f32 %v1042, %v1201
    %v1239 = vmul.f32 %v1044, %v1205
    %v1240 = vmul.f32 %v1184, %v1209
    %v1241 = vmul.f32 %v1186, %v1213
    %v1242 = vmul.f32 %v1048, %v1201
    %v1243 = vmul.f32 %v1050, %v1205
    %v1244 = vmul.f32 %v1190, %v1209
    %v1245 = vmul.f32 %v1192, %v1213
    %v1246 = vld [vmem:[#allocation7] sm:$0xf]
    %v1248 = vlaneseq
    %v1249 = vshrl.u32 %v1248, 7
    %v1250 = vsub.s32 0, %v1249
    %v1251 = vrot.slane %v1246, %v1250
    %v1252 = vlaneseq
    %v1253 = vshrl.u32 %v1252, 7
    %v1254 = vsub.s32 1, %v1253
    %v1255 = vrot.slane %v1246, %v1254
    %v1256 = vlaneseq
    %v1257 = vshrl.u32 %v1256, 7
    %v1258 = vsub.s32 2, %v1257
    %v1259 = vrot.slane %v1246, %v1258
    %v1260 = vlaneseq
    %v1261 = vshrl.u32 %v1260, 7
    %v1262 = vsub.s32 3, %v1261
    %v1263 = vrot.slane %v1246, %v1262
    %v1268 = vadd.f32 %v1218, %v1251
    %v1269 = vadd.f32 %v1219, %v1255
    %v1270 = vadd.f32 %v1220, %v1259
    %v1271 = vadd.f32 %v1221, %v1263
    %v1272 = vadd.f32 %v1222, %v1251
    %v1273 = vadd.f32 %v1223, %v1255
    %v1274 = vadd.f32 %v1224, %v1259
    %v1275 = vadd.f32 %v1225, %v1263
    %v1276 = vadd.f32 %v1226, %v1251
    %v1277 = vadd.f32 %v1227, %v1255
    %v1278 = vadd.f32 %v1228, %v1259
    %v1279 = vadd.f32 %v1229, %v1263
    %v1280 = vadd.f32 %v1230, %v1251
    %v1281 = vadd.f32 %v1231, %v1255
    %v1282 = vadd.f32 %v1232, %v1259
    %v1283 = vadd.f32 %v1233, %v1263
    %v1284 = vadd.f32 %v1234, %v1251
    %v1285 = vadd.f32 %v1235, %v1255
    %v1286 = vadd.f32 %v1236, %v1259
    %v1287 = vadd.f32 %v1237, %v1263
    %v1288 = vadd.f32 %v1238, %v1251
    %v1289 = vadd.f32 %v1239, %v1255
    %v1290 = vadd.f32 %v1240, %v1259
    %v1291 = vadd.f32 %v1241, %v1263
    %v1292 = vadd.f32 %v1242, %v1251
    %v1293 = vadd.f32 %v1243, %v1255
    %v1294 = vadd.f32 %v1244, %v1259
    %v1295 = vadd.f32 %v1245, %v1263
    %v1296 = vmax.f32 %v1268, 0.0
    %v1297 = vmax.f32 %v1269, 0.0
    %v1298 = vmax.f32 %v1270, 0.0
    %v1299 = vmax.f32 %v1271, 0.0
    %v1300 = vmax.f32 %v1272, 0.0
    %v1301 = vmax.f32 %v1273, 0.0
    %v1302 = vmax.f32 %v1274, 0.0
    %v1303 = vmax.f32 %v1275, 0.0
    %v1304 = vmax.f32 %v1276, 0.0
    %v1305 = vmax.f32 %v1277, 0.0
    %v1306 = vmax.f32 %v1278, 0.0
    %v1307 = vmax.f32 %v1279, 0.0
    %v1308 = vmax.f32 %v1280, 0.0
    %v1309 = vmax.f32 %v1281, 0.0
    %v1310 = vmax.f32 %v1282, 0.0
    %v1311 = vmax.f32 %v1283, 0.0
    %v1312 = vmax.f32 %v1284, 0.0
    %v1313 = vmax.f32 %v1285, 0.0
    %v1314 = vmax.f32 %v1286, 0.0
    %v1315 = vmax.f32 %v1287, 0.0
    %v1316 = vmax.f32 %v1288, 0.0
    %v1317 = vmax.f32 %v1289, 0.0
    %v1318 = vmax.f32 %v1290, 0.0
    %v1319 = vmax.f32 %v1291, 0.0
    %v1320 = vmax.f32 %v1292, 0.0
    %v1321 = vmax.f32 %v1293, 0.0
    %v1322 = vmax.f32 %v1294, 0.0
    %v1323 = vmax.f32 %v1295, 0.0
    %v1324 = vpack.c.bf16 %v1300, %v1296
    %v1325 = vpack.c.bf16 %v1301, %v1297
    %v1326 = vpack.c.bf16 %v1302, %v1298
    %v1327 = vpack.c.bf16 %v1303, %v1299
    %v1328 = vpack.c.bf16 %v1308, %v1304
    %v1329 = vpack.c.bf16 %v1309, %v1305
    %v1330 = vpack.c.bf16 %v1310, %v1306
    %v1331 = vpack.c.bf16 %v1311, %v1307
    %v1332 = vpack.c.bf16 %v1316, %v1312
    %v1333 = vpack.c.bf16 %v1317, %v1313
    %v1334 = vpack.c.bf16 %v1318, %v1314
    %v1335 = vpack.c.bf16 %v1319, %v1315
    %v1336 = vpack.c.bf16 %v1320, %v1320
    %v1337 = vpack.c.bf16 %v1321, %v1321
    %v1338 = vpack.c.bf16 %v1322, %v1322
    %v1339 = vpack.c.bf16 %v1323, %v1323
    %1356 = vrot.lane.b32.xlu0 %v1324, 112
    %v1357 = vpop.permute.xlu0 %1356
    %1358 = vrot.lane.b32.xlu0 %v1325, 112
    %v1359 = vpop.permute.xlu0 %1358
    %1360 = vrot.lane.b32.xlu0 %v1326, 112
    %v1361 = vpop.permute.xlu0 %1360
    %1362 = vrot.lane.b32.xlu0 %v1327, 112
    %v1363 = vpop.permute.xlu0 %1362
    %1364 = vrot.lane.b32.xlu0 %v1328, 112
    %v1365 = vpop.permute.xlu0 %1364
    %1366 = vrot.lane.b32.xlu0 %v1329, 112
    %v1367 = vpop.permute.xlu0 %1366
    %1368 = vrot.lane.b32.xlu0 %v1330, 112
    %v1369 = vpop.permute.xlu0 %1368
    %1370 = vrot.lane.b32.xlu0 %v1331, 112
    %v1371 = vpop.permute.xlu0 %1370
    %1372 = vrot.lane.b32.xlu0 %v1332, 112
    %v1373 = vpop.permute.xlu0 %1372
    %1374 = vrot.lane.b32.xlu0 %v1333, 112
    %v1375 = vpop.permute.xlu0 %1374
    %1376 = vrot.lane.b32.xlu0 %v1334, 112
    %v1377 = vpop.permute.xlu0 %1376
    %1378 = vrot.lane.b32.xlu0 %v1335, 112
    %v1379 = vpop.permute.xlu0 %1378
    %1380 = vrot.lane.b32.xlu0 %v1336, 112
    %v1381 = vpop.permute.xlu0 %1380
    %1382 = vrot.lane.b32.xlu0 %v1337, 112
    %v1383 = vpop.permute.xlu0 %1382
    %1384 = vrot.lane.b32.xlu0 %v1338, 112
    %v1385 = vpop.permute.xlu0 %1384
    %1386 = vrot.lane.b32.xlu0 %v1339, 112
    %v1387 = vpop.permute.xlu0 %1386
    %vm1388 = vcmask 916480
    %v1389 = vsel %vm1388, %v1357, %v1359
    %v1390 = vsel %vm1388, %v1359, %v1361
    %v1391 = vsel %vm1388, %v1361, %v1363
    %v1392 = vsel %vm1388, %v1365, %v1367
    %v1393 = vsel %vm1388, %v1367, %v1369
    %v1394 = vsel %vm1388, %v1369, %v1371
    %v1395 = vsel %vm1388, %v1373, %v1375
    %v1396 = vsel %vm1388, %v1375, %v1377
    %v1397 = vsel %vm1388, %v1377, %v1379
    %v1398 = vsel %vm1388, %v1381, %v1383
    %v1399 = vsel %vm1388, %v1383, %v1385
    %v1400 = vsel %vm1388, %v1385, %v1387
    %vm1413 = vcmask 916480
    %v1416 = vsel %vm1413, %v1363, 0
    %v1419 = vsel %vm1413, %v1371, 0
    %v1422 = vsel %vm1413, %v1379, 0
    %v1425 = vsel %vm1413, %v1387, 0
    %v1427 = vmax.bf16 %v1324, %v1389
    %v1428 = vmax.bf16 %v1325, %v1390
    %v1429 = vmax.bf16 %v1326, %v1391
    %v1430 = vmax.bf16 %v1327, %v1416
    %v1431 = vmax.bf16 %v1328, %v1392
    %v1432 = vmax.bf16 %v1329, %v1393
    %v1433 = vmax.bf16 %v1330, %v1394
    %v1434 = vmax.bf16 %v1331, %v1419
    %v1435 = vmax.bf16 %v1332, %v1395
    %v1436 = vmax.bf16 %v1333, %v1396
    %v1437 = vmax.bf16 %v1334, %v1397
    %v1438 = vmax.bf16 %v1335, %v1422
    %v1439 = vmax.bf16 %v1336, %v1398
    %v1440 = vmax.bf16 %v1337, %v1399
    %v1441 = vmax.bf16 %v1338, %v1400
    %v1442 = vmax.bf16 %v1339, %v1425
    %v1444 = vshrl.u32 %v1427, 16
    %v1446 = vshll.u32 %v1427, 16
    %v1448 = vrot.slane %v1446, 1
    %v1449 = vor.u32 %v1444, %v1448
    %v1451 = vshll.u32 %v1431, 16
    %v1453 = vrot.slane %v1451, 1
    %v1454 = vsel %vm288, %v1449, %v1453
    %v1456 = vshrl.u32 %v1428, 16
    %v1458 = vshll.u32 %v1428, 16
    %v1460 = vrot.slane %v1458, 1
    %v1461 = vor.u32 %v1456, %v1460
    %v1463 = vshll.u32 %v1432, 16
    %v1465 = vrot.slane %v1463, 1
    %v1466 = vsel %vm288, %v1461, %v1465
    %v1468 = vshrl.u32 %v1429, 16
    %v1470 = vshll.u32 %v1429, 16
    %v1472 = vrot.slane %v1470, 1
    %v1473 = vor.u32 %v1468, %v1472
    %v1475 = vshll.u32 %v1433, 16
    %v1477 = vrot.slane %v1475, 1
    %v1478 = vsel %vm288, %v1473, %v1477
    %v1480 = vshrl.u32 %v1430, 16
    %v1482 = vshll.u32 %v1430, 16
    %v1484 = vrot.slane %v1482, 1
    %v1485 = vor.u32 %v1480, %v1484
    %v1487 = vshll.u32 %v1434, 16
    %v1489 = vrot.slane %v1487, 1
    %v1490 = vsel %vm288, %v1485, %v1489
    %v1491 = vshrl.u32 %v1431, 16
    %v1493 = vor.u32 %v1491, %v1453
    %v1495 = vshll.u32 %v1435, 16
    %v1497 = vrot.slane %v1495, 1
    %v1498 = vsel %vm288, %v1493, %v1497
    %v1499 = vshrl.u32 %v1432, 16
    %v1501 = vor.u32 %v1499, %v1465
    %v1503 = vshll.u32 %v1436, 16
    %v1505 = vrot.slane %v1503, 1
    %v1506 = vsel %vm288, %v1501, %v1505
    %v1507 = vshrl.u32 %v1433, 16
    %v1509 = vor.u32 %v1507, %v1477
    %v1511 = vshll.u32 %v1437, 16
    %v1513 = vrot.slane %v1511, 1
    %v1514 = vsel %vm288, %v1509, %v1513
    %v1515 = vshrl.u32 %v1434, 16
    %v1517 = vor.u32 %v1515, %v1489
    %v1519 = vshll.u32 %v1438, 16
    %v1521 = vrot.slane %v1519, 1
    %v1522 = vsel %vm288, %v1517, %v1521
    %v1523 = vshrl.u32 %v1435, 16
    %v1525 = vor.u32 %v1523, %v1497
    %v1527 = vshll.u32 %v1439, 16
    %v1529 = vrot.slane %v1527, 1
    %v1530 = vsel %vm288, %v1525, %v1529
    %v1531 = vshrl.u32 %v1436, 16
    %v1533 = vor.u32 %v1531, %v1505
    %v1535 = vshll.u32 %v1440, 16
    %v1537 = vrot.slane %v1535, 1
    %v1538 = vsel %vm288, %v1533, %v1537
    %v1539 = vshrl.u32 %v1437, 16
    %v1541 = vor.u32 %v1539, %v1513
    %v1543 = vshll.u32 %v1441, 16
    %v1545 = vrot.slane %v1543, 1
    %v1546 = vsel %vm288, %v1541, %v1545
    %v1547 = vshrl.u32 %v1438, 16
    %v1549 = vor.u32 %v1547, %v1521
    %v1551 = vshll.u32 %v1442, 16
    %v1553 = vrot.slane %v1551, 1
    %v1554 = vsel %vm288, %v1549, %v1553
    %v1555 = vshrl.u32 %v1439, 16
    %v1557 = vor.u32 %v1555, %v1529
    %v1558 = vshrl.u32 %v1440, 16
    %v1560 = vor.u32 %v1558, %v1537
    %v1561 = vshrl.u32 %v1441, 16
    %v1563 = vor.u32 %v1561, %v1545
    %v1564 = vshrl.u32 %v1442, 16
    %v1566 = vor.u32 %v1564, %v1553
    %v1583 = vmax.bf16 %v1427, %v1454
    %v1584 = vmax.bf16 %v1428, %v1466
    %v1585 = vmax.bf16 %v1429, %v1478
    %v1586 = vmax.bf16 %v1430, %v1490
    %v1587 = vmax.bf16 %v1431, %v1498
    %v1588 = vmax.bf16 %v1432, %v1506
    %v1589 = vmax.bf16 %v1433, %v1514
    %v1590 = vmax.bf16 %v1434, %v1522
    %v1591 = vmax.bf16 %v1435, %v1530
    %v1592 = vmax.bf16 %v1436, %v1538
    %v1593 = vmax.bf16 %v1437, %v1546
    %v1594 = vmax.bf16 %v1438, %v1554
    %v1595 = vmax.bf16 %v1439, %v1557
    %v1596 = vmax.bf16 %v1440, %v1560
    %v1597 = vmax.bf16 %v1441, %v1563
    %v1598 = vmax.bf16 %v1442, %v1566
    %v1599 = vld [vmem:[#allocation13] sm:$0xf]
    %v1600 = vld [vmem:[#allocation13 + $0x4] sm:$0xf]
    %v1601 = vld [vmem:[#allocation13 + $0x8] sm:$0xf]
    %v1602 = vld [vmem:[#allocation13 + $0xc] sm:$0x1]
    %v1607 = vunpack.c.l.b16 %v1599
    %v1608 = vunpack.c.l.b16 %v1600
    %v1609 = vunpack.c.l.b16 %v1601
    %v1610 = vunpack.c.l.b16 %v1602
    %v1611 = vpack.c.b16 %v1608, %v1607
    %v1612 = vpack.c.b16 %v1610, %v1609
    %vm1613 = vcmask 433152
    %v1615 = vsel %vm1613, %v1611, 0
    %v1618 = vsel %vm1613, %v1612, 0
    %vm1620 = vcmask 1041408
    %vm1621 = vcmask 1042432
    %v1622 = vsel %vm1620, 4294967295, 65535
    %v1623 = vsel %vm1621, %v1622, 0
    %v1625 = vand.u32 %v1595, %v1623
    %v1628 = vand.u32 %v1596, %v1623
    %v1631 = vand.u32 %v1597, %v1623
    %v1634 = vand.u32 %v1598, %v1623
    %1636 = vmatprep.subr.bf16.mxu0 %v1584
    %1637 = vmatpush1.bf16.msra.mxu0 %v1583
    %1638 = vmatprep.subr.bf16.mxu0 %v1588
    %1639 = vmatpush1.bf16.msra.mxu0 %v1587
    %1640 = vmatprep.subr.bf16.mxu0 %v1592
    %1641 = vmatpush1.bf16.msra.mxu0 %v1591
    %1642 = vmatprep.subr.bf16.mxu0 %v1628
    %1643 = vmatpush1.bf16.msra.mxu0 %v1625
    %1644 = vmatprep.subr.bf16.mxu0 0
    %1645 = vmatpush1.bf16.msra.mxu0 0
    %1646 = vmatprep.subr.bf16.mxu0 0
    %1647 = vmatpush1.bf16.msra.mxu0 0
    %1648 = vmatprep.subr.bf16.mxu0 0
    %1649 = vmatpush1.bf16.msra.mxu0 0
    %1650 = vmatprep.subr.bf16.mxu0 0
    %1651 = vmatpush1.bf16.msra.mxu0 0
    %1652 = vmatprep.subr.bf16.mxu0 0
    %1653 = vmatpush1.bf16.msra.mxu0 0
    %1654 = vmatprep.subr.bf16.mxu0 0
    %1655 = vmatpush1.bf16.msra.mxu0 0
    %1656 = vmatprep.subr.bf16.mxu0 0
    %1657 = vmatpush1.bf16.msra.mxu0 0
    %1658 = vmatprep.subr.bf16.mxu0 0
    %1659 = vmatpush1.bf16.msra.mxu0 0
    %1660 = vmatprep.subr.bf16.mxu0 0
    %1661 = vmatpush1.bf16.msra.mxu0 0
    %1662 = vmatprep.subr.bf16.mxu0 0
    %1663 = vmatpush1.bf16.msra.mxu0 0
    %1664 = vmatprep.subr.bf16.mxu0 0
    %1665 = vmatpush1.bf16.msra.mxu0 0
    %1666 = vmatprep.subr.bf16.mxu0 0
    %1667 = vmatpush1.bf16.msra.mxu0 0
    %1668 = vmatprep.mubr.bf16.mxu0 0
    %1669 = vmatmul.mubr.bf16.gmra.mrb[0].mxu0 %v1615
    %v1670 = vpop.f32.mrb[0].mxu0
    %v1671 = vadd.f32 0.0, %v1670
    %v1672 = vpop.f32.mrb[0].mxu0
    %v1673 = vadd.f32 0.0, %v1672
    %v1674 = vpop.f32.mrb[0].mxu0
    %v1675 = vadd.f32 0.0, %v1674
    %v1676 = vpop.f32.mrb[0].mxu0
    %v1677 = vadd.f32 0.0, %v1676
    %1678 = vmatprep.mubr.bf16.mxu0 0
    %1679 = vmatmul.mubr.bf16.gmra.mrb[0].mxu0 %v1618
    %v1680 = vpop.f32.mrb[0].mxu0
    %v1681 = vadd.f32 0.0, %v1680
    %v1682 = vpop.f32.mrb[0].mxu0
    %v1683 = vadd.f32 0.0, %v1682
    %v1684 = vpop.f32.mrb[0].mxu0
    %v1685 = vadd.f32 0.0, %v1684
    %v1686 = vpop.f32.mrb[0].mxu0
    %v1687 = vadd.f32 0.0, %v1686
    %1688 = vdwg.mxu0
    %1689 = vmatprep.subr.bf16.mxu0 %v1586
    %1690 = vmatpush1.bf16.msra.mxu0 %v1585
    %1691 = vmatprep.subr.bf16.mxu0 %v1590
    %1692 = vmatpush1.bf16.msra.mxu0 %v1589
    %1693 = vmatprep.subr.bf16.mxu0 %v1594
    %1694 = vmatpush1.bf16.msra.mxu0 %v1593
    %1695 = vmatprep.subr.bf16.mxu0 %v1634
    %1696 = vmatpush1.bf16.msra.mxu0 %v1631
    %1697 = vmatprep.subr.bf16.mxu0 0
    %1698 = vmatpush1.bf16.msra.mxu0 0
    %1699 = vmatprep.subr.bf16.mxu0 0
    %1700 = vmatpush1.bf16.msra.mxu0 0
    %1701 = vmatprep.subr.bf16.mxu0 0
    %1702 = vmatpush1.bf16.msra.mxu0 0
    %1703 = vmatprep.subr.bf16.mxu0 0
    %1704 = vmatpush1.bf16.msra.mxu0 0
    %1705 = vmatprep.subr.bf16.mxu0 0
    %1706 = vmatpush1.bf16.msra.mxu0 0
    %1707 = vmatprep.subr.bf16.mxu0 0
    %1708 = vmatpush1.bf16.msra.mxu0 0
    %1709 = vmatprep.subr.bf16.mxu0 0
    %1710 = vmatpush1.bf16.msra.mxu0 0
    %1711 = vmatprep.subr.bf16.mxu0 0
    %1712 = vmatpush1.bf16.msra.mxu0 0
    %1713 = vmatprep.subr.bf16.mxu0 0
    %1714 = vmatpush1.bf16.msra.mxu0 0
    %1715 = vmatprep.subr.bf16.mxu0 0
    %1716 = vmatpush1.bf16.msra.mxu0 0
    %1717 = vmatprep.subr.bf16.mxu0 0
    %1718 = vmatpush1.bf16.msra.mxu0 0
    %1719 = vmatprep.subr.bf16.mxu0 0
    %1720 = vmatpush1.bf16.msra.mxu0 0
    %1721 = vmatprep.mubr.bf16.mxu0 0
    %1722 = vmatmul.mubr.bf16.gmra.mrb[0].mxu0 %v1615
    %v1723 = vpop.f32.mrb[0].mxu0
    %v1724 = vadd.f32 0.0, %v1723
    %v1725 = vpop.f32.mrb[0].mxu0
    %v1726 = vadd.f32 0.0, %v1725
    %v1727 = vpop.f32.mrb[0].mxu0
    %v1728 = vadd.f32 0.0, %v1727
    %v1729 = vpop.f32.mrb[0].mxu0
    %v1730 = vadd.f32 0.0, %v1729
    %1731 = vmatprep.mubr.bf16.mxu0 0
    %1732 = vmatmul.mubr.bf16.gmra.mrb[0].mxu0 %v1618
    %v1733 = vpop.f32.mrb[0].mxu0
    %v1734 = vadd.f32 0.0, %v1733
    %v1735 = vpop.f32.mrb[0].mxu0
    %v1736 = vadd.f32 0.0, %v1735
    %v1737 = vpop.f32.mrb[0].mxu0
    %v1738 = vadd.f32 0.0, %v1737
    %v1739 = vpop.f32.mrb[0].mxu0
    %v1740 = vadd.f32 0.0, %v1739
    %1741 = vdwg.mxu0
    %v1742 = vpack.c.bf16 %v1675, %v1671
    %v1743 = vpack.c.bf16 %v1677, %v1673
    %v1744 = vpack.c.bf16 %v1728, %v1724
    %v1745 = vpack.c.bf16 %v1730, %v1726
    %v1746 = vpack.c.bf16 %v1685, %v1681
    %v1747 = vpack.c.bf16 %v1687, %v1683
    %v1748 = vpack.c.bf16 %v1738, %v1734
    %v1749 = vpack.c.bf16 %v1740, %v1736
    %v1751 = vshrl.u32 %v1742, 16
    %v1753 = vshll.u32 %v1742, 16
    %v1755 = vrot.slane %v1753, 1
    %v1756 = vor.u32 %v1751, %v1755
    %v1758 = vshll.u32 %v1746, 16
    %v1760 = vrot.slane %v1758, 1
    %v1761 = vsel %vm288, %v1756, %v1760
    %v1763 = vshrl.u32 %v1743, 16
    %v1765 = vshll.u32 %v1743, 16
    %v1767 = vrot.slane %v1765, 1
    %v1768 = vor.u32 %v1763, %v1767
    %v1770 = vshll.u32 %v1747, 16
    %v1772 = vrot.slane %v1770, 1
    %v1773 = vsel %vm288, %v1768, %v1772
    %v1775 = vshrl.u32 %v1744, 16
    %v1777 = vshll.u32 %v1744, 16
    %v1779 = vrot.slane %v1777, 1
    %v1780 = vor.u32 %v1775, %v1779
    %v1782 = vshll.u32 %v1748, 16
    %v1784 = vrot.slane %v1782, 1
    %v1785 = vsel %vm288, %v1780, %v1784
    %v1787 = vshrl.u32 %v1745, 16
    %v1789 = vshll.u32 %v1745, 16
    %v1791 = vrot.slane %v1789, 1
    %v1792 = vor.u32 %v1787, %v1791
    %v1794 = vshll.u32 %v1749, 16
    %v1796 = vrot.slane %v1794, 1
    %v1797 = vsel %vm288, %v1792, %v1796
    %v1798 = vshrl.u32 %v1746, 16
    %v1800 = vor.u32 %v1798, %v1760
    %v1801 = vshrl.u32 %v1747, 16
    %v1803 = vor.u32 %v1801, %v1772
    %v1804 = vshrl.u32 %v1748, 16
    %v1806 = vor.u32 %v1804, %v1784
    %v1807 = vshrl.u32 %v1749, 16
    %v1809 = vor.u32 %v1807, %v1796
    %v1826 = vrot.slane %v1742, 1
    %v1827 = vrot.slane %v1746, 1
    %v1828 = vsel %vm324, %v1826, %v1827
    %v1829 = vrot.slane %v1743, 1
    %v1830 = vrot.slane %v1747, 1
    %v1831 = vsel %vm324, %v1829, %v1830
    %v1832 = vrot.slane %v1744, 1
    %v1833 = vrot.slane %v1748, 1
    %v1834 = vsel %vm324, %v1832, %v1833
    %v1835 = vrot.slane %v1745, 1
    %v1836 = vrot.slane %v1749, 1
    %v1837 = vsel %vm324, %v1835, %v1836
    %v1846 = vld [vmem:[#allocation8] sm:$0xff]
    %v1847 = vld [vmem:[#allocation8 + $0x8] sm:$0xf]
    %v1848 = vld [vmem:[#allocation8 + $0xc] sm:$0xff]
    %v1849 = vld [vmem:[#allocation8 + $0x14] sm:$0xf]
    %v1850 = vld [vmem:[#allocation8 + $0x18] sm:$0xff]
    %v1851 = vld [vmem:[#allocation8 + $0x20] sm:$0xf]
    %v1852 = vld [vmem:[#allocation8 + $0x24] sm:$0xff]
    %v1853 = vld [vmem:[#allocation8 + $0x2c] sm:$0xf]
    %v1854 = vld [vmem:[#allocation8 + $0x30] sm:$0xff]
    %v1855 = vld [vmem:[#allocation8 + $0x38] sm:$0xf]
    %v1856 = vld [vmem:[#allocation8 + $0x3c] sm:$0xff]
    %v1857 = vld [vmem:[#allocation8 + $0x44] sm:$0xf]
    %v1858 = vld [vmem:[#allocation8 + $0x48] sm:$0xff]
    %v1859 = vld [vmem:[#allocation8 + $0x50] sm:$0xf]
    %v1860 = vld [vmem:[#allocation8 + $0x54] sm:$0xff]
    %v1861 = vld [vmem:[#allocation8 + $0x5c] sm:$0xf]
    %v1862 = vld [vmem:[#allocation8 + $0x60] sm:$0xff]
    %v1863 = vld [vmem:[#allocation8 + $0x68] sm:$0xf]
    %v1864 = vld [vmem:[#allocation8 + $0x6c] sm:$0xff]
    %v1865 = vld [vmem:[#allocation8 + $0x74] sm:$0xf]
    %v1866 = vld [vmem:[#allocation8 + $0x78] sm:$0xff]
    %v1867 = vld [vmem:[#allocation8 + $0x80] sm:$0xf]
    %v1868 = vld [vmem:[#allocation8 + $0x84] sm:$0xff]
    %v1869 = vld [vmem:[#allocation8 + $0x8c] sm:$0xf]
    %v1870 = vld [vmem:[#allocation8 + $0x90] sm:$0xff]
    %v1871 = vld [vmem:[#allocation8 + $0x98] sm:$0xf]
    %v1872 = vld [vmem:[#allocation8 + $0x9c] sm:$0xff]
    %v1873 = vld [vmem:[#allocation8 + $0xa4] sm:$0xf]
    %v1874 = vld [vmem:[#allocation8 + $0xa8] sm:$0xff]
    %v1875 = vld [vmem:[#allocation8 + $0xb0] sm:$0xf]
    %v1876 = vld [vmem:[#allocation8 + $0xb4] sm:$0xff]
    %v1877 = vld [vmem:[#allocation8 + $0xbc] sm:$0xf]
    %v1878 = vld [vmem:[#allocation8 + $0xc0] sm:$0xff]
    %v1879 = vld [vmem:[#allocation8 + $0xc8] sm:$0xf]
    %v1880 = vld [vmem:[#allocation8 + $0xcc] sm:$0xff]
    %v1881 = vld [vmem:[#allocation8 + $0xd4] sm:$0xf]
    %v1882 = vld [vmem:[#allocation8 + $0xd8] sm:$0xff]
    %v1883 = vld [vmem:[#allocation8 + $0xe0] sm:$0xf]
    %v1884 = vld [vmem:[#allocation8 + $0xe4] sm:$0xff]
    %v1885 = vld [vmem:[#allocation8 + $0xec] sm:$0xf]
    %v1886 = vld [vmem:[#allocation8 + $0xf0] sm:$0xff]
    %v1887 = vld [vmem:[#allocation8 + $0xf8] sm:$0xf]
    %v1888 = vld [vmem:[#allocation8 + $0xfc] sm:$0xff]
    %v1889 = vld [vmem:[#allocation8 + $0x104] sm:$0xf]
    %v1890 = vld [vmem:[#allocation8 + $0x108] sm:$0xff]
    %v1891 = vld [vmem:[#allocation8 + $0x110] sm:$0xf]
    %v1892 = vld [vmem:[#allocation8 + $0x114] sm:$0xff]
    %v1893 = vld [vmem:[#allocation8 + $0x11c] sm:$0xf]
    %v1894 = vld [vmem:[#allocation8 + $0x120] sm:$0xff]
    %v1895 = vld [vmem:[#allocation8 + $0x128] sm:$0xf]
    %v1896 = vld [vmem:[#allocation8 + $0x12c] sm:$0xff]
    %v1897 = vld [vmem:[#allocation8 + $0x134] sm:$0xf]
    %v1898 = vld [vmem:[#allocation8 + $0x138] sm:$0xff]
    %v1899 = vld [vmem:[#allocation8 + $0x140] sm:$0xf]
    %v1900 = vld [vmem:[#allocation8 + $0x144] sm:$0xff]
    %v1901 = vld [vmem:[#allocation8 + $0x14c] sm:$0xf]
    %v1902 = vld [vmem:[#allocation8 + $0x150] sm:$0xff]
    %v1903 = vld [vmem:[#allocation8 + $0x158] sm:$0xf]
    %v1904 = vld [vmem:[#allocation8 + $0x15c] sm:$0xff]
    %v1905 = vld [vmem:[#allocation8 + $0x164] sm:$0xf]
    %v1906 = vld [vmem:[#allocation8 + $0x168] sm:$0xff]
    %v1907 = vld [vmem:[#allocation8 + $0x170] sm:$0xf]
    %v1908 = vld [vmem:[#allocation8 + $0x174] sm:$0xff]
    %v1909 = vld [vmem:[#allocation8 + $0x17c] sm:$0xf]
    %v1910 = vld [vmem:[#allocation8 + $0x180] sm:$0xff]
    %v1911 = vld [vmem:[#allocation8 + $0x188] sm:$0xf]
    %v1912 = vld [vmem:[#allocation8 + $0x18c] sm:$0xff]
    %v1913 = vld [vmem:[#allocation8 + $0x194] sm:$0xf]
    %v1914 = vld [vmem:[#allocation8 + $0x198] sm:$0xff]
    %v1915 = vld [vmem:[#allocation8 + $0x1a0] sm:$0xf]
    %v1916 = vld [vmem:[#allocation8 + $0x1a4] sm:$0xff]
    %v1917 = vld [vmem:[#allocation8 + $0x1ac] sm:$0xf]
    %v1918 = vld [vmem:[#allocation8 + $0x1b0] sm:$0xff]
    %v1919 = vld [vmem:[#allocation8 + $0x1b8] sm:$0xf]
    %v1920 = vld [vmem:[#allocation8 + $0x1bc] sm:$0xff]
    %v1921 = vld [vmem:[#allocation8 + $0x1c4] sm:$0xf]
    %v1922 = vld [vmem:[#allocation8 + $0x1c8] sm:$0xff]
    %v1923 = vld [vmem:[#allocation8 + $0x1d0] sm:$0xf]
    %v1924 = vld [vmem:[#allocation8 + $0x1d4] sm:$0xff]
    %v1925 = vld [vmem:[#allocation8 + $0x1dc] sm:$0xf]
    %v1926 = vld [vmem:[#allocation8 + $0x1e0] sm:$0xff]
    %v1927 = vld [vmem:[#allocation8 + $0x1e8] sm:$0xf]
    %v1928 = vld [vmem:[#allocation8 + $0x1ec] sm:$0xff]
    %v1929 = vld [vmem:[#allocation8 + $0x1f4] sm:$0xf]
    %v1930 = vld [vmem:[#allocation8 + $0x1f8] sm:$0xff]
    %v1931 = vld [vmem:[#allocation8 + $0x200] sm:$0xf]
    %v1932 = vld [vmem:[#allocation8 + $0x204] sm:$0xff]
    %v1933 = vld [vmem:[#allocation8 + $0x20c] sm:$0xf]
    %v1934 = vld [vmem:[#allocation8 + $0x210] sm:$0xff]
    %v1935 = vld [vmem:[#allocation8 + $0x218] sm:$0xf]
    %v1936 = vld [vmem:[#allocation8 + $0x21c] sm:$0xff]
    %v1937 = vld [vmem:[#allocation8 + $0x224] sm:$0xf]
    %v1938 = vld [vmem:[#allocation8 + $0x228] sm:$0xff]
    %v1939 = vld [vmem:[#allocation8 + $0x230] sm:$0xf]
    %v1940 = vld [vmem:[#allocation8 + $0x234] sm:$0xff]
    %v1941 = vld [vmem:[#allocation8 + $0x23c] sm:$0xf]
    %v1942 = vld [vmem:[#allocation8 + $0x240] sm:$0xff]
    %v1943 = vld [vmem:[#allocation8 + $0x248] sm:$0xf]
    %v1944 = vld [vmem:[#allocation8 + $0x24c] sm:$0xff]
    %v1945 = vld [vmem:[#allocation8 + $0x254] sm:$0xf]
    %v1946 = vld [vmem:[#allocation8 + $0x258] sm:$0xff]
    %v1947 = vld [vmem:[#allocation8 + $0x260] sm:$0xf]
    %v1948 = vld [vmem:[#allocation8 + $0x264] sm:$0xff]
    %v1949 = vld [vmem:[#allocation8 + $0x26c] sm:$0xf]
    %v1950 = vld [vmem:[#allocation8 + $0x270] sm:$0xff]
    %v1951 = vld [vmem:[#allocation8 + $0x278] sm:$0xf]
    %v1952 = vld [vmem:[#allocation8 + $0x27c] sm:$0xff]
    %v1953 = vld [vmem:[#allocation8 + $0x284] sm:$0xf]
    %v1954 = vld [vmem:[#allocation8 + $0x288] sm:$0xff]
    %v1955 = vld [vmem:[#allocation8 + $0x290] sm:$0xf]
    %v1956 = vld [vmem:[#allocation8 + $0x294] sm:$0xff]
    %v1957 = vld [vmem:[#allocation8 + $0x29c] sm:$0xf]
    %v1958 = vld [vmem:[#allocation8 + $0x2a0] sm:$0xff]
    %v1959 = vld [vmem:[#allocation8 + $0x2a8] sm:$0xf]
    %v1960 = vld [vmem:[#allocation8 + $0x2ac] sm:$0xff]
    %v1961 = vld [vmem:[#allocation8 + $0x2b4] sm:$0xf]
    %v1962 = vld [vmem:[#allocation8 + $0x2b8] sm:$0xff]
    %v1963 = vld [vmem:[#allocation8 + $0x2c0] sm:$0xf]
    %v1964 = vld [vmem:[#allocation8 + $0x2c4] sm:$0xff]
    %v1965 = vld [vmem:[#allocation8 + $0x2cc] sm:$0xf]
    %v1966 = vld [vmem:[#allocation8 + $0x2d0] sm:$0xff]
    %v1967 = vld [vmem:[#allocation8 + $0x2d8] sm:$0xf]
    %v1968 = vld [vmem:[#allocation8 + $0x2dc] sm:$0xff]
    %v1969 = vld [vmem:[#allocation8 + $0x2e4] sm:$0xf]
    %v1970 = vld [vmem:[#allocation8 + $0x2e8] sm:$0xff]
    %v1971 = vld [vmem:[#allocation8 + $0x2f0] sm:$0xf]
    %v1972 = vld [vmem:[#allocation8 + $0x2f4] sm:$0xff]
    %v1973 = vld [vmem:[#allocation8 + $0x2fc] sm:$0xf]
    %v1974 = vld [vmem:[#allocation8 + $0x300] sm:$0xff]
    %v1975 = vld [vmem:[#allocation8 + $0x308] sm:$0xf]
    %v1976 = vld [vmem:[#allocation8 + $0x30c] sm:$0xff]
    %v1977 = vld [vmem:[#allocation8 + $0x314] sm:$0xf]
    %v1978 = vld [vmem:[#allocation8 + $0x318] sm:$0xff]
    %v1979 = vld [vmem:[#allocation8 + $0x320] sm:$0xf]
    %v1980 = vld [vmem:[#allocation8 + $0x324] sm:$0xff]
    %v1981 = vld [vmem:[#allocation8 + $0x32c] sm:$0xf]
    %v1982 = vld [vmem:[#allocation8 + $0x330] sm:$0xff]
    %v1983 = vld [vmem:[#allocation8 + $0x338] sm:$0xf]
    %v1984 = vld [vmem:[#allocation8 + $0x33c] sm:$0xff]
    %v1985 = vld [vmem:[#allocation8 + $0x344] sm:$0xf]
    %v1986 = vld [vmem:[#allocation8 + $0x348] sm:$0xff]
    %v1987 = vld [vmem:[#allocation8 + $0x350] sm:$0xf]
    %v1988 = vld [vmem:[#allocation8 + $0x354] sm:$0xff]
    %v1989 = vld [vmem:[#allocation8 + $0x35c] sm:$0xf]
    %v1990 = vld [vmem:[#allocation8 + $0x360] sm:$0xff]
    %v1991 = vld [vmem:[#allocation8 + $0x368] sm:$0xf]
    %v1992 = vld [vmem:[#allocation8 + $0x36c] sm:$0xff]
    %v1993 = vld [vmem:[#allocation8 + $0x374] sm:$0xf]
    %v1994 = vld [vmem:[#allocation8 + $0x378] sm:$0xff]
    %v1995 = vld [vmem:[#allocation8 + $0x380] sm:$0xf]
    %v1996 = vld [vmem:[#allocation8 + $0x384] sm:$0xff]
    %v1997 = vld [vmem:[#allocation8 + $0x38c] sm:$0xf]
    %v1998 = vld [vmem:[#allocation8 + $0x390] sm:$0xff]
    %v1999 = vld [vmem:[#allocation8 + $0x398] sm:$0xf]
    %v2000 = vld [vmem:[#allocation8 + $0x39c] sm:$0xff]
    %v2001 = vld [vmem:[#allocation8 + $0x3a4] sm:$0xf]
    %v2002 = vld [vmem:[#allocation8 + $0x3a8] sm:$0xff]
    %v2003 = vld [vmem:[#allocation8 + $0x3b0] sm:$0xf]
    %v2004 = vld [vmem:[#allocation8 + $0x3b4] sm:$0xff]
    %v2005 = vld [vmem:[#allocation8 + $0x3bc] sm:$0xf]
    %v2006 = vld [vmem:[#allocation8 + $0x3c0] sm:$0xff]
    %v2007 = vld [vmem:[#allocation8 + $0x3c8] sm:$0xf]
    %v2008 = vld [vmem:[#allocation8 + $0x3cc] sm:$0xff]
    %v2009 = vld [vmem:[#allocation8 + $0x3d4] sm:$0xf]
    %v2010 = vld [vmem:[#allocation8 + $0x3d8] sm:$0xff]
    %v2011 = vld [vmem:[#allocation8 + $0x3e0] sm:$0xf]
    %v2012 = vld [vmem:[#allocation8 + $0x3e4] sm:$0xff]
    %v2013 = vld [vmem:[#allocation8 + $0x3ec] sm:$0xf]
    %v2014 = vld [vmem:[#allocation8 + $0x3f0] sm:$0xff]
    %v2015 = vld [vmem:[#allocation8 + $0x3f8] sm:$0xf]
    %v2016 = vld [vmem:[#allocation8 + $0x3fc] sm:$0xff]
    %v2017 = vld [vmem:[#allocation8 + $0x404] sm:$0xf]
    %v2018 = vld [vmem:[#allocation8 + $0x408] sm:$0xff]
    %v2019 = vld [vmem:[#allocation8 + $0x410] sm:$0xf]
    %v2020 = vld [vmem:[#allocation8 + $0x414] sm:$0xff]
    %v2021 = vld [vmem:[#allocation8 + $0x41c] sm:$0xf]
    %v2022 = vld [vmem:[#allocation8 + $0x420] sm:$0xff]
    %v2023 = vld [vmem:[#allocation8 + $0x428] sm:$0xf]
    %v2024 = vld [vmem:[#allocation8 + $0x42c] sm:$0xff]
    %v2025 = vld [vmem:[#allocation8 + $0x434] sm:$0xf]
    %v2026 = vld [vmem:[#allocation8 + $0x438] sm:$0xff]
    %v2027 = vld [vmem:[#allocation8 + $0x440] sm:$0xf]
    %v2028 = vld [vmem:[#allocation8 + $0x444] sm:$0xff]
    %v2029 = vld [vmem:[#allocation8 + $0x44c] sm:$0xf]
    %v2030 = vld [vmem:[#allocation8 + $0x450] sm:$0xff]
    %v2031 = vld [vmem:[#allocation8 + $0x458] sm:$0xf]
    %v2032 = vld [vmem:[#allocation8 + $0x45c] sm:$0xff]
    %v2033 = vld [vmem:[#allocation8 + $0x464] sm:$0xf]
    %v2034 = vld [vmem:[#allocation8 + $0x468] sm:$0xff]
    %v2035 = vld [vmem:[#allocation8 + $0x470] sm:$0xf]
    %v2036 = vld [vmem:[#allocation8 + $0x474] sm:$0xff]
    %v2037 = vld [vmem:[#allocation8 + $0x47c] sm:$0xf]
    %v2038 = vld [vmem:[#allocation8 + $0x480] sm:$0xff]
    %v2039 = vld [vmem:[#allocation8 + $0x488] sm:$0xf]
    %v2040 = vld [vmem:[#allocation8 + $0x48c] sm:$0xff]
    %v2041 = vld [vmem:[#allocation8 + $0x494] sm:$0xf]
    %v2042 = vld [vmem:[#allocation8 + $0x498] sm:$0xff]
    %v2043 = vld [vmem:[#allocation8 + $0x4a0] sm:$0xf]
    %v2044 = vld [vmem:[#allocation8 + $0x4a4] sm:$0xff]
    %v2045 = vld [vmem:[#allocation8 + $0x4ac] sm:$0xf]
    %v2046 = vld [vmem:[#allocation8 + $0x4b0] sm:$0xff]
    %v2047 = vld [vmem:[#allocation8 + $0x4b8] sm:$0xf]
    %v2048 = vld [vmem:[#allocation8 + $0x4bc] sm:$0xff]
    %v2049 = vld [vmem:[#allocation8 + $0x4c4] sm:$0xf]
    %v2050 = vld [vmem:[#allocation8 + $0x4c8] sm:$0xff]
    %v2051 = vld [vmem:[#allocation8 + $0x4d0] sm:$0xf]
    %v2052 = vld [vmem:[#allocation8 + $0x4d4] sm:$0xff]
    %v2053 = vld [vmem:[#allocation8 + $0x4dc] sm:$0xf]
    %v2054 = vld [vmem:[#allocation8 + $0x4e0] sm:$0xff]
    %v2055 = vld [vmem:[#allocation8 + $0x4e8] sm:$0xf]
    %v2056 = vld [vmem:[#allocation8 + $0x4ec] sm:$0xff]
    %v2057 = vld [vmem:[#allocation8 + $0x4f4] sm:$0xf]
    %v2058 = vld [vmem:[#allocation8 + $0x4f8] sm:$0xff]
    %v2059 = vld [vmem:[#allocation8 + $0x500] sm:$0xf]
    %v2060 = vld [vmem:[#allocation8 + $0x504] sm:$0xff]
    %v2061 = vld [vmem:[#allocation8 + $0x50c] sm:$0xf]
    %v2062 = vld [vmem:[#allocation8 + $0x510] sm:$0xff]
    %v2063 = vld [vmem:[#allocation8 + $0x518] sm:$0xf]
    %v2064 = vld [vmem:[#allocation8 + $0x51c] sm:$0xff]
    %v2065 = vld [vmem:[#allocation8 + $0x524] sm:$0xf]
    %v2066 = vld [vmem:[#allocation8 + $0x528] sm:$0xff]
    %v2067 = vld [vmem:[#allocation8 + $0x530] sm:$0xf]
    %v2068 = vld [vmem:[#allocation8 + $0x534] sm:$0xff]
    %v2069 = vld [vmem:[#allocation8 + $0x53c] sm:$0xf]
    %v2070 = vld [vmem:[#allocation8 + $0x540] sm:$0xff]
    %v2071 = vld [vmem:[#allocation8 + $0x548] sm:$0xf]
    %v2072 = vld [vmem:[#allocation8 + $0x54c] sm:$0xff]
    %v2073 = vld [vmem:[#allocation8 + $0x554] sm:$0xf]
    %v2074 = vld [vmem:[#allocation8 + $0x558] sm:$0xff]
    %v2075 = vld [vmem:[#allocation8 + $0x560] sm:$0xf]
    %v2076 = vld [vmem:[#allocation8 + $0x564] sm:$0xff]
    %v2077 = vld [vmem:[#allocation8 + $0x56c] sm:$0xf]
    %v2078 = vld [vmem:[#allocation8 + $0x570] sm:$0xff]
    %v2079 = vld [vmem:[#allocation8 + $0x578] sm:$0xf]
    %v2080 = vld [vmem:[#allocation8 + $0x57c] sm:$0xff]
    %v2081 = vld [vmem:[#allocation8 + $0x584] sm:$0xf]
    %v2082 = vld [vmem:[#allocation8 + $0x588] sm:$0xff]
    %v2083 = vld [vmem:[#allocation8 + $0x590] sm:$0xf]
    %v2084 = vld [vmem:[#allocation8 + $0x594] sm:$0xff]
    %v2085 = vld [vmem:[#allocation8 + $0x59c] sm:$0xf]
    %v2086 = vld [vmem:[#allocation8 + $0x5a0] sm:$0xff]
    %v2087 = vld [vmem:[#allocation8 + $0x5a8] sm:$0xf]
    %v2088 = vld [vmem:[#allocation8 + $0x5ac] sm:$0xff]
    %v2089 = vld [vmem:[#allocation8 + $0x5b4] sm:$0xf]
    %v2090 = vld [vmem:[#allocation8 + $0x5b8] sm:$0xff]
    %v2091 = vld [vmem:[#allocation8 + $0x5c0] sm:$0xf]
    %v2092 = vld [vmem:[#allocation8 + $0x5c4] sm:$0xff]
    %v2093 = vld [vmem:[#allocation8 + $0x5cc] sm:$0xf]
    %v2094 = vld [vmem:[#allocation8 + $0x5d0] sm:$0xff]
    %v2095 = vld [vmem:[#allocation8 + $0x5d8] sm:$0xf]
    %v2096 = vld [vmem:[#allocation8 + $0x5dc] sm:$0xff]
    %v2097 = vld [vmem:[#allocation8 + $0x5e4] sm:$0xf]
    %v2098 = vld [vmem:[#allocation8 + $0x5e8] sm:$0xff]
    %v2099 = vld [vmem:[#allocation8 + $0x5f0] sm:$0xf]
    %v2100 = vld [vmem:[#allocation8 + $0x5f4] sm:$0xff]
    %v2101 = vld [vmem:[#allocation8 + $0x5fc] sm:$0xf]
    %v2102 = vld [vmem:[#allocation8 + $0x600] sm:$0xff]
    %v2103 = vld [vmem:[#allocation8 + $0x608] sm:$0xf]
    %v2104 = vld [vmem:[#allocation8 + $0x60c] sm:$0xff]
    %v2105 = vld [vmem:[#allocation8 + $0x614] sm:$0xf]
    %v2106 = vld [vmem:[#allocation8 + $0x618] sm:$0xff]
    %v2107 = vld [vmem:[#allocation8 + $0x620] sm:$0xf]
    %v2108 = vld [vmem:[#allocation8 + $0x624] sm:$0xff]
    %v2109 = vld [vmem:[#allocation8 + $0x62c] sm:$0xf]
    %v2110 = vld [vmem:[#allocation8 + $0x630] sm:$0xff]
    %v2111 = vld [vmem:[#allocation8 + $0x638] sm:$0xf]
    %v2112 = vld [vmem:[#allocation8 + $0x63c] sm:$0xff]
    %v2113 = vld [vmem:[#allocation8 + $0x644] sm:$0xf]
    %v2114 = vld [vmem:[#allocation8 + $0x648] sm:$0xff]
    %v2115 = vld [vmem:[#allocation8 + $0x650] sm:$0xf]
    %v2116 = vld [vmem:[#allocation8 + $0x654] sm:$0xff]
    %v2117 = vld [vmem:[#allocation8 + $0x65c] sm:$0xf]
    %v2118 = vld [vmem:[#allocation8 + $0x660] sm:$0xff]
    %v2119 = vld [vmem:[#allocation8 + $0x668] sm:$0xf]
    %v2120 = vld [vmem:[#allocation8 + $0x66c] sm:$0xff]
    %v2121 = vld [vmem:[#allocation8 + $0x674] sm:$0xf]
    %v2122 = vld [vmem:[#allocation8 + $0x678] sm:$0xff]
    %v2123 = vld [vmem:[#allocation8 + $0x680] sm:$0xf]
    %v2124 = vld [vmem:[#allocation8 + $0x684] sm:$0xff]
    %v2125 = vld [vmem:[#allocation8 + $0x68c] sm:$0xf]
    %v2126 = vld [vmem:[#allocation8 + $0x690] sm:$0xff]
    %v2127 = vld [vmem:[#allocation8 + $0x698] sm:$0xf]
    %v2128 = vld [vmem:[#allocation8 + $0x69c] sm:$0xff]
    %v2129 = vld [vmem:[#allocation8 + $0x6a4] sm:$0xf]
    %v2130 = vld [vmem:[#allocation8 + $0x6a8] sm:$0xff]
    %v2131 = vld [vmem:[#allocation8 + $0x6b0] sm:$0xf]
    %v2132 = vld [vmem:[#allocation8 + $0x6b4] sm:$0xff]
    %v2133 = vld [vmem:[#allocation8 + $0x6bc] sm:$0xf]
    %v2134 = vld [vmem:[#allocation8 + $0x6c0] sm:$0xff]
    %v2135 = vld [vmem:[#allocation8 + $0x6c8] sm:$0xf]
    %v2136 = vld [vmem:[#allocation8 + $0x6cc] sm:$0xff]
    %v2137 = vld [vmem:[#allocation8 + $0x6d4] sm:$0xf]
    %v2138 = vld [vmem:[#allocation8 + $0x6d8] sm:$0xff]
    %v2139 = vld [vmem:[#allocation8 + $0x6e0] sm:$0xf]
    %v2140 = vld [vmem:[#allocation8 + $0x6e4] sm:$0xff]
    %v2141 = vld [vmem:[#allocation8 + $0x6ec] sm:$0xf]
    %v2142 = vld [vmem:[#allocation8 + $0x6f0] sm:$0xff]
    %v2143 = vld [vmem:[#allocation8 + $0x6f8] sm:$0xf]
    %v2144 = vld [vmem:[#allocation8 + $0x6fc] sm:$0xff]
    %v2145 = vld [vmem:[#allocation8 + $0x704] sm:$0xf]
    %v2146 = vld [vmem:[#allocation8 + $0x708] sm:$0xff]
    %v2147 = vld [vmem:[#allocation8 + $0x710] sm:$0xf]
    %v2148 = vld [vmem:[#allocation8 + $0x714] sm:$0xff]
    %v2149 = vld [vmem:[#allocation8 + $0x71c] sm:$0xf]
    %v2150 = vld [vmem:[#allocation8 + $0x720] sm:$0xff]
    %v2151 = vld [vmem:[#allocation8 + $0x728] sm:$0xf]
    %v2152 = vld [vmem:[#allocation8 + $0x72c] sm:$0xff]
    %v2153 = vld [vmem:[#allocation8 + $0x734] sm:$0xf]
    %v2154 = vld [vmem:[#allocation8 + $0x738] sm:$0xff]
    %v2155 = vld [vmem:[#allocation8 + $0x740] sm:$0xf]
    %v2156 = vld [vmem:[#allocation8 + $0x744] sm:$0xff]
    %v2157 = vld [vmem:[#allocation8 + $0x74c] sm:$0xf]
    %v2158 = vld [vmem:[#allocation8 + $0x750] sm:$0xff]
    %v2159 = vld [vmem:[#allocation8 + $0x758] sm:$0xf]
    %v2160 = vld [vmem:[#allocation8 + $0x75c] sm:$0xff]
    %v2161 = vld [vmem:[#allocation8 + $0x764] sm:$0xf]
    %v2162 = vld [vmem:[#allocation8 + $0x768] sm:$0xff]
    %v2163 = vld [vmem:[#allocation8 + $0x770] sm:$0xf]
    %v2164 = vld [vmem:[#allocation8 + $0x774] sm:$0xff]
    %v2165 = vld [vmem:[#allocation8 + $0x77c] sm:$0xf]
    %v2166 = vld [vmem:[#allocation8 + $0x780] sm:$0xff]
    %v2167 = vld [vmem:[#allocation8 + $0x788] sm:$0xf]
    %v2168 = vld [vmem:[#allocation8 + $0x78c] sm:$0xff]
    %v2169 = vld [vmem:[#allocation8 + $0x794] sm:$0xf]
    %v2170 = vld [vmem:[#allocation8 + $0x798] sm:$0xff]
    %v2171 = vld [vmem:[#allocation8 + $0x7a0] sm:$0xf]
    %v2172 = vld [vmem:[#allocation8 + $0x7a4] sm:$0xff]
    %v2173 = vld [vmem:[#allocation8 + $0x7ac] sm:$0xf]
    %v2174 = vld [vmem:[#allocation8 + $0x7b0] sm:$0xff]
    %v2175 = vld [vmem:[#allocation8 + $0x7b8] sm:$0xf]
    %v2176 = vld [vmem:[#allocation8 + $0x7bc] sm:$0xff]
    %v2177 = vld [vmem:[#allocation8 + $0x7c4] sm:$0xf]
    %v2178 = vld [vmem:[#allocation8 + $0x7c8] sm:$0xff]
    %v2179 = vld [vmem:[#allocation8 + $0x7d0] sm:$0xf]
    %v2180 = vld [vmem:[#allocation8 + $0x7d4] sm:$0xff]
    %v2181 = vld [vmem:[#allocation8 + $0x7dc] sm:$0xf]
    %v2182 = vld [vmem:[#allocation8 + $0x7e0] sm:$0xff]
    %v2183 = vld [vmem:[#allocation8 + $0x7e8] sm:$0xf]
    %v2184 = vld [vmem:[#allocation8 + $0x7ec] sm:$0xff]
    %v2185 = vld [vmem:[#allocation8 + $0x7f4] sm:$0xf]
    %v2186 = vld [vmem:[#allocation8 + $0x7f8] sm:$0xff]
    %v2187 = vld [vmem:[#allocation8 + $0x800] sm:$0xf]
    %v2188 = vld [vmem:[#allocation8 + $0x804] sm:$0xff]
    %v2189 = vld [vmem:[#allocation8 + $0x80c] sm:$0xf]
    %v2190 = vld [vmem:[#allocation8 + $0x810] sm:$0xff]
    %v2191 = vld [vmem:[#allocation8 + $0x818] sm:$0xf]
    %v2192 = vld [vmem:[#allocation8 + $0x81c] sm:$0xff]
    %v2193 = vld [vmem:[#allocation8 + $0x824] sm:$0xf]
    %v2194 = vld [vmem:[#allocation8 + $0x828] sm:$0xff]
    %v2195 = vld [vmem:[#allocation8 + $0x830] sm:$0xf]
    %v2196 = vld [vmem:[#allocation8 + $0x834] sm:$0xff]
    %v2197 = vld [vmem:[#allocation8 + $0x83c] sm:$0xf]
    %v2198 = vld [vmem:[#allocation8 + $0x840] sm:$0xff]
    %v2199 = vld [vmem:[#allocation8 + $0x848] sm:$0xf]
    %v2200 = vld [vmem:[#allocation8 + $0x84c] sm:$0xff]
    %v2201 = vld [vmem:[#allocation8 + $0x854] sm:$0xf]
    %v2202 = vld [vmem:[#allocation8 + $0x858] sm:$0xff]
    %v2203 = vld [vmem:[#allocation8 + $0x860] sm:$0xf]
    %v2204 = vld [vmem:[#allocation8 + $0x864] sm:$0xff]
    %v2205 = vld [vmem:[#allocation8 + $0x86c] sm:$0xf]
    %v2206 = vld [vmem:[#allocation8 + $0x870] sm:$0xff]
    %v2207 = vld [vmem:[#allocation8 + $0x878] sm:$0xf]
    %v2208 = vld [vmem:[#allocation8 + $0x87c] sm:$0xff]
    %v2209 = vld [vmem:[#allocation8 + $0x884] sm:$0xf]
    %v2210 = vld [vmem:[#allocation8 + $0x888] sm:$0xff]
    %v2211 = vld [vmem:[#allocation8 + $0x890] sm:$0xf]
    %v2212 = vld [vmem:[#allocation8 + $0x894] sm:$0xff]
    %v2213 = vld [vmem:[#allocation8 + $0x89c] sm:$0xf]
    %v2214 = vld [vmem:[#allocation8 + $0x8a0] sm:$0xff]
    %v2215 = vld [vmem:[#allocation8 + $0x8a8] sm:$0xf]
    %v2216 = vld [vmem:[#allocation8 + $0x8ac] sm:$0xff]
    %v2217 = vld [vmem:[#allocation8 + $0x8b4] sm:$0xf]
    %v2218 = vld [vmem:[#allocation8 + $0x8b8] sm:$0xff]
    %v2219 = vld [vmem:[#allocation8 + $0x8c0] sm:$0xf]
    %v2220 = vld [vmem:[#allocation8 + $0x8c4] sm:$0xff]
    %v2221 = vld [vmem:[#allocation8 + $0x8cc] sm:$0xf]
    %v2222 = vld [vmem:[#allocation8 + $0x8d0] sm:$0xff]
    %v2223 = vld [vmem:[#allocation8 + $0x8d8] sm:$0xf]
    %v2224 = vld [vmem:[#allocation8 + $0x8dc] sm:$0xff]
    %v2225 = vld [vmem:[#allocation8 + $0x8e4] sm:$0xf]
    %v2226 = vld [vmem:[#allocation8 + $0x8e8] sm:$0xff]
    %v2227 = vld [vmem:[#allocation8 + $0x8f0] sm:$0xf]
    %v2228 = vld [vmem:[#allocation8 + $0x8f4] sm:$0xff]
    %v2229 = vld [vmem:[#allocation8 + $0x8fc] sm:$0xf]
    %v2614 = vunpack.c.l.b16 %v1846
    %v2615 = vunpack.c.h.b16 %v1846
    %v2616 = vunpack.c.l.b16 %v1847
    %v2617 = vunpack.c.l.b16 %v1848
    %v2618 = vunpack.c.h.b16 %v1848
    %v2619 = vunpack.c.l.b16 %v1849
    %v2620 = vunpack.c.l.b16 %v1850
    %v2621 = vunpack.c.h.b16 %v1850
    %v2622 = vunpack.c.l.b16 %v1851
    %v2623 = vunpack.c.l.b16 %v1852
    %v2624 = vunpack.c.h.b16 %v1852
    %v2625 = vunpack.c.l.b16 %v1853
    %v2626 = vunpack.c.l.b16 %v1854
    %v2627 = vunpack.c.h.b16 %v1854
    %v2628 = vunpack.c.l.b16 %v1855
    %v2629 = vunpack.c.l.b16 %v1856
    %v2630 = vunpack.c.h.b16 %v1856
    %v2631 = vunpack.c.l.b16 %v1857
    %v2632 = vunpack.c.l.b16 %v1858
    %v2633 = vunpack.c.h.b16 %v1858
    %v2634 = vunpack.c.l.b16 %v1859
    %v2635 = vunpack.c.l.b16 %v1860
    %v2636 = vunpack.c.h.b16 %v1860
    %v2637 = vunpack.c.l.b16 %v1861
    %v2638 = vunpack.c.l.b16 %v1862
    %v2639 = vunpack.c.h.b16 %v1862
    %v2640 = vunpack.c.l.b16 %v1863
    %v2641 = vunpack.c.l.b16 %v1864
    %v2642 = vunpack.c.h.b16 %v1864
    %v2643 = vunpack.c.l.b16 %v1865
    %v2644 = vunpack.c.l.b16 %v1866
    %v2645 = vunpack.c.h.b16 %v1866
    %v2646 = vunpack.c.l.b16 %v1867
    %v2647 = vunpack.c.l.b16 %v1868
    %v2648 = vunpack.c.h.b16 %v1868
    %v2649 = vunpack.c.l.b16 %v1869
    %v2650 = vunpack.c.l.b16 %v1870
    %v2651 = vunpack.c.h.b16 %v1870
    %v2652 = vunpack.c.l.b16 %v1871
    %v2653 = vunpack.c.l.b16 %v1872
    %v2654 = vunpack.c.h.b16 %v1872
    %v2655 = vunpack.c.l.b16 %v1873
    %v2656 = vunpack.c.l.b16 %v1874
    %v2657 = vunpack.c.h.b16 %v1874
    %v2658 = vunpack.c.l.b16 %v1875
    %v2659 = vunpack.c.l.b16 %v1876
    %v2660 = vunpack.c.h.b16 %v1876
    %v2661 = vunpack.c.l.b16 %v1877
    %v2662 = vunpack.c.l.b16 %v1878
    %v2663 = vunpack.c.h.b16 %v1878
    %v2664 = vunpack.c.l.b16 %v1879
    %v2665 = vunpack.c.l.b16 %v1880
    %v2666 = vunpack.c.h.b16 %v1880
    %v2667 = vunpack.c.l.b16 %v1881
    %v2668 = vunpack.c.l.b16 %v1882
    %v2669 = vunpack.c.h.b16 %v1882
    %v2670 = vunpack.c.l.b16 %v1883
    %v2671 = vunpack.c.l.b16 %v1884
    %v2672 = vunpack.c.h.b16 %v1884
    %v2673 = vunpack.c.l.b16 %v1885
    %v2674 = vunpack.c.l.b16 %v1886
    %v2675 = vunpack.c.h.b16 %v1886
    %v2676 = vunpack.c.l.b16 %v1887
    %v2677 = vunpack.c.l.b16 %v1888
    %v2678 = vunpack.c.h.b16 %v1888
    %v2679 = vunpack.c.l.b16 %v1889
    %v2680 = vunpack.c.l.b16 %v1890
    %v2681 = vunpack.c.h.b16 %v1890
    %v2682 = vunpack.c.l.b16 %v1891
    %v2683 = vunpack.c.l.b16 %v1892
    %v2684 = vunpack.c.h.b16 %v1892
    %v2685 = vunpack.c.l.b16 %v1893
    %v2686 = vunpack.c.l.b16 %v1894
    %v2687 = vunpack.c.h.b16 %v1894
    %v2688 = vunpack.c.l.b16 %v1895
    %v2689 = vunpack.c.l.b16 %v1896
    %v2690 = vunpack.c.h.b16 %v1896
    %v2691 = vunpack.c.l.b16 %v1897
    %v2692 = vunpack.c.l.b16 %v1898
    %v2693 = vunpack.c.h.b16 %v1898
    %v2694 = vunpack.c.l.b16 %v1899
    %v2695 = vunpack.c.l.b16 %v1900
    %v2696 = vunpack.c.h.b16 %v1900
    %v2697 = vunpack.c.l.b16 %v1901
    %v2698 = vunpack.c.l.b16 %v1902
    %v2699 = vunpack.c.h.b16 %v1902
    %v2700 = vunpack.c.l.b16 %v1903
    %v2701 = vunpack.c.l.b16 %v1904
    %v2702 = vunpack.c.h.b16 %v1904
    %v2703 = vunpack.c.l.b16 %v1905
    %v2704 = vunpack.c.l.b16 %v1906
    %v2705 = vunpack.c.h.b16 %v1906
    %v2706 = vunpack.c.l.b16 %v1907
    %v2707 = vunpack.c.l.b16 %v1908
    %v2708 = vunpack.c.h.b16 %v1908
    %v2709 = vunpack.c.l.b16 %v1909
    %v2710 = vunpack.c.l.b16 %v1910
    %v2711 = vunpack.c.h.b16 %v1910
    %v2712 = vunpack.c.l.b16 %v1911
    %v2713 = vunpack.c.l.b16 %v1912
    %v2714 = vunpack.c.h.b16 %v1912
    %v2715 = vunpack.c.l.b16 %v1913
    %v2716 = vunpack.c.l.b16 %v1914
    %v2717 = vunpack.c.h.b16 %v1914
    %v2718 = vunpack.c.l.b16 %v1915
    %v2719 = vunpack.c.l.b16 %v1916
    %v2720 = vunpack.c.h.b16 %v1916
    %v2721 = vunpack.c.l.b16 %v1917
    %v2722 = vunpack.c.l.b16 %v1918
    %v2723 = vunpack.c.h.b16 %v1918
    %v2724 = vunpack.c.l.b16 %v1919
    %v2725 = vunpack.c.l.b16 %v1920
    %v2726 = vunpack.c.h.b16 %v1920
    %v2727 = vunpack.c.l.b16 %v1921
    %v2728 = vunpack.c.l.b16 %v1922
    %v2729 = vunpack.c.h.b16 %v1922
    %v2730 = vunpack.c.l.b16 %v1923
    %v2731 = vunpack.c.l.b16 %v1924
    %v2732 = vunpack.c.h.b16 %v1924
    %v2733 = vunpack.c.l.b16 %v1925
    %v2734 = vunpack.c.l.b16 %v1926
    %v2735 = vunpack.c.h.b16 %v1926
    %v2736 = vunpack.c.l.b16 %v1927
    %v2737 = vunpack.c.l.b16 %v1928
    %v2738 = vunpack.c.h.b16 %v1928
    %v2739 = vunpack.c.l.b16 %v1929
    %v2740 = vunpack.c.l.b16 %v1930
    %v2741 = vunpack.c.h.b16 %v1930
    %v2742 = vunpack.c.l.b16 %v1931
    %v2743 = vunpack.c.l.b16 %v1932
    %v2744 = vunpack.c.h.b16 %v1932
    %v2745 = vunpack.c.l.b16 %v1933
    %v2746 = vunpack.c.l.b16 %v1934
    %v2747 = vunpack.c.h.b16 %v1934
    %v2748 = vunpack.c.l.b16 %v1935
    %v2749 = vunpack.c.l.b16 %v1936
    %v2750 = vunpack.c.h.b16 %v1936
    %v2751 = vunpack.c.l.b16 %v1937
    %v2752 = vunpack.c.l.b16 %v1938
    %v2753 = vunpack.c.h.b16 %v1938
    %v2754 = vunpack.c.l.b16 %v1939
    %v2755 = vunpack.c.l.b16 %v1940
    %v2756 = vunpack.c.h.b16 %v1940
    %v2757 = vunpack.c.l.b16 %v1941
    %v2758 = vunpack.c.l.b16 %v1942
    %v2759 = vunpack.c.h.b16 %v1942
    %v2760 = vunpack.c.l.b16 %v1943
    %v2761 = vunpack.c.l.b16 %v1944
    %v2762 = vunpack.c.h.b16 %v1944
    %v2763 = vunpack.c.l.b16 %v1945
    %v2764 = vunpack.c.l.b16 %v1946
    %v2765 = vunpack.c.h.b16 %v1946
    %v2766 = vunpack.c.l.b16 %v1947
    %v2767 = vunpack.c.l.b16 %v1948
    %v2768 = vunpack.c.h.b16 %v1948
    %v2769 = vunpack.c.l.b16 %v1949
    %v2770 = vunpack.c.l.b16 %v1950
    %v2771 = vunpack.c.h.b16 %v1950
    %v2772 = vunpack.c.l.b16 %v1951
    %v2773 = vunpack.c.l.b16 %v1952
    %v2774 = vunpack.c.h.b16 %v1952
    %v2775 = vunpack.c.l.b16 %v1953
    %v2776 = vunpack.c.l.b16 %v1954
    %v2777 = vunpack.c.h.b16 %v1954
    %v2778 = vunpack.c.l.b16 %v1955
    %v2779 = vunpack.c.l.b16 %v1956
    %v2780 = vunpack.c.h.b16 %v1956
    %v2781 = vunpack.c.l.b16 %v1957
    %v2782 = vunpack.c.l.b16 %v1958
    %v2783 = vunpack.c.h.b16 %v1958
    %v2784 = vunpack.c.l.b16 %v1959
    %v2785 = vunpack.c.l.b16 %v1960
    %v2786 = vunpack.c.h.b16 %v1960
    %v2787 = vunpack.c.l.b16 %v1961
    %v2788 = vunpack.c.l.b16 %v1962
    %v2789 = vunpack.c.h.b16 %v1962
    %v2790 = vunpack.c.l.b16 %v1963
    %v2791 = vunpack.c.l.b16 %v1964
    %v2792 = vunpack.c.h.b16 %v1964
    %v2793 = vunpack.c.l.b16 %v1965
    %v2794 = vunpack.c.l.b16 %v1966
    %v2795 = vunpack.c.h.b16 %v1966
    %v2796 = vunpack.c.l.b16 %v1967
    %v2797 = vunpack.c.l.b16 %v1968
    %v2798 = vunpack.c.h.b16 %v1968
    %v2799 = vunpack.c.l.b16 %v1969
    %v2800 = vunpack.c.l.b16 %v1970
    %v2801 = vunpack.c.h.b16 %v1970
    %v2802 = vunpack.c.l.b16 %v1971
    %v2803 = vunpack.c.l.b16 %v1972
    %v2804 = vunpack.c.h.b16 %v1972
    %v2805 = vunpack.c.l.b16 %v1973
    %v2806 = vunpack.c.l.b16 %v1974
    %v2807 = vunpack.c.h.b16 %v1974
    %v2808 = vunpack.c.l.b16 %v1975
    %v2809 = vunpack.c.l.b16 %v1976
    %v2810 = vunpack.c.h.b16 %v1976
    %v2811 = vunpack.c.l.b16 %v1977
    %v2812 = vunpack.c.l.b16 %v1978
    %v2813 = vunpack.c.h.b16 %v1978
    %v2814 = vunpack.c.l.b16 %v1979
    %v2815 = vunpack.c.l.b16 %v1980
    %v2816 = vunpack.c.h.b16 %v1980
    %v2817 = vunpack.c.l.b16 %v1981
    %v2818 = vunpack.c.l.b16 %v1982
    %v2819 = vunpack.c.h.b16 %v1982
    %v2820 = vunpack.c.l.b16 %v1983
    %v2821 = vunpack.c.l.b16 %v1984
    %v2822 = vunpack.c.h.b16 %v1984
    %v2823 = vunpack.c.l.b16 %v1985
    %v2824 = vunpack.c.l.b16 %v1986
    %v2825 = vunpack.c.h.b16 %v1986
    %v2826 = vunpack.c.l.b16 %v1987
    %v2827 = vunpack.c.l.b16 %v1988
    %v2828 = vunpack.c.h.b16 %v1988
    %v2829 = vunpack.c.l.b16 %v1989
    %v2830 = vunpack.c.l.b16 %v1990
    %v2831 = vunpack.c.h.b16 %v1990
    %v2832 = vunpack.c.l.b16 %v1991
    %v2833 = vunpack.c.l.b16 %v1992
    %v2834 = vunpack.c.h.b16 %v1992
    %v2835 = vunpack.c.l.b16 %v1993
    %v2836 = vunpack.c.l.b16 %v1994
    %v2837 = vunpack.c.h.b16 %v1994
    %v2838 = vunpack.c.l.b16 %v1995
    %v2839 = vunpack.c.l.b16 %v1996
    %v2840 = vunpack.c.h.b16 %v1996
    %v2841 = vunpack.c.l.b16 %v1997
    %v2842 = vunpack.c.l.b16 %v1998
    %v2843 = vunpack.c.h.b16 %v1998
    %v2844 = vunpack.c.l.b16 %v1999
    %v2845 = vunpack.c.l.b16 %v2000
    %v2846 = vunpack.c.h.b16 %v2000
    %v2847 = vunpack.c.l.b16 %v2001
    %v2848 = vunpack.c.l.b16 %v2002
    %v2849 = vunpack.c.h.b16 %v2002
    %v2850 = vunpack.c.l.b16 %v2003
    %v2851 = vunpack.c.l.b16 %v2004
    %v2852 = vunpack.c.h.b16 %v2004
    %v2853 = vunpack.c.l.b16 %v2005
    %v2854 = vunpack.c.l.b16 %v2006
    %v2855 = vunpack.c.h.b16 %v2006
    %v2856 = vunpack.c.l.b16 %v2007
    %v2857 = vunpack.c.l.b16 %v2008
    %v2858 = vunpack.c.h.b16 %v2008
    %v2859 = vunpack.c.l.b16 %v2009
    %v2860 = vunpack.c.l.b16 %v2010
    %v2861 = vunpack.c.h.b16 %v2010
    %v2862 = vunpack.c.l.b16 %v2011
    %v2863 = vunpack.c.l.b16 %v2012
    %v2864 = vunpack.c.h.b16 %v2012
    %v2865 = vunpack.c.l.b16 %v2013
    %v2866 = vunpack.c.l.b16 %v2014
    %v2867 = vunpack.c.h.b16 %v2014
    %v2868 = vunpack.c.l.b16 %v2015
    %v2869 = vunpack.c.l.b16 %v2016
    %v2870 = vunpack.c.h.b16 %v2016
    %v2871 = vunpack.c.l.b16 %v2017
    %v2872 = vunpack.c.l.b16 %v2018
    %v2873 = vunpack.c.h.b16 %v2018
    %v2874 = vunpack.c.l.b16 %v2019
    %v2875 = vunpack.c.l.b16 %v2020
    %v2876 = vunpack.c.h.b16 %v2020
    %v2877 = vunpack.c.l.b16 %v2021
    %v2878 = vunpack.c.l.b16 %v2022
    %v2879 = vunpack.c.h.b16 %v2022
    %v2880 = vunpack.c.l.b16 %v2023
    %v2881 = vunpack.c.l.b16 %v2024
    %v2882 = vunpack.c.h.b16 %v2024
    %v2883 = vunpack.c.l.b16 %v2025
    %v2884 = vunpack.c.l.b16 %v2026
    %v2885 = vunpack.c.h.b16 %v2026
    %v2886 = vunpack.c.l.b16 %v2027
    %v2887 = vunpack.c.l.b16 %v2028
    %v2888 = vunpack.c.h.b16 %v2028
    %v2889 = vunpack.c.l.b16 %v2029
    %v2890 = vunpack.c.l.b16 %v2030
    %v2891 = vunpack.c.h.b16 %v2030
    %v2892 = vunpack.c.l.b16 %v2031
    %v2893 = vunpack.c.l.b16 %v2032
    %v2894 = vunpack.c.h.b16 %v2032
    %v2895 = vunpack.c.l.b16 %v2033
    %v2896 = vunpack.c.l.b16 %v2034
    %v2897 = vunpack.c.h.b16 %v2034
    %v2898 = vunpack.c.l.b16 %v2035
    %v2899 = vunpack.c.l.b16 %v2036
    %v2900 = vunpack.c.h.b16 %v2036
    %v2901 = vunpack.c.l.b16 %v2037
    %v2902 = vunpack.c.l.b16 %v2038
    %v2903 = vunpack.c.h.b16 %v2038
    %v2904 = vunpack.c.l.b16 %v2039
    %v2905 = vunpack.c.l.b16 %v2040
    %v2906 = vunpack.c.h.b16 %v2040
    %v2907 = vunpack.c.l.b16 %v2041
    %v2908 = vunpack.c.l.b16 %v2042
    %v2909 = vunpack.c.h.b16 %v2042
    %v2910 = vunpack.c.l.b16 %v2043
    %v2911 = vunpack.c.l.b16 %v2044
    %v2912 = vunpack.c.h.b16 %v2044
    %v2913 = vunpack.c.l.b16 %v2045
    %v2914 = vunpack.c.l.b16 %v2046
    %v2915 = vunpack.c.h.b16 %v2046
    %v2916 = vunpack.c.l.b16 %v2047
    %v2917 = vunpack.c.l.b16 %v2048
    %v2918 = vunpack.c.h.b16 %v2048
    %v2919 = vunpack.c.l.b16 %v2049
    %v2920 = vunpack.c.l.b16 %v2050
    %v2921 = vunpack.c.h.b16 %v2050
    %v2922 = vunpack.c.l.b16 %v2051
    %v2923 = vunpack.c.l.b16 %v2052
    %v2924 = vunpack.c.h.b16 %v2052
    %v2925 = vunpack.c.l.b16 %v2053
    %v2926 = vunpack.c.l.b16 %v2054
    %v2927 = vunpack.c.h.b16 %v2054
    %v2928 = vunpack.c.l.b16 %v2055
    %v2929 = vunpack.c.l.b16 %v2056
    %v2930 = vunpack.c.h.b16 %v2056
    %v2931 = vunpack.c.l.b16 %v2057
    %v2932 = vunpack.c.l.b16 %v2058
    %v2933 = vunpack.c.h.b16 %v2058
    %v2934 = vunpack.c.l.b16 %v2059
    %v2935 = vunpack.c.l.b16 %v2060
    %v2936 = vunpack.c.h.b16 %v2060
    %v2937 = vunpack.c.l.b16 %v2061
    %v2938 = vunpack.c.l.b16 %v2062
    %v2939 = vunpack.c.h.b16 %v2062
    %v2940 = vunpack.c.l.b16 %v2063
    %v2941 = vunpack.c.l.b16 %v2064
    %v2942 = vunpack.c.h.b16 %v2064
    %v2943 = vunpack.c.l.b16 %v2065
    %v2944 = vunpack.c.l.b16 %v2066
    %v2945 = vunpack.c.h.b16 %v2066
    %v2946 = vunpack.c.l.b16 %v2067
    %v2947 = vunpack.c.l.b16 %v2068
    %v2948 = vunpack.c.h.b16 %v2068
    %v2949 = vunpack.c.l.b16 %v2069
    %v2950 = vunpack.c.l.b16 %v2070
    %v2951 = vunpack.c.h.b16 %v2070
    %v2952 = vunpack.c.l.b16 %v2071
    %v2953 = vunpack.c.l.b16 %v2072
    %v2954 = vunpack.c.h.b16 %v2072
    %v2955 = vunpack.c.l.b16 %v2073
    %v2956 = vunpack.c.l.b16 %v2074
    %v2957 = vunpack.c.h.b16 %v2074
    %v2958 = vunpack.c.l.b16 %v2075
    %v2959 = vunpack.c.l.b16 %v2076
    %v2960 = vunpack.c.h.b16 %v2076
    %v2961 = vunpack.c.l.b16 %v2077
    %v2962 = vunpack.c.l.b16 %v2078
    %v2963 = vunpack.c.h.b16 %v2078
    %v2964 = vunpack.c.l.b16 %v2079
    %v2965 = vunpack.c.l.b16 %v2080
    %v2966 = vunpack.c.h.b16 %v2080
    %v2967 = vunpack.c.l.b16 %v2081
    %v2968 = vunpack.c.l.b16 %v2082
    %v2969 = vunpack.c.h.b16 %v2082
    %v2970 = vunpack.c.l.b16 %v2083
    %v2971 = vunpack.c.l.b16 %v2084
    %v2972 = vunpack.c.h.b16 %v2084
    %v2973 = vunpack.c.l.b16 %v2085
    %v2974 = vunpack.c.l.b16 %v2086
    %v2975 = vunpack.c.h.b16 %v2086
    %v2976 = vunpack.c.l.b16 %v2087
    %v2977 = vunpack.c.l.b16 %v2088
    %v2978 = vunpack.c.h.b16 %v2088
    %v2979 = vunpack.c.l.b16 %v2089
    %v2980 = vunpack.c.l.b16 %v2090
    %v2981 = vunpack.c.h.b16 %v2090
    %v2982 = vunpack.c.l.b16 %v2091
    %v2983 = vunpack.c.l.b16 %v2092
    %v2984 = vunpack.c.h.b16 %v2092
    %v2985 = vunpack.c.l.b16 %v2093
    %v2986 = vunpack.c.l.b16 %v2094
    %v2987 = vunpack.c.h.b16 %v2094
    %v2988 = vunpack.c.l.b16 %v2095
    %v2989 = vunpack.c.l.b16 %v2096
    %v2990 = vunpack.c.h.b16 %v2096
    %v2991 = vunpack.c.l.b16 %v2097
    %v2992 = vunpack.c.l.b16 %v2098
    %v2993 = vunpack.c.h.b16 %v2098
    %v2994 = vunpack.c.l.b16 %v2099
    %v2995 = vunpack.c.l.b16 %v2100
    %v2996 = vunpack.c.h.b16 %v2100
    %v2997 = vunpack.c.l.b16 %v2101
    %v2998 = vunpack.c.l.b16 %v2102
    %v2999 = vunpack.c.h.b16 %v2102
    %v3000 = vunpack.c.l.b16 %v2103
    %v3001 = vunpack.c.l.b16 %v2104
    %v3002 = vunpack.c.h.b16 %v2104
    %v3003 = vunpack.c.l.b16 %v2105
    %v3004 = vunpack.c.l.b16 %v2106
    %v3005 = vunpack.c.h.b16 %v2106
    %v3006 = vunpack.c.l.b16 %v2107
    %v3007 = vunpack.c.l.b16 %v2108
    %v3008 = vunpack.c.h.b16 %v2108
    %v3009 = vunpack.c.l.b16 %v2109
    %v3010 = vunpack.c.l.b16 %v2110
    %v3011 = vunpack.c.h.b16 %v2110
    %v3012 = vunpack.c.l.b16 %v2111
    %v3013 = vunpack.c.l.b16 %v2112
    %v3014 = vunpack.c.h.b16 %v2112
    %v3015 = vunpack.c.l.b16 %v2113
    %v3016 = vunpack.c.l.b16 %v2114
    %v3017 = vunpack.c.h.b16 %v2114
    %v3018 = vunpack.c.l.b16 %v2115
    %v3019 = vunpack.c.l.b16 %v2116
    %v3020 = vunpack.c.h.b16 %v2116
    %v3021 = vunpack.c.l.b16 %v2117
    %v3022 = vunpack.c.l.b16 %v2118
    %v3023 = vunpack.c.h.b16 %v2118
    %v3024 = vunpack.c.l.b16 %v2119
    %v3025 = vunpack.c.l.b16 %v2120
    %v3026 = vunpack.c.h.b16 %v2120
    %v3027 = vunpack.c.l.b16 %v2121
    %v3028 = vunpack.c.l.b16 %v2122
    %v3029 = vunpack.c.h.b16 %v2122
    %v3030 = vunpack.c.l.b16 %v2123
    %v3031 = vunpack.c.l.b16 %v2124
    %v3032 = vunpack.c.h.b16 %v2124
    %v3033 = vunpack.c.l.b16 %v2125
    %v3034 = vunpack.c.l.b16 %v2126
    %v3035 = vunpack.c.h.b16 %v2126
    %v3036 = vunpack.c.l.b16 %v2127
    %v3037 = vunpack.c.l.b16 %v2128
    %v3038 = vunpack.c.h.b16 %v2128
    %v3039 = vunpack.c.l.b16 %v2129
    %v3040 = vunpack.c.l.b16 %v2130
    %v3041 = vunpack.c.h.b16 %v2130
    %v3042 = vunpack.c.l.b16 %v2131
    %v3043 = vunpack.c.l.b16 %v2132
    %v3044 = vunpack.c.h.b16 %v2132
    %v3045 = vunpack.c.l.b16 %v2133
    %v3046 = vunpack.c.l.b16 %v2134
    %v3047 = vunpack.c.h.b16 %v2134
    %v3048 = vunpack.c.l.b16 %v2135
    %v3049 = vunpack.c.l.b16 %v2136
    %v3050 = vunpack.c.h.b16 %v2136
    %v3051 = vunpack.c.l.b16 %v2137
    %v3052 = vunpack.c.l.b16 %v2138
    %v3053 = vunpack.c.h.b16 %v2138
    %v3054 = vunpack.c.l.b16 %v2139
    %v3055 = vunpack.c.l.b16 %v2140
    %v3056 = vunpack.c.h.b16 %v2140
    %v3057 = vunpack.c.l.b16 %v2141
    %v3058 = vunpack.c.l.b16 %v2142
    %v3059 = vunpack.c.h.b16 %v2142
    %v3060 = vunpack.c.l.b16 %v2143
    %v3061 = vunpack.c.l.b16 %v2144
    %v3062 = vunpack.c.h.b16 %v2144
    %v3063 = vunpack.c.l.b16 %v2145
    %v3064 = vunpack.c.l.b16 %v2146
    %v3065 = vunpack.c.h.b16 %v2146
    %v3066 = vunpack.c.l.b16 %v2147
    %v3067 = vunpack.c.l.b16 %v2148
    %v3068 = vunpack.c.h.b16 %v2148
    %v3069 = vunpack.c.l.b16 %v2149
    %v3070 = vunpack.c.l.b16 %v2150
    %v3071 = vunpack.c.h.b16 %v2150
    %v3072 = vunpack.c.l.b16 %v2151
    %v3073 = vunpack.c.l.b16 %v2152
    %v3074 = vunpack.c.h.b16 %v2152
    %v3075 = vunpack.c.l.b16 %v2153
    %v3076 = vunpack.c.l.b16 %v2154
    %v3077 = vunpack.c.h.b16 %v2154
    %v3078 = vunpack.c.l.b16 %v2155
    %v3079 = vunpack.c.l.b16 %v2156
    %v3080 = vunpack.c.h.b16 %v2156
    %v3081 = vunpack.c.l.b16 %v2157
    %v3082 = vunpack.c.l.b16 %v2158
    %v3083 = vunpack.c.h.b16 %v2158
    %v3084 = vunpack.c.l.b16 %v2159
    %v3085 = vunpack.c.l.b16 %v2160
    %v3086 = vunpack.c.h.b16 %v2160
    %v3087 = vunpack.c.l.b16 %v2161
    %v3088 = vunpack.c.l.b16 %v2162
    %v3089 = vunpack.c.h.b16 %v2162
    %v3090 = vunpack.c.l.b16 %v2163
    %v3091 = vunpack.c.l.b16 %v2164
    %v3092 = vunpack.c.h.b16 %v2164
    %v3093 = vunpack.c.l.b16 %v2165
    %v3094 = vunpack.c.l.b16 %v2166
    %v3095 = vunpack.c.h.b16 %v2166
    %v3096 = vunpack.c.l.b16 %v2167
    %v3097 = vunpack.c.l.b16 %v2168
    %v3098 = vunpack.c.h.b16 %v2168
    %v3099 = vunpack.c.l.b16 %v2169
    %v3100 = vunpack.c.l.b16 %v2170
    %v3101 = vunpack.c.h.b16 %v2170
    %v3102 = vunpack.c.l.b16 %v2171
    %v3103 = vunpack.c.l.b16 %v2172
    %v3104 = vunpack.c.h.b16 %v2172
    %v3105 = vunpack.c.l.b16 %v2173
    %v3106 = vunpack.c.l.b16 %v2174
    %v3107 = vunpack.c.h.b16 %v2174
    %v3108 = vunpack.c.l.b16 %v2175
    %v3109 = vunpack.c.l.b16 %v2176
    %v3110 = vunpack.c.h.b16 %v2176
    %v3111 = vunpack.c.l.b16 %v2177
    %v3112 = vunpack.c.l.b16 %v2178
    %v3113 = vunpack.c.h.b16 %v2178
    %v3114 = vunpack.c.l.b16 %v2179
    %v3115 = vunpack.c.l.b16 %v2180
    %v3116 = vunpack.c.h.b16 %v2180
    %v3117 = vunpack.c.l.b16 %v2181
    %v3118 = vunpack.c.l.b16 %v2182
    %v3119 = vunpack.c.h.b16 %v2182
    %v3120 = vunpack.c.l.b16 %v2183
    %v3121 = vunpack.c.l.b16 %v2184
    %v3122 = vunpack.c.h.b16 %v2184
    %v3123 = vunpack.c.l.b16 %v2185
    %v3124 = vunpack.c.l.b16 %v2186
    %v3125 = vunpack.c.h.b16 %v2186
    %v3126 = vunpack.c.l.b16 %v2187
    %v3127 = vunpack.c.l.b16 %v2188
    %v3128 = vunpack.c.h.b16 %v2188
    %v3129 = vunpack.c.l.b16 %v2189
    %v3130 = vunpack.c.l.b16 %v2190
    %v3131 = vunpack.c.h.b16 %v2190
    %v3132 = vunpack.c.l.b16 %v2191
    %v3133 = vunpack.c.l.b16 %v2192
    %v3134 = vunpack.c.h.b16 %v2192
    %v3135 = vunpack.c.l.b16 %v2193
    %v3136 = vunpack.c.l.b16 %v2194
    %v3137 = vunpack.c.h.b16 %v2194
    %v3138 = vunpack.c.l.b16 %v2195
    %v3139 = vunpack.c.l.b16 %v2196
    %v3140 = vunpack.c.h.b16 %v2196
    %v3141 = vunpack.c.l.b16 %v2197
    %v3142 = vunpack.c.l.b16 %v2198
    %v3143 = vunpack.c.h.b16 %v2198
    %v3144 = vunpack.c.l.b16 %v2199
    %v3145 = vunpack.c.l.b16 %v2200
    %v3146 = vunpack.c.h.b16 %v2200
    %v3147 = vunpack.c.l.b16 %v2201
    %v3148 = vunpack.c.l.b16 %v2202
    %v3149 = vunpack.c.h.b16 %v2202
    %v3150 = vunpack.c.l.b16 %v2203
    %v3151 = vunpack.c.l.b16 %v2204
    %v3152 = vunpack.c.h.b16 %v2204
    %v3153 = vunpack.c.l.b16 %v2205
    %v3154 = vunpack.c.l.b16 %v2206
    %v3155 = vunpack.c.h.b16 %v2206
    %v3156 = vunpack.c.l.b16 %v2207
    %v3157 = vunpack.c.l.b16 %v2208
    %v3158 = vunpack.c.h.b16 %v2208
    %v3159 = vunpack.c.l.b16 %v2209
    %v3160 = vunpack.c.l.b16 %v2210
    %v3161 = vunpack.c.h.b16 %v2210
    %v3162 = vunpack.c.l.b16 %v2211
    %v3163 = vunpack.c.l.b16 %v2212
    %v3164 = vunpack.c.h.b16 %v2212
    %v3165 = vunpack.c.l.b16 %v2213
    %v3166 = vunpack.c.l.b16 %v2214
    %v3167 = vunpack.c.h.b16 %v2214
    %v3168 = vunpack.c.l.b16 %v2215
    %v3169 = vunpack.c.l.b16 %v2216
    %v3170 = vunpack.c.h.b16 %v2216
    %v3171 = vunpack.c.l.b16 %v2217
    %v3172 = vunpack.c.l.b16 %v2218
    %v3173 = vunpack.c.h.b16 %v2218
    %v3174 = vunpack.c.l.b16 %v2219
    %v3175 = vunpack.c.l.b16 %v2220
    %v3176 = vunpack.c.h.b16 %v2220
    %v3177 = vunpack.c.l.b16 %v2221
    %v3178 = vunpack.c.l.b16 %v2222
    %v3179 = vunpack.c.h.b16 %v2222
    %v3180 = vunpack.c.l.b16 %v2223
    %v3181 = vunpack.c.l.b16 %v2224
    %v3182 = vunpack.c.h.b16 %v2224
    %v3183 = vunpack.c.l.b16 %v2225
    %v3184 = vunpack.c.l.b16 %v2226
    %v3185 = vunpack.c.h.b16 %v2226
    %v3186 = vunpack.c.l.b16 %v2227
    %v3187 = vunpack.c.l.b16 %v2228
    %v3188 = vunpack.c.h.b16 %v2228
    %v3189 = vunpack.c.l.b16 %v2229
    %v3190 = vpack.c.b16 %v2617, %v2614
    %v3191 = vpack.c.b16 %v2618, %v2615
    %v3192 = vpack.c.b16 %v2619, %v2616
    %v3193 = vpack.c.b16 %v2623, %v2620
    %v3194 = vpack.c.b16 %v2624, %v2621
    %v3195 = vpack.c.b16 %v2625, %v2622
    %v3196 = vpack.c.b16 %v2629, %v2626
    %v3197 = vpack.c.b16 %v2630, %v2627
    %v3198 = vpack.c.b16 %v2631, %v2628
    %v3199 = vpack.c.b16 %v2635, %v2632
    %v3200 = vpack.c.b16 %v2636, %v2633
    %v3201 = vpack.c.b16 %v2637, %v2634
    %v3202 = vpack.c.b16 %v2641, %v2638
    %v3203 = vpack.c.b16 %v2642, %v2639
    %v3204 = vpack.c.b16 %v2643, %v2640
    %v3205 = vpack.c.b16 %v2647, %v2644
    %v3206 = vpack.c.b16 %v2648, %v2645
    %v3207 = vpack.c.b16 %v2649, %v2646
    %v3208 = vpack.c.b16 %v2653, %v2650
    %v3209 = vpack.c.b16 %v2654, %v2651
    %v3210 = vpack.c.b16 %v2655, %v2652
    %v3211 = vpack.c.b16 %v2659, %v2656
    %v3212 = vpack.c.b16 %v2660, %v2657
    %v3213 = vpack.c.b16 %v2661, %v2658
    %v3214 = vpack.c.b16 %v2665, %v2662
    %v3215 = vpack.c.b16 %v2666, %v2663
    %v3216 = vpack.c.b16 %v2667, %v2664
    %v3217 = vpack.c.b16 %v2671, %v2668
    %v3218 = vpack.c.b16 %v2672, %v2669
    %v3219 = vpack.c.b16 %v2673, %v2670
    %v3220 = vpack.c.b16 %v2677, %v2674
    %v3221 = vpack.c.b16 %v2678, %v2675
    %v3222 = vpack.c.b16 %v2679, %v2676
    %v3223 = vpack.c.b16 %v2683, %v2680
    %v3224 = vpack.c.b16 %v2684, %v2681
    %v3225 = vpack.c.b16 %v2685, %v2682
    %v3226 = vpack.c.b16 %v2689, %v2686
    %v3227 = vpack.c.b16 %v2690, %v2687
    %v3228 = vpack.c.b16 %v2691, %v2688
    %v3229 = vpack.c.b16 %v2695, %v2692
    %v3230 = vpack.c.b16 %v2696, %v2693
    %v3231 = vpack.c.b16 %v2697, %v2694
    %v3232 = vpack.c.b16 %v2701, %v2698
    %v3233 = vpack.c.b16 %v2702, %v2699
    %v3234 = vpack.c.b16 %v2703, %v2700
    %v3235 = vpack.c.b16 %v2707, %v2704
    %v3236 = vpack.c.b16 %v2708, %v2705
    %v3237 = vpack.c.b16 %v2709, %v2706
    %v3238 = vpack.c.b16 %v2713, %v2710
    %v3239 = vpack.c.b16 %v2714, %v2711
    %v3240 = vpack.c.b16 %v2715, %v2712
    %v3241 = vpack.c.b16 %v2719, %v2716
    %v3242 = vpack.c.b16 %v2720, %v2717
    %v3243 = vpack.c.b16 %v2721, %v2718
    %v3244 = vpack.c.b16 %v2725, %v2722
    %v3245 = vpack.c.b16 %v2726, %v2723
    %v3246 = vpack.c.b16 %v2727, %v2724
    %v3247 = vpack.c.b16 %v2731, %v2728
    %v3248 = vpack.c.b16 %v2732, %v2729
    %v3249 = vpack.c.b16 %v2733, %v2730
    %v3250 = vpack.c.b16 %v2737, %v2734
    %v3251 = vpack.c.b16 %v2738, %v2735
    %v3252 = vpack.c.b16 %v2739, %v2736
    %v3253 = vpack.c.b16 %v2743, %v2740
    %v3254 = vpack.c.b16 %v2744, %v2741
    %v3255 = vpack.c.b16 %v2745, %v2742
    %v3256 = vpack.c.b16 %v2749, %v2746
    %v3257 = vpack.c.b16 %v2750, %v2747
    %v3258 = vpack.c.b16 %v2751, %v2748
    %v3259 = vpack.c.b16 %v2755, %v2752
    %v3260 = vpack.c.b16 %v2756, %v2753
    %v3261 = vpack.c.b16 %v2757, %v2754
    %v3262 = vpack.c.b16 %v2761, %v2758
    %v3263 = vpack.c.b16 %v2762, %v2759
    %v3264 = vpack.c.b16 %v2763, %v2760
    %v3265 = vpack.c.b16 %v2767, %v2764
    %v3266 = vpack.c.b16 %v2768, %v2765
    %v3267 = vpack.c.b16 %v2769, %v2766
    %v3268 = vpack.c.b16 %v2773, %v2770
    %v3269 = vpack.c.b16 %v2774, %v2771
    %v3270 = vpack.c.b16 %v2775, %v2772
    %v3271 = vpack.c.b16 %v2779, %v2776
    %v3272 = vpack.c.b16 %v2780, %v2777
    %v3273 = vpack.c.b16 %v2781, %v2778
    %v3274 = vpack.c.b16 %v2785, %v2782
    %v3275 = vpack.c.b16 %v2786, %v2783
    %v3276 = vpack.c.b16 %v2787, %v2784
    %v3277 = vpack.c.b16 %v2791, %v2788
    %v3278 = vpack.c.b16 %v2792, %v2789
    %v3279 = vpack.c.b16 %v2793, %v2790
    %v3280 = vpack.c.b16 %v2797, %v2794
    %v3281 = vpack.c.b16 %v2798, %v2795
    %v3282 = vpack.c.b16 %v2799, %v2796
    %v3283 = vpack.c.b16 %v2803, %v2800
    %v3284 = vpack.c.b16 %v2804, %v2801
    %v3285 = vpack.c.b16 %v2805, %v2802
    %v3286 = vpack.c.b16 %v2809, %v2806
    %v3287 = vpack.c.b16 %v2810, %v2807
    %v3288 = vpack.c.b16 %v2811, %v2808
    %v3289 = vpack.c.b16 %v2815, %v2812
    %v3290 = vpack.c.b16 %v2816, %v2813
    %v3291 = vpack.c.b16 %v2817, %v2814
    %v3292 = vpack.c.b16 %v2821, %v2818
    %v3293 = vpack.c.b16 %v2822, %v2819
    %v3294 = vpack.c.b16 %v2823, %v2820
    %v3295 = vpack.c.b16 %v2827, %v2824
    %v3296 = vpack.c.b16 %v2828, %v2825
    %v3297 = vpack.c.b16 %v2829, %v2826
    %v3298 = vpack.c.b16 %v2833, %v2830
    %v3299 = vpack.c.b16 %v2834, %v2831
    %v3300 = vpack.c.b16 %v2835, %v2832
    %v3301 = vpack.c.b16 %v2839, %v2836
    %v3302 = vpack.c.b16 %v2840, %v2837
    %v3303 = vpack.c.b16 %v2841, %v2838
    %v3304 = vpack.c.b16 %v2845, %v2842
    %v3305 = vpack.c.b16 %v2846, %v2843
    %v3306 = vpack.c.b16 %v2847, %v2844
    %v3307 = vpack.c.b16 %v2851, %v2848
    %v3308 = vpack.c.b16 %v2852, %v2849
    %v3309 = vpack.c.b16 %v2853, %v2850
    %v3310 = vpack.c.b16 %v2857, %v2854
    %v3311 = vpack.c.b16 %v2858, %v2855
    %v3312 = vpack.c.b16 %v2859, %v2856
    %v3313 = vpack.c.b16 %v2863, %v2860
    %v3314 = vpack.c.b16 %v2864, %v2861
    %v3315 = vpack.c.b16 %v2865, %v2862
    %v3316 = vpack.c.b16 %v2869, %v2866
    %v3317 = vpack.c.b16 %v2870, %v2867
    %v3318 = vpack.c.b16 %v2871, %v2868
    %v3319 = vpack.c.b16 %v2875, %v2872
    %v3320 = vpack.c.b16 %v2876, %v2873
    %v3321 = vpack.c.b16 %v2877, %v2874
    %v3322 = vpack.c.b16 %v2881, %v2878
    %v3323 = vpack.c.b16 %v2882, %v2879
    %v3324 = vpack.c.b16 %v2883, %v2880
    %v3325 = vpack.c.b16 %v2887, %v2884
    %v3326 = vpack.c.b16 %v2888, %v2885
    %v3327 = vpack.c.b16 %v2889, %v2886
    %v3328 = vpack.c.b16 %v2893, %v2890
    %v3329 = vpack.c.b16 %v2894, %v2891
    %v3330 = vpack.c.b16 %v2895, %v2892
    %v3331 = vpack.c.b16 %v2899, %v2896
    %v3332 = vpack.c.b16 %v2900, %v2897
    %v3333 = vpack.c.b16 %v2901, %v2898
    %v3334 = vpack.c.b16 %v2905, %v2902
    %v3335 = vpack.c.b16 %v2906, %v2903
    %v3336 = vpack.c.b16 %v2907, %v2904
    %v3337 = vpack.c.b16 %v2911, %v2908
    %v3338 = vpack.c.b16 %v2912, %v2909
    %v3339 = vpack.c.b16 %v2913, %v2910
    %v3340 = vpack.c.b16 %v2917, %v2914
    %v3341 = vpack.c.b16 %v2918, %v2915
    %v3342 = vpack.c.b16 %v2919, %v2916
    %v3343 = vpack.c.b16 %v2923, %v2920
    %v3344 = vpack.c.b16 %v2924, %v2921
    %v3345 = vpack.c.b16 %v2925, %v2922
    %v3346 = vpack.c.b16 %v2929, %v2926
    %v3347 = vpack.c.b16 %v2930, %v2927
    %v3348 = vpack.c.b16 %v2931, %v2928
    %v3349 = vpack.c.b16 %v2935, %v2932
    %v3350 = vpack.c.b16 %v2936, %v2933
    %v3351 = vpack.c.b16 %v2937, %v2934
    %v3352 = vpack.c.b16 %v2941, %v2938
    %v3353 = vpack.c.b16 %v2942, %v2939
    %v3354 = vpack.c.b16 %v2943, %v2940
    %v3355 = vpack.c.b16 %v2947, %v2944
    %v3356 = vpack.c.b16 %v2948, %v2945
    %v3357 = vpack.c.b16 %v2949, %v2946
    %v3358 = vpack.c.b16 %v2953, %v2950
    %v3359 = vpack.c.b16 %v2954, %v2951
    %v3360 = vpack.c.b16 %v2955, %v2952
    %v3361 = vpack.c.b16 %v2959, %v2956
    %v3362 = vpack.c.b16 %v2960, %v2957
    %v3363 = vpack.c.b16 %v2961, %v2958
    %v3364 = vpack.c.b16 %v2965, %v2962
    %v3365 = vpack.c.b16 %v2966, %v2963
    %v3366 = vpack.c.b16 %v2967, %v2964
    %v3367 = vpack.c.b16 %v2971, %v2968
    %v3368 = vpack.c.b16 %v2972, %v2969
    %v3369 = vpack.c.b16 %v2973, %v2970
    %v3370 = vpack.c.b16 %v2977, %v2974
    %v3371 = vpack.c.b16 %v2978, %v2975
    %v3372 = vpack.c.b16 %v2979, %v2976
    %v3373 = vpack.c.b16 %v2983, %v2980
    %v3374 = vpack.c.b16 %v2984, %v2981
    %v3375 = vpack.c.b16 %v2985, %v2982
    %v3376 = vpack.c.b16 %v2989, %v2986
    %v3377 = vpack.c.b16 %v2990, %v2987
    %v3378 = vpack.c.b16 %v2991, %v2988
    %v3379 = vpack.c.b16 %v2995, %v2992
    %v3380 = vpack.c.b16 %v2996, %v2993
    %v3381 = vpack.c.b16 %v2997, %v2994
    %v3382 = vpack.c.b16 %v3001, %v2998
    %v3383 = vpack.c.b16 %v3002, %v2999
    %v3384 = vpack.c.b16 %v3003, %v3000
    %v3385 = vpack.c.b16 %v3007, %v3004
    %v3386 = vpack.c.b16 %v3008, %v3005
    %v3387 = vpack.c.b16 %v3009, %v3006
    %v3388 = vpack.c.b16 %v3013, %v3010
    %v3389 = vpack.c.b16 %v3014, %v3011
    %v3390 = vpack.c.b16 %v3015, %v3012
    %v3391 = vpack.c.b16 %v3019, %v3016
    %v3392 = vpack.c.b16 %v3020, %v3017
    %v3393 = vpack.c.b16 %v3021, %v3018
    %v3394 = vpack.c.b16 %v3025, %v3022
    %v3395 = vpack.c.b16 %v3026, %v3023
    %v3396 = vpack.c.b16 %v3027, %v3024
    %v3397 = vpack.c.b16 %v3031, %v3028
    %v3398 = vpack.c.b16 %v3032, %v3029
    %v3399 = vpack.c.b16 %v3033, %v3030
    %v3400 = vpack.c.b16 %v3037, %v3034
    %v3401 = vpack.c.b16 %v3038, %v3035
    %v3402 = vpack.c.b16 %v3039, %v3036
    %v3403 = vpack.c.b16 %v3043, %v3040
    %v3404 = vpack.c.b16 %v3044, %v3041
    %v3405 = vpack.c.b16 %v3045, %v3042
    %v3406 = vpack.c.b16 %v3049, %v3046
    %v3407 = vpack.c.b16 %v3050, %v3047
    %v3408 = vpack.c.b16 %v3051, %v3048
    %v3409 = vpack.c.b16 %v3055, %v3052
    %v3410 = vpack.c.b16 %v3056, %v3053
    %v3411 = vpack.c.b16 %v3057, %v3054
    %v3412 = vpack.c.b16 %v3061, %v3058
    %v3413 = vpack.c.b16 %v3062, %v3059
    %v3414 = vpack.c.b16 %v3063, %v3060
    %v3415 = vpack.c.b16 %v3067, %v3064
    %v3416 = vpack.c.b16 %v3068, %v3065
    %v3417 = vpack.c.b16 %v3069, %v3066
    %v3418 = vpack.c.b16 %v3073, %v3070
    %v3419 = vpack.c.b16 %v3074, %v3071
    %v3420 = vpack.c.b16 %v3075, %v3072
    %v3421 = vpack.c.b16 %v3079, %v3076
    %v3422 = vpack.c.b16 %v3080, %v3077
    %v3423 = vpack.c.b16 %v3081, %v3078
    %v3424 = vpack.c.b16 %v3085, %v3082
    %v3425 = vpack.c.b16 %v3086, %v3083
    %v3426 = vpack.c.b16 %v3087, %v3084
    %v3427 = vpack.c.b16 %v3091, %v3088
    %v3428 = vpack.c.b16 %v3092, %v3089
    %v3429 = vpack.c.b16 %v3093, %v3090
    %v3430 = vpack.c.b16 %v3097, %v3094
    %v3431 = vpack.c.b16 %v3098, %v3095
    %v3432 = vpack.c.b16 %v3099, %v3096
    %v3433 = vpack.c.b16 %v3103, %v3100
    %v3434 = vpack.c.b16 %v3104, %v3101
    %v3435 = vpack.c.b16 %v3105, %v3102
    %v3436 = vpack.c.b16 %v3109, %v3106
    %v3437 = vpack.c.b16 %v3110, %v3107
    %v3438 = vpack.c.b16 %v3111, %v3108
    %v3439 = vpack.c.b16 %v3115, %v3112
    %v3440 = vpack.c.b16 %v3116, %v3113
    %v3441 = vpack.c.b16 %v3117, %v3114
    %v3442 = vpack.c.b16 %v3121, %v3118
    %v3443 = vpack.c.b16 %v3122, %v3119
    %v3444 = vpack.c.b16 %v3123, %v3120
    %v3445 = vpack.c.b16 %v3127, %v3124
    %v3446 = vpack.c.b16 %v3128, %v3125
    %v3447 = vpack.c.b16 %v3129, %v3126
    %v3448 = vpack.c.b16 %v3133, %v3130
    %v3449 = vpack.c.b16 %v3134, %v3131
    %v3450 = vpack.c.b16 %v3135, %v3132
    %v3451 = vpack.c.b16 %v3139, %v3136
    %v3452 = vpack.c.b16 %v3140, %v3137
    %v3453 = vpack.c.b16 %v3141, %v3138
    %v3454 = vpack.c.b16 %v3145, %v3142
    %v3455 = vpack.c.b16 %v3146, %v3143
    %v3456 = vpack.c.b16 %v3147, %v3144
    %v3457 = vpack.c.b16 %v3151, %v3148
    %v3458 = vpack.c.b16 %v3152, %v3149
    %v3459 = vpack.c.b16 %v3153, %v3150
    %v3460 = vpack.c.b16 %v3157, %v3154
    %v3461 = vpack.c.b16 %v3158, %v3155
    %v3462 = vpack.c.b16 %v3159, %v3156
    %v3463 = vpack.c.b16 %v3163, %v3160
    %v3464 = vpack.c.b16 %v3164, %v3161
    %v3465 = vpack.c.b16 %v3165, %v3162
    %v3466 = vpack.c.b16 %v3169, %v3166
    %v3467 = vpack.c.b16 %v3170, %v3167
    %v3468 = vpack.c.b16 %v3171, %v3168
    %v3469 = vpack.c.b16 %v3175, %v3172
    %v3470 = vpack.c.b16 %v3176, %v3173
    %v3471 = vpack.c.b16 %v3177, %v3174
    %v3472 = vpack.c.b16 %v3181, %v3178
    %v3473 = vpack.c.b16 %v3182, %v3179
    %v3474 = vpack.c.b16 %v3183, %v3180
    %v3475 = vpack.c.b16 %v3187, %v3184
    %v3476 = vpack.c.b16 %v3188, %v3185
    %v3477 = vpack.c.b16 %v3189, %v3186
    %3766 = vmatprep.subr.bf16.mxu0 %v3191
    %3767 = vmatpush1.bf16.msra.mxu0 %v3190
    %3768 = vmatprep.subr.bf16.mxu0 %v3194
    %3769 = vmatpush1.bf16.msra.mxu0 %v3193
    %3770 = vmatprep.subr.bf16.mxu0 %v3197
    %3771 = vmatpush1.bf16.msra.mxu0 %v3196
    %3772 = vmatprep.subr.bf16.mxu0 %v3200
    %3773 = vmatpush1.bf16.msra.mxu0 %v3199
    %3774 = vmatprep.subr.bf16.mxu0 %v3203
    %3775 = vmatpush1.bf16.msra.mxu0 %v3202
    %3776 = vmatprep.subr.bf16.mxu0 %v3206
    %3777 = vmatpush1.bf16.msra.mxu0 %v3205
    %3778 = vmatprep.subr.bf16.mxu0 %v3209
    %3779 = vmatpush1.bf16.msra.mxu0 %v3208
    %3780 = vmatprep.subr.bf16.mxu0 %v3212
    %3781 = vmatpush1.bf16.msra.mxu0 %v3211
    %3782 = vmatprep.subr.bf16.mxu0 %v3215
    %3783 = vmatpush1.bf16.msra.mxu0 %v3214
    %3784 = vmatprep.subr.bf16.mxu0 %v3218
    %3785 = vmatpush1.bf16.msra.mxu0 %v3217
    %3786 = vmatprep.subr.bf16.mxu0 %v3221
    %3787 = vmatpush1.bf16.msra.mxu0 %v3220
    %3788 = vmatprep.subr.bf16.mxu0 %v3224
    %3789 = vmatpush1.bf16.msra.mxu0 %v3223
    %3790 = vmatprep.subr.bf16.mxu0 %v3227
    %3791 = vmatpush1.bf16.msra.mxu0 %v3226
    %3792 = vmatprep.subr.bf16.mxu0 %v3230
    %3793 = vmatpush1.bf16.msra.mxu0 %v3229
    %3794 = vmatprep.subr.bf16.mxu0 %v3233
    %3795 = vmatpush1.bf16.msra.mxu0 %v3232
    %3796 = vmatprep.subr.bf16.mxu0 %v3236
    %3797 = vmatpush1.bf16.msra.mxu0 %v3235
    %3798 = vmatprep.mubr.bf16.mxu0 %v1743
    %3799 = vmatmul.mubr.bf16.gmra.mrb[0].mxu0 %v1742
    %v3800 = vpop.f32.mrb[0].mxu0
    %v3801 = vadd.f32 0.0, %v3800
    %v3802 = vpop.f32.mrb[0].mxu0
    %v3803 = vadd.f32 0.0, %v3802
    %v3804 = vpop.f32.mrb[0].mxu0
    %v3805 = vadd.f32 0.0, %v3804
    %v3806 = vpop.f32.mrb[0].mxu0
    %v3807 = vadd.f32 0.0, %v3806
    %3808 = vmatprep.mubr.bf16.mxu0 %v1747
    %3809 = vmatmul.mubr.bf16.gmra.mrb[0].mxu0 %v1746
    %v3810 = vpop.f32.mrb[0].mxu0
    %v3811 = vadd.f32 0.0, %v3810
    %v3812 = vpop.f32.mrb[0].mxu0
    %v3813 = vadd.f32 0.0, %v3812
    %v3814 = vpop.f32.mrb[0].mxu0
    %v3815 = vpop.f32.mrb[0].mxu0
    %3816 = vdwg.mxu0
    %3817 = vmatprep.subr.bf16.mxu0 %v3239
    %3818 = vmatpush1.bf16.msra.mxu0 %v3238
    %3819 = vmatprep.subr.bf16.mxu0 %v3242
    %3820 = vmatpush1.bf16.msra.mxu0 %v3241
    %3821 = vmatprep.subr.bf16.mxu0 %v3245
    %3822 = vmatpush1.bf16.msra.mxu0 %v3244
    %3823 = vmatprep.subr.bf16.mxu0 %v3248
    %3824 = vmatpush1.bf16.msra.mxu0 %v3247
    %3825 = vmatprep.subr.bf16.mxu0 %v3251
    %3826 = vmatpush1.bf16.msra.mxu0 %v3250
    %3827 = vmatprep.subr.bf16.mxu0 %v3254
    %3828 = vmatpush1.bf16.msra.mxu0 %v3253
    %3829 = vmatprep.subr.bf16.mxu0 %v3257
    %3830 = vmatpush1.bf16.msra.mxu0 %v3256
    %3831 = vmatprep.subr.bf16.mxu0 %v3260
    %3832 = vmatpush1.bf16.msra.mxu0 %v3259
    %3833 = vmatprep.subr.bf16.mxu0 %v3263
    %3834 = vmatpush1.bf16.msra.mxu0 %v3262
    %3835 = vmatprep.subr.bf16.mxu0 %v3266
    %3836 = vmatpush1.bf16.msra.mxu0 %v3265
    %3837 = vmatprep.subr.bf16.mxu0 %v3269
    %3838 = vmatpush1.bf16.msra.mxu0 %v3268
    %3839 = vmatprep.subr.bf16.mxu0 %v3272
    %3840 = vmatpush1.bf16.msra.mxu0 %v3271
    %3841 = vmatprep.subr.bf16.mxu0 %v3275
    %3842 = vmatpush1.bf16.msra.mxu0 %v3274
    %3843 = vmatprep.subr.bf16.mxu0 %v3278
    %3844 = vmatpush1.bf16.msra.mxu0 %v3277
    %3845 = vmatprep.subr.bf16.mxu0 %v3281
    %3846 = vmatpush1.bf16.msra.mxu0 %v3280
    %3847 = vmatprep.subr.bf16.mxu0 %v3284
    %3848 = vmatpush1.bf16.msra.mxu0 %v3283
    %3849 = vmatprep.mubr.bf16.mxu0 %v1745
    %3850 = vmatmul.mubr.bf16.gmra.mrb[0].mxu0 %v1744
    %v3851 = vpop.f32.mrb[0].mxu0
    %v3852 = vadd.f32 %v3801, %v3851
    %v3853 = vpop.f32.mrb[0].mxu0
    %v3854 = vadd.f32 %v3803, %v3853
    %v3855 = vpop.f32.mrb[0].mxu0
    %v3856 = vadd.f32 %v3805, %v3855
    %v3857 = vpop.f32.mrb[0].mxu0
    %v3858 = vadd.f32 %v3807, %v3857
    %3859 = vmatprep.mubr.bf16.mxu0 %v1749
    %3860 = vmatmul.mubr.bf16.gmra.mrb[0].mxu0 %v1748
    %v3861 = vpop.f32.mrb[0].mxu0
    %v3862 = vadd.f32 %v3811, %v3861
    %v3863 = vpop.f32.mrb[0].mxu0
    %v3864 = vadd.f32 %v3813, %v3863
    %v3865 = vpop.f32.mrb[0].mxu0
    %v3866 = vpop.f32.mrb[0].mxu0
    %3867 = vdwg.mxu0
    %3868 = vmatprep.subr.bf16.mxu0 %v3287
    %3869 = vmatpush1.bf16.msra.mxu0 %v3286
    %3870 = vmatprep.subr.bf16.mxu0 %v3290
    %3871 = vmatpush1.bf16.msra.mxu0 %v3289
    %3872 = vmatprep.subr.bf16.mxu0 %v3293
    %3873 = vmatpush1.bf16.msra.mxu0 %v3292
    %3874 = vmatprep.subr.bf16.mxu0 %v3296
    %3875 = vmatpush1.bf16.msra.mxu0 %v3295
    %3876 = vmatprep.subr.bf16.mxu0 %v3299
    %3877 = vmatpush1.bf16.msra.mxu0 %v3298
    %3878 = vmatprep.subr.bf16.mxu0 %v3302
    %3879 = vmatpush1.bf16.msra.mxu0 %v3301
    %3880 = vmatprep.subr.bf16.mxu0 %v3305
    %3881 = vmatpush1.bf16.msra.mxu0 %v3304
    %3882 = vmatprep.subr.bf16.mxu0 %v3308
    %3883 = vmatpush1.bf16.msra.mxu0 %v3307
    %3884 = vmatprep.subr.bf16.mxu0 %v3311
    %3885 = vmatpush1.bf16.msra.mxu0 %v3310
    %3886 = vmatprep.subr.bf16.mxu0 %v3314
    %3887 = vmatpush1.bf16.msra.mxu0 %v3313
    %3888 = vmatprep.subr.bf16.mxu0 %v3317
    %3889 = vmatpush1.bf16.msra.mxu0 %v3316
    %3890 = vmatprep.subr.bf16.mxu0 %v3320
    %3891 = vmatpush1.bf16.msra.mxu0 %v3319
    %3892 = vmatprep.subr.bf16.mxu0 %v3323
    %3893 = vmatpush1.bf16.msra.mxu0 %v3322
    %3894 = vmatprep.subr.bf16.mxu0 %v3326
    %3895 = vmatpush1.bf16.msra.mxu0 %v3325
    %3896 = vmatprep.subr.bf16.mxu0 %v3329
    %3897 = vmatpush1.bf16.msra.mxu0 %v3328
    %3898 = vmatprep.subr.bf16.mxu0 %v3332
    %3899 = vmatpush1.bf16.msra.mxu0 %v3331
    %3900 = vmatprep.mubr.bf16.mxu0 %v1773
    %3901 = vmatmul.mubr.bf16.gmra.mrb[0].mxu0 %v1761
    %v3902 = vpop.f32.mrb[0].mxu0
    %v3903 = vadd.f32 %v3852, %v3902
    %v3904 = vpop.f32.mrb[0].mxu0
    %v3905 = vadd.f32 %v3854, %v3904
    %v3906 = vpop.f32.mrb[0].mxu0
    %v3907 = vadd.f32 %v3856, %v3906
    %v3908 = vpop.f32.mrb[0].mxu0
    %v3909 = vadd.f32 %v3858, %v3908
    %3910 = vmatprep.mubr.bf16.mxu0 %v1803
    %3911 = vmatmul.mubr.bf16.gmra.mrb[0].mxu0 %v1800
    %v3912 = vpop.f32.mrb[0].mxu0
    %v3913 = vadd.f32 %v3862, %v3912
    %v3914 = vpop.f32.mrb[0].mxu0
    %v3915 = vadd.f32 %v3864, %v3914
    %v3916 = vpop.f32.mrb[0].mxu0
    %v3917 = vpop.f32.mrb[0].mxu0
    %3918 = vdwg.mxu0
    %3919 = vmatprep.subr.bf16.mxu0 %v3335
    %3920 = vmatpush1.bf16.msra.mxu0 %v3334
    %3921 = vmatprep.subr.bf16.mxu0 %v3338
    %3922 = vmatpush1.bf16.msra.mxu0 %v3337
    %3923 = vmatprep.subr.bf16.mxu0 %v3341
    %3924 = vmatpush1.bf16.msra.mxu0 %v3340
    %3925 = vmatprep.subr.bf16.mxu0 %v3344
    %3926 = vmatpush1.bf16.msra.mxu0 %v3343
    %3927 = vmatprep.subr.bf16.mxu0 %v3347
    %3928 = vmatpush1.bf16.msra.mxu0 %v3346
    %3929 = vmatprep.subr.bf16.mxu0 %v3350
    %3930 = vmatpush1.bf16.msra.mxu0 %v3349
    %3931 = vmatprep.subr.bf16.mxu0 %v3353
    %3932 = vmatpush1.bf16.msra.mxu0 %v3352
    %3933 = vmatprep.subr.bf16.mxu0 %v3356
    %3934 = vmatpush1.bf16.msra.mxu0 %v3355
    %3935 = vmatprep.subr.bf16.mxu0 %v3359
    %3936 = vmatpush1.bf16.msra.mxu0 %v3358
    %3937 = vmatprep.subr.bf16.mxu0 %v3362
    %3938 = vmatpush1.bf16.msra.mxu0 %v3361
    %3939 = vmatprep.subr.bf16.mxu0 %v3365
    %3940 = vmatpush1.bf16.msra.mxu0 %v3364
    %3941 = vmatprep.subr.bf16.mxu0 %v3368
    %3942 = vmatpush1.bf16.msra.mxu0 %v3367
    %3943 = vmatprep.subr.bf16.mxu0 %v3371
    %3944 = vmatpush1.bf16.msra.mxu0 %v3370
    %3945 = vmatprep.subr.bf16.mxu0 %v3374
    %3946 = vmatpush1.bf16.msra.mxu0 %v3373
    %3947 = vmatprep.subr.bf16.mxu0 %v3377
    %3948 = vmatpush1.bf16.msra.mxu0 %v3376
    %3949 = vmatprep.subr.bf16.mxu0 %v3380
    %3950 = vmatpush1.bf16.msra.mxu0 %v3379
    %3951 = vmatprep.mubr.bf16.mxu0 %v1797
    %3952 = vmatmul.mubr.bf16.gmra.mrb[0].mxu0 %v1785
    %v3953 = vpop.f32.mrb[0].mxu0
    %v3954 = vadd.f32 %v3903, %v3953
    %v3955 = vpop.f32.mrb[0].mxu0
    %v3956 = vadd.f32 %v3905, %v3955
    %v3957 = vpop.f32.mrb[0].mxu0
    %v3958 = vadd.f32 %v3907, %v3957
    %v3959 = vpop.f32.mrb[0].mxu0
    %v3960 = vadd.f32 %v3909, %v3959
    %3961 = vmatprep.mubr.bf16.mxu0 %v1809
    %3962 = vmatmul.mubr.bf16.gmra.mrb[0].mxu0 %v1806
    %v3963 = vpop.f32.mrb[0].mxu0
    %v3964 = vadd.f32 %v3913, %v3963
    %v3965 = vpop.f32.mrb[0].mxu0
    %v3966 = vadd.f32 %v3915, %v3965
    %v3967 = vpop.f32.mrb[0].mxu0
    %v3968 = vpop.f32.mrb[0].mxu0
    %3969 = vdwg.mxu0
    %3970 = vmatprep.subr.bf16.mxu0 %v3383
    %3971 = vmatpush1.bf16.msra.mxu0 %v3382
    %3972 = vmatprep.subr.bf16.mxu0 %v3386
    %3973 = vmatpush1.bf16.msra.mxu0 %v3385
    %3974 = vmatprep.subr.bf16.mxu0 %v3389
    %3975 = vmatpush1.bf16.msra.mxu0 %v3388
    %3976 = vmatprep.subr.bf16.mxu0 %v3392
    %3977 = vmatpush1.bf16.msra.mxu0 %v3391
    %3978 = vmatprep.subr.bf16.mxu0 %v3395
    %3979 = vmatpush1.bf16.msra.mxu0 %v3394
    %3980 = vmatprep.subr.bf16.mxu0 %v3398
    %3981 = vmatpush1.bf16.msra.mxu0 %v3397
    %3982 = vmatprep.subr.bf16.mxu0 %v3401
    %3983 = vmatpush1.bf16.msra.mxu0 %v3400
    %3984 = vmatprep.subr.bf16.mxu0 %v3404
    %3985 = vmatpush1.bf16.msra.mxu0 %v3403
    %3986 = vmatprep.subr.bf16.mxu0 %v3407
    %3987 = vmatpush1.bf16.msra.mxu0 %v3406
    %3988 = vmatprep.subr.bf16.mxu0 %v3410
    %3989 = vmatpush1.bf16.msra.mxu0 %v3409
    %3990 = vmatprep.subr.bf16.mxu0 %v3413
    %3991 = vmatpush1.bf16.msra.mxu0 %v3412
    %3992 = vmatprep.subr.bf16.mxu0 %v3416
    %3993 = vmatpush1.bf16.msra.mxu0 %v3415
    %3994 = vmatprep.subr.bf16.mxu0 %v3419
    %3995 = vmatpush1.bf16.msra.mxu0 %v3418
    %3996 = vmatprep.subr.bf16.mxu0 %v3422
    %3997 = vmatpush1.bf16.msra.mxu0 %v3421
    %3998 = vmatprep.subr.bf16.mxu0 %v3425
    %3999 = vmatpush1.bf16.msra.mxu0 %v3424
    %4000 = vmatprep.subr.bf16.mxu0 %v3428
    %4001 = vmatpush1.bf16.msra.mxu0 %v3427
    %4002 = vmatprep.mubr.bf16.mxu0 %v1831
    %4003 = vmatmul.mubr.bf16.gmra.mrb[0].mxu0 %v1828
    %v4004 = vpop.f32.mrb[0].mxu0
    %v4005 = vadd.f32 %v3954, %v4004
    %v4006 = vpop.f32.mrb[0].mxu0
    %v4007 = vadd.f32 %v3956, %v4006
    %v4008 = vpop.f32.mrb[0].mxu0
    %v4009 = vadd.f32 %v3958, %v4008
    %v4010 = vpop.f32.mrb[0].mxu0
    %v4011 = vadd.f32 %v3960, %v4010
    %4012 = vmatprep.mubr.bf16.mxu0 %v1830
    %4013 = vmatmul.mubr.bf16.gmra.mrb[0].mxu0 %v1827
    %v4014 = vpop.f32.mrb[0].mxu0
    %v4015 = vadd.f32 %v3964, %v4014
    %v4016 = vpop.f32.mrb[0].mxu0
    %v4017 = vadd.f32 %v3966, %v4016
    %v4018 = vpop.f32.mrb[0].mxu0
    %v4019 = vpop.f32.mrb[0].mxu0
    %4020 = vdwg.mxu0
    %4021 = vmatprep.subr.bf16.mxu0 %v3431
    %4022 = vmatpush1.bf16.msra.mxu0 %v3430
    %4023 = vmatprep.subr.bf16.mxu0 %v3434
    %4024 = vmatpush1.bf16.msra.mxu0 %v3433
    %4025 = vmatprep.subr.bf16.mxu0 %v3437
    %4026 = vmatpush1.bf16.msra.mxu0 %v3436
    %4027 = vmatprep.subr.bf16.mxu0 %v3440
    %4028 = vmatpush1.bf16.msra.mxu0 %v3439
    %4029 = vmatprep.subr.bf16.mxu0 %v3443
    %4030 = vmatpush1.bf16.msra.mxu0 %v3442
    %4031 = vmatprep.subr.bf16.mxu0 %v3446
    %4032 = vmatpush1.bf16.msra.mxu0 %v3445
    %4033 = vmatprep.subr.bf16.mxu0 %v3449
    %4034 = vmatpush1.bf16.msra.mxu0 %v3448
    %4035 = vmatprep.subr.bf16.mxu0 %v3452
    %4036 = vmatpush1.bf16.msra.mxu0 %v3451
    %4037 = vmatprep.subr.bf16.mxu0 %v3455
    %4038 = vmatpush1.bf16.msra.mxu0 %v3454
    %4039 = vmatprep.subr.bf16.mxu0 %v3458
    %4040 = vmatpush1.bf16.msra.mxu0 %v3457
    %4041 = vmatprep.subr.bf16.mxu0 %v3461
    %4042 = vmatpush1.bf16.msra.mxu0 %v3460
    %4043 = vmatprep.subr.bf16.mxu0 %v3464
    %4044 = vmatpush1.bf16.msra.mxu0 %v3463
    %4045 = vmatprep.subr.bf16.mxu0 %v3467
    %4046 = vmatpush1.bf16.msra.mxu0 %v3466
    %4047 = vmatprep.subr.bf16.mxu0 %v3470
    %4048 = vmatpush1.bf16.msra.mxu0 %v3469
    %4049 = vmatprep.subr.bf16.mxu0 %v3473
    %4050 = vmatpush1.bf16.msra.mxu0 %v3472
    %4051 = vmatprep.subr.bf16.mxu0 %v3476
    %4052 = vmatpush1.bf16.msra.mxu0 %v3475
    %4053 = vmatprep.mubr.bf16.mxu0 %v1837
    %4054 = vmatmul.mubr.bf16.gmra.mrb[0].mxu0 %v1834
    %v4055 = vpop.f32.mrb[0].mxu0
    %v4056 = vadd.f32 %v4005, %v4055
    %v4057 = vpop.f32.mrb[0].mxu0
    %v4058 = vadd.f32 %v4007, %v4057
    %v4059 = vpop.f32.mrb[0].mxu0
    %v4060 = vadd.f32 %v4009, %v4059
    %v4061 = vpop.f32.mrb[0].mxu0
    %v4062 = vadd.f32 %v4011, %v4061
    %4063 = vmatprep.mubr.bf16.mxu0 %v1836
    %4064 = vmatmul.mubr.bf16.gmra.mrb[0].mxu0 %v1833
    %v4065 = vpop.f32.mrb[0].mxu0
    %v4066 = vadd.f32 %v4015, %v4065
    %v4067 = vpop.f32.mrb[0].mxu0
    %v4068 = vadd.f32 %v4017, %v4067
    %v4069 = vpop.f32.mrb[0].mxu0
    %v4070 = vpop.f32.mrb[0].mxu0
    %4071 = vdwg.mxu0
    %4072 = vmatprep.subr.bf16.mxu0 0
    %4073 = vmatpush1.bf16.msra.mxu0 %v3192
    %4074 = vmatprep.subr.bf16.mxu0 0
    %4075 = vmatpush1.bf16.msra.mxu0 %v3195
    %4076 = vmatprep.subr.bf16.mxu0 0
    %4077 = vmatpush1.bf16.msra.mxu0 %v3198
    %4078 = vmatprep.subr.bf16.mxu0 0
    %4079 = vmatpush1.bf16.msra.mxu0 %v3201
    %4080 = vmatprep.subr.bf16.mxu0 0
    %4081 = vmatpush1.bf16.msra.mxu0 %v3204
    %4082 = vmatprep.subr.bf16.mxu0 0
    %4083 = vmatpush1.bf16.msra.mxu0 %v3207
    %4084 = vmatprep.subr.bf16.mxu0 0
    %4085 = vmatpush1.bf16.msra.mxu0 %v3210
    %4086 = vmatprep.subr.bf16.mxu0 0
    %4087 = vmatpush1.bf16.msra.mxu0 %v3213
    %4088 = vmatprep.subr.bf16.mxu0 0
    %4089 = vmatpush1.bf16.msra.mxu0 %v3216
    %4090 = vmatprep.subr.bf16.mxu0 0
    %4091 = vmatpush1.bf16.msra.mxu0 %v3219
    %4092 = vmatprep.subr.bf16.mxu0 0
    %4093 = vmatpush1.bf16.msra.mxu0 %v3222
    %4094 = vmatprep.subr.bf16.mxu0 0
    %4095 = vmatpush1.bf16.msra.mxu0 %v3225
    %4096 = vmatprep.subr.bf16.mxu0 0
    %4097 = vmatpush1.bf16.msra.mxu0 %v3228
    %4098 = vmatprep.subr.bf16.mxu0 0
    %4099 = vmatpush1.bf16.msra.mxu0 %v3231
    %4100 = vmatprep.subr.bf16.mxu0 0
    %4101 = vmatpush1.bf16.msra.mxu0 %v3234
    %4102 = vmatprep.subr.bf16.mxu0 0
    %4103 = vmatpush1.bf16.msra.mxu0 %v3237
    %4104 = vmatprep.mubr.bf16.mxu0 %v1743
    %4105 = vmatmul.mubr.bf16.gmra.mrb[0].mxu0 %v1742
    %v4106 = vpop.f32.mrb[0].mxu0
    %v4107 = vadd.f32 0.0, %v4106
    %v4108 = vpop.f32.mrb[0].mxu0
    %v4109 = vpop.f32.mrb[0].mxu0
    %v4110 = vadd.f32 0.0, %v4109
    %v4111 = vpop.f32.mrb[0].mxu0
    %4112 = vmatprep.mubr.bf16.mxu0 %v1747
    %4113 = vmatmul.mubr.bf16.gmra.mrb[0].mxu0 %v1746
    %v4114 = vpop.f32.mrb[0].mxu0
    %v4115 = vadd.f32 0.0, %v4114
    %v4116 = vpop.f32.mrb[0].mxu0
    %v4117 = vpop.f32.mrb[0].mxu0
    %v4118 = vpop.f32.mrb[0].mxu0
    %4119 = vdwg.mxu0
    %4120 = vmatprep.subr.bf16.mxu0 0
    %4121 = vmatpush1.bf16.msra.mxu0 %v3240
    %4122 = vmatprep.subr.bf16.mxu0 0
    %4123 = vmatpush1.bf16.msra.mxu0 %v3243
    %4124 = vmatprep.subr.bf16.mxu0 0
    %4125 = vmatpush1.bf16.msra.mxu0 %v3246
    %4126 = vmatprep.subr.bf16.mxu0 0
    %4127 = vmatpush1.bf16.msra.mxu0 %v3249
    %4128 = vmatprep.subr.bf16.mxu0 0
    %4129 = vmatpush1.bf16.msra.mxu0 %v3252
    %4130 = vmatprep.subr.bf16.mxu0 0
    %4131 = vmatpush1.bf16.msra.mxu0 %v3255
    %4132 = vmatprep.subr.bf16.mxu0 0
    %4133 = vmatpush1.bf16.msra.mxu0 %v3258
    %4134 = vmatprep.subr.bf16.mxu0 0
    %4135 = vmatpush1.bf16.msra.mxu0 %v3261
    %4136 = vmatprep.subr.bf16.mxu0 0
    %4137 = vmatpush1.bf16.msra.mxu0 %v3264
    %4138 = vmatprep.subr.bf16.mxu0 0
    %4139 = vmatpush1.bf16.msra.mxu0 %v3267
    %4140 = vmatprep.subr.bf16.mxu0 0
    %4141 = vmatpush1.bf16.msra.mxu0 %v3270
    %4142 = vmatprep.subr.bf16.mxu0 0
    %4143 = vmatpush1.bf16.msra.mxu0 %v3273
    %4144 = vmatprep.subr.bf16.mxu0 0
    %4145 = vmatpush1.bf16.msra.mxu0 %v3276
    %4146 = vmatprep.subr.bf16.mxu0 0
    %4147 = vmatpush1.bf16.msra.mxu0 %v3279
    %4148 = vmatprep.subr.bf16.mxu0 0
    %4149 = vmatpush1.bf16.msra.mxu0 %v3282
    %4150 = vmatprep.subr.bf16.mxu0 0
    %4151 = vmatpush1.bf16.msra.mxu0 %v3285
    %4152 = vmatprep.mubr.bf16.mxu0 %v1745
    %4153 = vmatmul.mubr.bf16.gmra.mrb[0].mxu0 %v1744
    %v4154 = vpop.f32.mrb[0].mxu0
    %v4155 = vadd.f32 %v4107, %v4154
    %v4156 = vpop.f32.mrb[0].mxu0
    %v4157 = vpop.f32.mrb[0].mxu0
    %v4158 = vadd.f32 %v4110, %v4157
    %v4159 = vpop.f32.mrb[0].mxu0
    %4160 = vmatprep.mubr.bf16.mxu0 %v1749
    %4161 = vmatmul.mubr.bf16.gmra.mrb[0].mxu0 %v1748
    %v4162 = vpop.f32.mrb[0].mxu0
    %v4163 = vadd.f32 %v4115, %v4162
    %v4164 = vpop.f32.mrb[0].mxu0
    %v4165 = vpop.f32.mrb[0].mxu0
    %v4166 = vpop.f32.mrb[0].mxu0
    %4167 = vdwg.mxu0
    %4168 = vmatprep.subr.bf16.mxu0 0
    %4169 = vmatpush1.bf16.msra.mxu0 %v3288
    %4170 = vmatprep.subr.bf16.mxu0 0
    %4171 = vmatpush1.bf16.msra.mxu0 %v3291
    %4172 = vmatprep.subr.bf16.mxu0 0
    %4173 = vmatpush1.bf16.msra.mxu0 %v3294
    %4174 = vmatprep.subr.bf16.mxu0 0
    %4175 = vmatpush1.bf16.msra.mxu0 %v3297
    %4176 = vmatprep.subr.bf16.mxu0 0
    %4177 = vmatpush1.bf16.msra.mxu0 %v3300
    %4178 = vmatprep.subr.bf16.mxu0 0
    %4179 = vmatpush1.bf16.msra.mxu0 %v3303
    %4180 = vmatprep.subr.bf16.mxu0 0
    %4181 = vmatpush1.bf16.msra.mxu0 %v3306
    %4182 = vmatprep.subr.bf16.mxu0 0
    %4183 = vmatpush1.bf16.msra.mxu0 %v3309
    %4184 = vmatprep.subr.bf16.mxu0 0
    %4185 = vmatpush1.bf16.msra.mxu0 %v3312
    %4186 = vmatprep.subr.bf16.mxu0 0
    %4187 = vmatpush1.bf16.msra.mxu0 %v3315
    %4188 = vmatprep.subr.bf16.mxu0 0
    %4189 = vmatpush1.bf16.msra.mxu0 %v3318
    %4190 = vmatprep.subr.bf16.mxu0 0
    %4191 = vmatpush1.bf16.msra.mxu0 %v3321
    %4192 = vmatprep.subr.bf16.mxu0 0
    %4193 = vmatpush1.bf16.msra.mxu0 %v3324
    %4194 = vmatprep.subr.bf16.mxu0 0
    %4195 = vmatpush1.bf16.msra.mxu0 %v3327
    %4196 = vmatprep.subr.bf16.mxu0 0
    %4197 = vmatpush1.bf16.msra.mxu0 %v3330
    %4198 = vmatprep.subr.bf16.mxu0 0
    %4199 = vmatpush1.bf16.msra.mxu0 %v3333
    %4200 = vmatprep.mubr.bf16.mxu0 %v1773
    %4201 = vmatmul.mubr.bf16.gmra.mrb[0].mxu0 %v1761
    %v4202 = vpop.f32.mrb[0].mxu0
    %v4203 = vadd.f32 %v4155, %v4202
    %v4204 = vpop.f32.mrb[0].mxu0
    %v4205 = vpop.f32.mrb[0].mxu0
    %v4206 = vadd.f32 %v4158, %v4205
    %v4207 = vpop.f32.mrb[0].mxu0
    %4208 = vmatprep.mubr.bf16.mxu0 %v1803
    %4209 = vmatmul.mubr.bf16.gmra.mrb[0].mxu0 %v1800
    %v4210 = vpop.f32.mrb[0].mxu0
    %v4211 = vadd.f32 %v4163, %v4210
    %v4212 = vpop.f32.mrb[0].mxu0
    %v4213 = vpop.f32.mrb[0].mxu0
    %v4214 = vpop.f32.mrb[0].mxu0
    %4215 = vdwg.mxu0
    %4216 = vmatprep.subr.bf16.mxu0 0
    %4217 = vmatpush1.bf16.msra.mxu0 %v3336
    %4218 = vmatprep.subr.bf16.mxu0 0
    %4219 = vmatpush1.bf16.msra.mxu0 %v3339
    %4220 = vmatprep.subr.bf16.mxu0 0
    %4221 = vmatpush1.bf16.msra.mxu0 %v3342
    %4222 = vmatprep.subr.bf16.mxu0 0
    %4223 = vmatpush1.bf16.msra.mxu0 %v3345
    %4224 = vmatprep.subr.bf16.mxu0 0
    %4225 = vmatpush1.bf16.msra.mxu0 %v3348
    %4226 = vmatprep.subr.bf16.mxu0 0
    %4227 = vmatpush1.bf16.msra.mxu0 %v3351
    %4228 = vmatprep.subr.bf16.mxu0 0
    %4229 = vmatpush1.bf16.msra.mxu0 %v3354
    %4230 = vmatprep.subr.bf16.mxu0 0
    %4231 = vmatpush1.bf16.msra.mxu0 %v3357
    %4232 = vmatprep.subr.bf16.mxu0 0
    %4233 = vmatpush1.bf16.msra.mxu0 %v3360
    %4234 = vmatprep.subr.bf16.mxu0 0
    %4235 = vmatpush1.bf16.msra.mxu0 %v3363
    %4236 = vmatprep.subr.bf16.mxu0 0
    %4237 = vmatpush1.bf16.msra.mxu0 %v3366
    %4238 = vmatprep.subr.bf16.mxu0 0
    %4239 = vmatpush1.bf16.msra.mxu0 %v3369
    %4240 = vmatprep.subr.bf16.mxu0 0
    %4241 = vmatpush1.bf16.msra.mxu0 %v3372
    %4242 = vmatprep.subr.bf16.mxu0 0
    %4243 = vmatpush1.bf16.msra.mxu0 %v3375
    %4244 = vmatprep.subr.bf16.mxu0 0
    %4245 = vmatpush1.bf16.msra.mxu0 %v3378
    %4246 = vmatprep.subr.bf16.mxu0 0
    %4247 = vmatpush1.bf16.msra.mxu0 %v3381
    %4248 = vmatprep.mubr.bf16.mxu0 %v1797
    %4249 = vmatmul.mubr.bf16.gmra.mrb[0].mxu0 %v1785
    %v4250 = vpop.f32.mrb[0].mxu0
    %v4251 = vadd.f32 %v4203, %v4250
    %v4252 = vpop.f32.mrb[0].mxu0
    %v4253 = vpop.f32.mrb[0].mxu0
    %v4254 = vadd.f32 %v4206, %v4253
    %v4255 = vpop.f32.mrb[0].mxu0
    %4256 = vmatprep.mubr.bf16.mxu0 %v1809
    %4257 = vmatmul.mubr.bf16.gmra.mrb[0].mxu0 %v1806
    %v4258 = vpop.f32.mrb[0].mxu0
    %v4259 = vadd.f32 %v4211, %v4258
    %v4260 = vpop.f32.mrb[0].mxu0
    %v4261 = vpop.f32.mrb[0].mxu0
    %v4262 = vpop.f32.mrb[0].mxu0
    %4263 = vdwg.mxu0
    %4264 = vmatprep.subr.bf16.mxu0 0
    %4265 = vmatpush1.bf16.msra.mxu0 %v3384
    %4266 = vmatprep.subr.bf16.mxu0 0
    %4267 = vmatpush1.bf16.msra.mxu0 %v3387
    %4268 = vmatprep.subr.bf16.mxu0 0
    %4269 = vmatpush1.bf16.msra.mxu0 %v3390
    %4270 = vmatprep.subr.bf16.mxu0 0
    %4271 = vmatpush1.bf16.msra.mxu0 %v3393
    %4272 = vmatprep.subr.bf16.mxu0 0
    %4273 = vmatpush1.bf16.msra.mxu0 %v3396
    %4274 = vmatprep.subr.bf16.mxu0 0
    %4275 = vmatpush1.bf16.msra.mxu0 %v3399
    %4276 = vmatprep.subr.bf16.mxu0 0
    %4277 = vmatpush1.bf16.msra.mxu0 %v3402
    %4278 = vmatprep.subr.bf16.mxu0 0
    %4279 = vmatpush1.bf16.msra.mxu0 %v3405
    %4280 = vmatprep.subr.bf16.mxu0 0
    %4281 = vmatpush1.bf16.msra.mxu0 %v3408
    %4282 = vmatprep.subr.bf16.mxu0 0
    %4283 = vmatpush1.bf16.msra.mxu0 %v3411
    %4284 = vmatprep.subr.bf16.mxu0 0
    %4285 = vmatpush1.bf16.msra.mxu0 %v3414
    %4286 = vmatprep.subr.bf16.mxu0 0
    %4287 = vmatpush1.bf16.msra.mxu0 %v3417
    %4288 = vmatprep.subr.bf16.mxu0 0
    %4289 = vmatpush1.bf16.msra.mxu0 %v3420
    %4290 = vmatprep.subr.bf16.mxu0 0
    %4291 = vmatpush1.bf16.msra.mxu0 %v3423
    %4292 = vmatprep.subr.bf16.mxu0 0
    %4293 = vmatpush1.bf16.msra.mxu0 %v3426
    %4294 = vmatprep.subr.bf16.mxu0 0
    %4295 = vmatpush1.bf16.msra.mxu0 %v3429
    %4296 = vmatprep.mubr.bf16.mxu0 %v1831
    %4297 = vmatmul.mubr.bf16.gmra.mrb[0].mxu0 %v1828
    %v4298 = vpop.f32.mrb[0].mxu0
    %v4299 = vadd.f32 %v4251, %v4298
    %v4300 = vpop.f32.mrb[0].mxu0
    %v4301 = vpop.f32.mrb[0].mxu0
    %v4302 = vadd.f32 %v4254, %v4301
    %v4303 = vpop.f32.mrb[0].mxu0
    %4304 = vmatprep.mubr.bf16.mxu0 %v1830
    %4305 = vmatmul.mubr.bf16.gmra.mrb[0].mxu0 %v1827
    %v4306 = vpop.f32.mrb[0].mxu0
    %v4307 = vadd.f32 %v4259, %v4306
    %v4308 = vpop.f32.mrb[0].mxu0
    %v4309 = vpop.f32.mrb[0].mxu0
    %v4310 = vpop.f32.mrb[0].mxu0
    %4311 = vdwg.mxu0
    %4312 = vmatprep.subr.bf16.mxu0 0
    %4313 = vmatpush1.bf16.msra.mxu0 %v3432
    %4314 = vmatprep.subr.bf16.mxu0 0
    %4315 = vmatpush1.bf16.msra.mxu0 %v3435
    %4316 = vmatprep.subr.bf16.mxu0 0
    %4317 = vmatpush1.bf16.msra.mxu0 %v3438
    %4318 = vmatprep.subr.bf16.mxu0 0
    %4319 = vmatpush1.bf16.msra.mxu0 %v3441
    %4320 = vmatprep.subr.bf16.mxu0 0
    %4321 = vmatpush1.bf16.msra.mxu0 %v3444
    %4322 = vmatprep.subr.bf16.mxu0 0
    %4323 = vmatpush1.bf16.msra.mxu0 %v3447
    %4324 = vmatprep.subr.bf16.mxu0 0
    %4325 = vmatpush1.bf16.msra.mxu0 %v3450
    %4326 = vmatprep.subr.bf16.mxu0 0
    %4327 = vmatpush1.bf16.msra.mxu0 %v3453
    %4328 = vmatprep.subr.bf16.mxu0 0
    %4329 = vmatpush1.bf16.msra.mxu0 %v3456
    %4330 = vmatprep.subr.bf16.mxu0 0
    %4331 = vmatpush1.bf16.msra.mxu0 %v3459
    %4332 = vmatprep.subr.bf16.mxu0 0
    %4333 = vmatpush1.bf16.msra.mxu0 %v3462
    %4334 = vmatprep.subr.bf16.mxu0 0
    %4335 = vmatpush1.bf16.msra.mxu0 %v3465
    %4336 = vmatprep.subr.bf16.mxu0 0
    %4337 = vmatpush1.bf16.msra.mxu0 %v3468
    %4338 = vmatprep.subr.bf16.mxu0 0
    %4339 = vmatpush1.bf16.msra.mxu0 %v3471
    %4340 = vmatprep.subr.bf16.mxu0 0
    %4341 = vmatpush1.bf16.msra.mxu0 %v3474
    %4342 = vmatprep.subr.bf16.mxu0 0
    %4343 = vmatpush1.bf16.msra.mxu0 %v3477
    %4344 = vmatprep.mubr.bf16.mxu0 %v1837
    %4345 = vmatmul.mubr.bf16.gmra.mrb[0].mxu0 %v1834
    %v4346 = vpop.f32.mrb[0].mxu0
    %v4347 = vadd.f32 %v4299, %v4346
    %v4348 = vpop.f32.mrb[0].mxu0
    %v4349 = vpop.f32.mrb[0].mxu0
    %v4350 = vadd.f32 %v4302, %v4349
    %v4351 = vpop.f32.mrb[0].mxu0
    %4352 = vmatprep.mubr.bf16.mxu0 %v1836
    %4353 = vmatmul.mubr.bf16.gmra.mrb[0].mxu0 %v1833
    %v4354 = vpop.f32.mrb[0].mxu0
    %v4355 = vadd.f32 %v4307, %v4354
    %v4356 = vpop.f32.mrb[0].mxu0
    %v4357 = vpop.f32.mrb[0].mxu0
    %v4358 = vpop.f32.mrb[0].mxu0
    %4359 = vdwg.mxu0
    %v4360 = vld [vmem:[#allocation10] sm:$0x7]
    %v4362 = vlaneseq
    %v4363 = vshrl.u32 %v4362, 7
    %v4364 = vsub.s32 0, %v4363
    %v4365 = vrot.slane %v4360, %v4364
    %v4366 = vlaneseq
    %v4367 = vshrl.u32 %v4366, 7
    %v4368 = vsub.s32 1, %v4367
    %v4369 = vrot.slane %v4360, %v4368
    %v4370 = vlaneseq
    %v4371 = vshrl.u32 %v4370, 7
    %v4372 = vsub.s32 2, %v4371
    %v4373 = vrot.slane %v4360, %v4372
    %v4377 = vmul.f32 %v4056, %v4365
    %v4378 = vmul.f32 %v4058, %v4369
    %v4379 = vmul.f32 %v4347, %v4373
    %v4380 = vmul.f32 %v4060, %v4365
    %v4381 = vmul.f32 %v4062, %v4369
    %v4382 = vmul.f32 %v4350, %v4373
    %v4383 = vmul.f32 %v4066, %v4365
    %v4384 = vmul.f32 %v4068, %v4369
    %v4385 = vmul.f32 %v4355, %v4373
    %v4386 = vld [vmem:[#allocation11] sm:$0x7]
    %v4388 = vlaneseq
    %v4389 = vshrl.u32 %v4388, 7
    %v4390 = vsub.s32 0, %v4389
    %v4391 = vrot.slane %v4386, %v4390
    %v4392 = vlaneseq
    %v4393 = vshrl.u32 %v4392, 7
    %v4394 = vsub.s32 1, %v4393
    %v4395 = vrot.slane %v4386, %v4394
    %v4396 = vlaneseq
    %v4397 = vshrl.u32 %v4396, 7
    %v4398 = vsub.s32 2, %v4397
    %v4399 = vrot.slane %v4386, %v4398
    %v4403 = vadd.f32 %v4377, %v4391
    %v4404 = vadd.f32 %v4378, %v4395
    %v4405 = vadd.f32 %v4379, %v4399
    %v4406 = vadd.f32 %v4380, %v4391
    %v4407 = vadd.f32 %v4381, %v4395
    %v4408 = vadd.f32 %v4382, %v4399
    %v4409 = vadd.f32 %v4383, %v4391
    %v4410 = vadd.f32 %v4384, %v4395
    %v4411 = vadd.f32 %v4385, %v4399
    %v4412 = vmax.f32 %v4403, 0.0
    %v4413 = vmax.f32 %v4404, 0.0
    %v4414 = vmax.f32 %v4405, 0.0
    %v4415 = vmax.f32 %v4406, 0.0
    %v4416 = vmax.f32 %v4407, 0.0
    %v4417 = vmax.f32 %v4408, 0.0
    %v4418 = vmax.f32 %v4409, 0.0
    %v4419 = vmax.f32 %v4410, 0.0
    %v4420 = vmax.f32 %v4411, 0.0
    %v4421 = vpack.c.bf16 %v4415, %v4412
    %v4422 = vpack.c.bf16 %v4416, %v4413
    %v4423 = vpack.c.bf16 %v4417, %v4414
    %v4424 = vpack.c.bf16 %v4418, %v4418
    %v4425 = vpack.c.bf16 %v4419, %v4419
    %v4426 = vpack.c.bf16 %v4420, %v4420
    %4433 = vrot.lane.b32.xlu0 %v4421, 96
    %v4434 = vpop.permute.xlu0 %4433
    %4435 = vrot.lane.b32.xlu0 %v4422, 96
    %v4436 = vpop.permute.xlu0 %4435
    %4437 = vrot.lane.b32.xlu0 %v4423, 96
    %v4438 = vpop.permute.xlu0 %4437
    %4439 = vrot.lane.b32.xlu0 %v4424, 96
    %v4440 = vpop.permute.xlu0 %4439
    %4441 = vrot.lane.b32.xlu0 %v4425, 96
    %v4442 = vpop.permute.xlu0 %4441
    %4443 = vrot.lane.b32.xlu0 %v4426, 96
    %v4444 = vpop.permute.xlu0 %4443
    %vm4445 = vcmask 785408
    %v4446 = vsel %vm4445, %v4434, %v4436
    %v4447 = vsel %vm4445, %v4436, %v4438
    %v4448 = vsel %vm4445, %v4440, %v4442
    %v4449 = vsel %vm4445, %v4442, %v4444
    %vm4454 = vcmask 785408
    %v4456 = vsel %vm4454, %v4438, 0
    %v4459 = vsel %vm4454, %v4444, 0
    %v4461 = vmax.bf16 %v4421, %v4446
    %v4462 = vmax.bf16 %v4422, %v4447
    %v4463 = vmax.bf16 %v4423, %v4456
    %v4464 = vmax.bf16 %v4424, %v4448
    %v4465 = vmax.bf16 %v4425, %v4449
    %v4466 = vmax.bf16 %v4426, %v4459
    %v4468 = vshrl.u32 %v4461, 16
    %v4470 = vshll.u32 %v4461, 16
    %v4472 = vrot.slane %v4470, 1
    %v4473 = vor.u32 %v4468, %v4472
    %v4475 = vshll.u32 %v4464, 16
    %v4477 = vrot.slane %v4475, 1
    %v4478 = vsel %vm288, %v4473, %v4477
    %v4480 = vshrl.u32 %v4462, 16
    %v4482 = vshll.u32 %v4462, 16
    %v4484 = vrot.slane %v4482, 1
    %v4485 = vor.u32 %v4480, %v4484
    %v4487 = vshll.u32 %v4465, 16
    %v4489 = vrot.slane %v4487, 1
    %v4490 = vsel %vm288, %v4485, %v4489
    %v4492 = vshrl.u32 %v4463, 16
    %v4494 = vshll.u32 %v4463, 16
    %v4496 = vrot.slane %v4494, 1
    %v4497 = vor.u32 %v4492, %v4496
    %v4499 = vshll.u32 %v4466, 16
    %v4501 = vrot.slane %v4499, 1
    %v4502 = vsel %vm288, %v4497, %v4501
    %v4503 = vshrl.u32 %v4464, 16
    %v4505 = vor.u32 %v4503, %v4477
    %v4506 = vshrl.u32 %v4465, 16
    %v4508 = vor.u32 %v4506, %v4489
    %v4509 = vshrl.u32 %v4466, 16
    %v4511 = vor.u32 %v4509, %v4501
    %v4518 = vmax.bf16 %v4461, %v4478
    %v4519 = vmax.bf16 %v4462, %v4490
    %v4520 = vmax.bf16 %v4463, %v4502
    %v4521 = vmax.bf16 %v4464, %v4505
    %v4522 = vmax.bf16 %v4465, %v4508
    %v4523 = vmax.bf16 %v4466, %v4511
    %v4524 = vld [vmem:[#allocation14] sm:$0x1]
    %vm4525 = vcmask 187392
    %v4527 = vsel %vm4525, %v4524, 0
    %vm4529 = vcmask 1043456
    %v4530 = vsel %vm1621, 4294967295, 65535
    %v4531 = vsel %vm4529, %v4530, 0
    %v4533 = vand.u32 %v4521, %v4531
    %v4536 = vand.u32 %v4522, %v4531
    %v4539 = vand.u32 %v4523, %v4531
    %4541 = vmatprep.subr.bf16.mxu0 %v4519
    %4542 = vmatpush1.bf16.msra.mxu0 %v4518
    %4543 = vmatprep.subr.bf16.mxu0 %v4536
    %4544 = vmatpush1.bf16.msra.mxu0 %v4533
    %4545 = vmatprep.subr.bf16.mxu0 0
    %4546 = vmatpush1.bf16.msra.mxu0 0
    %4547 = vmatprep.subr.bf16.mxu0 0
    %4548 = vmatpush1.bf16.msra.mxu0 0
    %4549 = vmatprep.subr.bf16.mxu0 0
    %4550 = vmatpush1.bf16.msra.mxu0 0
    %4551 = vmatprep.subr.bf16.mxu0 0
    %4552 = vmatpush1.bf16.msra.mxu0 0
    %4553 = vmatprep.subr.bf16.mxu0 0
    %4554 = vmatpush1.bf16.msra.mxu0 0
    %4555 = vmatprep.subr.bf16.mxu0 0
    %4556 = vmatpush1.bf16.msra.mxu0 0
    %4557 = vmatprep.subr.bf16.mxu0 0
    %4558 = vmatpush1.bf16.msra.mxu0 0
    %4559 = vmatprep.subr.bf16.mxu0 0
    %4560 = vmatpush1.bf16.msra.mxu0 0
    %4561 = vmatprep.subr.bf16.mxu0 0
    %4562 = vmatpush1.bf16.msra.mxu0 0
    %4563 = vmatprep.subr.bf16.mxu0 0
    %4564 = vmatpush1.bf16.msra.mxu0 0
    %4565 = vmatprep.subr.bf16.mxu0 0
    %4566 = vmatpush1.bf16.msra.mxu0 0
    %4567 = vmatprep.subr.bf16.mxu0 0
    %4568 = vmatpush1.bf16.msra.mxu0 0
    %4569 = vmatprep.subr.bf16.mxu0 0
    %4570 = vmatpush1.bf16.msra.mxu0 0
    %4571 = vmatprep.subr.bf16.mxu0 0
    %4572 = vmatpush1.bf16.msra.mxu0 0
    %4573 = vmatprep.mubr.bf16.mxu0 0
    %4574 = vmatmul.mubr.bf16.gmra.mrb[0].mxu0 %v4527
    %v4575 = vpop.f32.mrb[0].mxu0
    %v4576 = vadd.f32 0.0, %v4575
    %v4577 = vpop.f32.mrb[0].mxu0
    %v4578 = vadd.f32 0.0, %v4577
    %v4579 = vpop.f32.mrb[0].mxu0
    %v4580 = vpop.f32.mrb[0].mxu0
    %4581 = vdwg.mxu0
    %4582 = vmatprep.subr.bf16.mxu0 0
    %4583 = vmatpush1.bf16.msra.mxu0 %v4520
    %4584 = vmatprep.subr.bf16.mxu0 0
    %4585 = vmatpush1.bf16.msra.mxu0 %v4539
    %4586 = vmatprep.subr.bf16.mxu0 0
    %4587 = vmatpush1.bf16.msra.mxu0 0
    %4588 = vmatprep.subr.bf16.mxu0 0
    %4589 = vmatpush1.bf16.msra.mxu0 0
    %4590 = vmatprep.subr.bf16.mxu0 0
    %4591 = vmatpush1.bf16.msra.mxu0 0
    %4592 = vmatprep.subr.bf16.mxu0 0
    %4593 = vmatpush1.bf16.msra.mxu0 0
    %4594 = vmatprep.subr.bf16.mxu0 0
    %4595 = vmatpush1.bf16.msra.mxu0 0
    %4596 = vmatprep.subr.bf16.mxu0 0
    %4597 = vmatpush1.bf16.msra.mxu0 0
    %4598 = vmatprep.subr.bf16.mxu0 0
    %4599 = vmatpush1.bf16.msra.mxu0 0
    %4600 = vmatprep.subr.bf16.mxu0 0
    %4601 = vmatpush1.bf16.msra.mxu0 0
    %4602 = vmatprep.subr.bf16.mxu0 0
    %4603 = vmatpush1.bf16.msra.mxu0 0
    %4604 = vmatprep.subr.bf16.mxu0 0
    %4605 = vmatpush1.bf16.msra.mxu0 0
    %4606 = vmatprep.subr.bf16.mxu0 0
    %4607 = vmatpush1.bf16.msra.mxu0 0
    %4608 = vmatprep.subr.bf16.mxu0 0
    %4609 = vmatpush1.bf16.msra.mxu0 0
    %4610 = vmatprep.subr.bf16.mxu0 0
    %4611 = vmatpush1.bf16.msra.mxu0 0
    %4612 = vmatprep.subr.bf16.mxu0 0
    %4613 = vmatpush1.bf16.msra.mxu0 0
    %4614 = vmatprep.mubr.bf16.mxu0 0
    %4615 = vmatmul.mubr.bf16.gmra.mrb[0].mxu0 %v4527
    %v4616 = vpop.f32.mrb[0].mxu0
    %v4617 = vadd.f32 0.0, %v4616
    %v4618 = vpop.f32.mrb[0].mxu0
    %v4619 = vpop.f32.mrb[0].mxu0
    %v4620 = vpop.f32.mrb[0].mxu0
    %4621 = vdwg.mxu0
    %v4622 = vpack.c.bf16 %v4576, %v4576
    %v4623 = vpack.c.bf16 %v4578, %v4578
    %v4624 = vpack.c.bf16 %v4617, %v4617
    %v4625 = vld [vmem:[#allocation14] sm:$0x2]
    %v4627 = vunpack.c.l.b16 %v4625
    %v4628 = vpack.c.b16 %v4627, %v4627
    %v4629 = vrot.slane %v4628, 1
    %v4631 = vsel %vm4525, %v4629, 0
    %4633 = vmatprep.subr.bf16.mxu0 %v4519
    %4634 = vmatpush1.bf16.msra.mxu0 %v4518
    %4635 = vmatprep.subr.bf16.mxu0 %v4536
    %4636 = vmatpush1.bf16.msra.mxu0 %v4533
    %4637 = vmatprep.subr.bf16.mxu0 0
    %4638 = vmatpush1.bf16.msra.mxu0 0
    %4639 = vmatprep.subr.bf16.mxu0 0
    %4640 = vmatpush1.bf16.msra.mxu0 0
    %4641 = vmatprep.subr.bf16.mxu0 0
    %4642 = vmatpush1.bf16.msra.mxu0 0
    %4643 = vmatprep.subr.bf16.mxu0 0
    %4644 = vmatpush1.bf16.msra.mxu0 0
    %4645 = vmatprep.subr.bf16.mxu0 0
    %4646 = vmatpush1.bf16.msra.mxu0 0
    %4647 = vmatprep.subr.bf16.mxu0 0
    %4648 = vmatpush1.bf16.msra.mxu0 0
    %4649 = vmatprep.subr.bf16.mxu0 0
    %4650 = vmatpush1.bf16.msra.mxu0 0
    %4651 = vmatprep.subr.bf16.mxu0 0
    %4652 = vmatpush1.bf16.msra.mxu0 0
    %4653 = vmatprep.subr.bf16.mxu0 0
    %4654 = vmatpush1.bf16.msra.mxu0 0
    %4655 = vmatprep.subr.bf16.mxu0 0
    %4656 = vmatpush1.bf16.msra.mxu0 0
    %4657 = vmatprep.subr.bf16.mxu0 0
    %4658 = vmatpush1.bf16.msra.mxu0 0
    %4659 = vmatprep.subr.bf16.mxu0 0
    %4660 = vmatpush1.bf16.msra.mxu0 0
    %4661 = vmatprep.subr.bf16.mxu0 0
    %4662 = vmatpush1.bf16.msra.mxu0 0
    %4663 = vmatprep.subr.bf16.mxu0 0
    %4664 = vmatpush1.bf16.msra.mxu0 0
    %4665 = vmatprep.mubr.bf16.mxu0 0
    %4666 = vmatmul.mubr.bf16.gmra.mrb[0].mxu0 %v4631
    %v4667 = vpop.f32.mrb[0].mxu0
    %v4668 = vadd.f32 0.0, %v4667
    %v4669 = vpop.f32.mrb[0].mxu0
    %v4670 = vadd.f32 0.0, %v4669
    %v4671 = vpop.f32.mrb[0].mxu0
    %v4672 = vpop.f32.mrb[0].mxu0
    %4673 = vdwg.mxu0
    %4674 = vmatprep.subr.bf16.mxu0 0
    %4675 = vmatpush1.bf16.msra.mxu0 %v4520
    %4676 = vmatprep.subr.bf16.mxu0 0
    %4677 = vmatpush1.bf16.msra.mxu0 %v4539
    %4678 = vmatprep.subr.bf16.mxu0 0
    %4679 = vmatpush1.bf16.msra.mxu0 0
    %4680 = vmatprep.subr.bf16.mxu0 0
    %4681 = vmatpush1.bf16.msra.mxu0 0
    %4682 = vmatprep.subr.bf16.mxu0 0
    %4683 = vmatpush1.bf16.msra.mxu0 0
    %4684 = vmatprep.subr.bf16.mxu0 0
    %4685 = vmatpush1.bf16.msra.mxu0 0
    %4686 = vmatprep.subr.bf16.mxu0 0
    %4687 = vmatpush1.bf16.msra.mxu0 0
    %4688 = vmatprep.subr.bf16.mxu0 0
    %4689 = vmatpush1.bf16.msra.mxu0 0
    %4690 = vmatprep.subr.bf16.mxu0 0
    %4691 = vmatpush1.bf16.msra.mxu0 0
    %4692 = vmatprep.subr.bf16.mxu0 0
    %4693 = vmatpush1.bf16.msra.mxu0 0
    %4694 = vmatprep.subr.bf16.mxu0 0
    %4695 = vmatpush1.bf16.msra.mxu0 0
    %4696 = vmatprep.subr.bf16.mxu0 0
    %4697 = vmatpush1.bf16.msra.mxu0 0
    %4698 = vmatprep.subr.bf16.mxu0 0
    %4699 = vmatpush1.bf16.msra.mxu0 0
    %4700 = vmatprep.subr.bf16.mxu0 0
    %4701 = vmatpush1.bf16.msra.mxu0 0
    %4702 = vmatprep.subr.bf16.mxu0 0
    %4703 = vmatpush1.bf16.msra.mxu0 0
    %4704 = vmatprep.subr.bf16.mxu0 0
    %4705 = vmatpush1.bf16.msra.mxu0 0
    %4706 = vmatprep.mubr.bf16.mxu0 0
    %4707 = vmatmul.mubr.bf16.gmra.mrb[0].mxu0 %v4631
    %v4708 = vpop.f32.mrb[0].mxu0
    %v4709 = vadd.f32 0.0, %v4708
    %v4710 = vpop.f32.mrb[0].mxu0
    %v4711 = vpop.f32.mrb[0].mxu0
    %v4712 = vpop.f32.mrb[0].mxu0
    %4713 = vdwg.mxu0
    %v4714 = vpack.c.bf16 %v4668, %v4668
    %v4715 = vpack.c.bf16 %v4670, %v4670
    %v4716 = vpack.c.bf16 %v4709, %v4709
    %v4717 = vld [vmem:[#allocation14] sm:$0x4]
    %v4719 = vunpack.c.l.b16 %v4717
    %v4720 = vpack.c.b16 %v4719, %v4719
    %v4721 = vrot.slane %v4720, 2
    %v4723 = vsel %vm4525, %v4721, 0
    %4725 = vmatprep.subr.bf16.mxu0 %v4519
    %4726 = vmatpush1.bf16.msra.mxu0 %v4518
    %4727 = vmatprep.subr.bf16.mxu0 %v4536
    %4728 = vmatpush1.bf16.msra.mxu0 %v4533
    %4729 = vmatprep.subr.bf16.mxu0 0
    %4730 = vmatpush1.bf16.msra.mxu0 0
    %4731 = vmatprep.subr.bf16.mxu0 0
    %4732 = vmatpush1.bf16.msra.mxu0 0
    %4733 = vmatprep.subr.bf16.mxu0 0
    %4734 = vmatpush1.bf16.msra.mxu0 0
    %4735 = vmatprep.subr.bf16.mxu0 0
    %4736 = vmatpush1.bf16.msra.mxu0 0
    %4737 = vmatprep.subr.bf16.mxu0 0
    %4738 = vmatpush1.bf16.msra.mxu0 0
    %4739 = vmatprep.subr.bf16.mxu0 0
    %4740 = vmatpush1.bf16.msra.mxu0 0
    %4741 = vmatprep.subr.bf16.mxu0 0
    %4742 = vmatpush1.bf16.msra.mxu0 0
    %4743 = vmatprep.subr.bf16.mxu0 0
    %4744 = vmatpush1.bf16.msra.mxu0 0
    %4745 = vmatprep.subr.bf16.mxu0 0
    %4746 = vmatpush1.bf16.msra.mxu0 0
    %4747 = vmatprep.subr.bf16.mxu0 0
    %4748 = vmatpush1.bf16.msra.mxu0 0
    %4749 = vmatprep.subr.bf16.mxu0 0
    %4750 = vmatpush1.bf16.msra.mxu0 0
    %4751 = vmatprep.subr.bf16.mxu0 0
    %4752 = vmatpush1.bf16.msra.mxu0 0
    %4753 = vmatprep.subr.bf16.mxu0 0
    %4754 = vmatpush1.bf16.msra.mxu0 0
    %4755 = vmatprep.subr.bf16.mxu0 0
    %4756 = vmatpush1.bf16.msra.mxu0 0
    %4757 = vmatprep.mubr.bf16.mxu0 0
    %4758 = vmatmul.mubr.bf16.gmra.mrb[0].mxu0 %v4723
    %v4759 = vpop.f32.mrb[0].mxu0
    %v4760 = vadd.f32 0.0, %v4759
    %v4761 = vpop.f32.mrb[0].mxu0
    %v4762 = vadd.f32 0.0, %v4761
    %v4763 = vpop.f32.mrb[0].mxu0
    %v4764 = vpop.f32.mrb[0].mxu0
    %4765 = vdwg.mxu0
    %4766 = vmatprep.subr.bf16.mxu0 0
    %4767 = vmatpush1.bf16.msra.mxu0 %v4520
    %4768 = vmatprep.subr.bf16.mxu0 0
    %4769 = vmatpush1.bf16.msra.mxu0 %v4539
    %4770 = vmatprep.subr.bf16.mxu0 0
    %4771 = vmatpush1.bf16.msra.mxu0 0
    %4772 = vmatprep.subr.bf16.mxu0 0
    %4773 = vmatpush1.bf16.msra.mxu0 0
    %4774 = vmatprep.subr.bf16.mxu0 0
    %4775 = vmatpush1.bf16.msra.mxu0 0
    %4776 = vmatprep.subr.bf16.mxu0 0
    %4777 = vmatpush1.bf16.msra.mxu0 0
    %4778 = vmatprep.subr.bf16.mxu0 0
    %4779 = vmatpush1.bf16.msra.mxu0 0
    %4780 = vmatprep.subr.bf16.mxu0 0
    %4781 = vmatpush1.bf16.msra.mxu0 0
    %4782 = vmatprep.subr.bf16.mxu0 0
    %4783 = vmatpush1.bf16.msra.mxu0 0
    %4784 = vmatprep.subr.bf16.mxu0 0
    %4785 = vmatpush1.bf16.msra.mxu0 0
    %4786 = vmatprep.subr.bf16.mxu0 0
    %4787 = vmatpush1.bf16.msra.mxu0 0
    %4788 = vmatprep.subr.bf16.mxu0 0
    %4789 = vmatpush1.bf16.msra.mxu0 0
    %4790 = vmatprep.subr.bf16.mxu0 0
    %4791 = vmatpush1.bf16.msra.mxu0 0
    %4792 = vmatprep.subr.bf16.mxu0 0
    %4793 = vmatpush1.bf16.msra.mxu0 0
    %4794 = vmatprep.subr.bf16.mxu0 0
    %4795 = vmatpush1.bf16.msra.mxu0 0
    %4796 = vmatprep.subr.bf16.mxu0 0
    %4797 = vmatpush1.bf16.msra.mxu0 0
    %4798 = vmatprep.mubr.bf16.mxu0 0
    %4799 = vmatmul.mubr.bf16.gmra.mrb[0].mxu0 %v4723
    %v4800 = vpop.f32.mrb[0].mxu0
    %v4801 = vadd.f32 0.0, %v4800
    %v4802 = vpop.f32.mrb[0].mxu0
    %v4803 = vpop.f32.mrb[0].mxu0
    %v4804 = vpop.f32.mrb[0].mxu0
    %4805 = vdwg.mxu0
    %v4806 = vpack.c.bf16 %v4760, %v4760
    %v4807 = vpack.c.bf16 %v4762, %v4762
    %v4808 = vpack.c.bf16 %v4801, %v4801
    %v4809 = vld [vmem:[#allocation14] sm:$0x8]
    %v4811 = vunpack.c.l.b16 %v4809
    %v4812 = vpack.c.b16 %v4811, %v4811
    %v4813 = vrot.slane %v4812, 3
    %v4815 = vsel %vm4525, %v4813, 0
    %4817 = vmatprep.subr.bf16.mxu0 %v4519
    %4818 = vmatpush1.bf16.msra.mxu0 %v4518
    %4819 = vmatprep.subr.bf16.mxu0 %v4536
    %4820 = vmatpush1.bf16.msra.mxu0 %v4533
    %4821 = vmatprep.subr.bf16.mxu0 0
    %4822 = vmatpush1.bf16.msra.mxu0 0
    %4823 = vmatprep.subr.bf16.mxu0 0
    %4824 = vmatpush1.bf16.msra.mxu0 0
    %4825 = vmatprep.subr.bf16.mxu0 0
    %4826 = vmatpush1.bf16.msra.mxu0 0
    %4827 = vmatprep.subr.bf16.mxu0 0
    %4828 = vmatpush1.bf16.msra.mxu0 0
    %4829 = vmatprep.subr.bf16.mxu0 0
    %4830 = vmatpush1.bf16.msra.mxu0 0
    %4831 = vmatprep.subr.bf16.mxu0 0
    %4832 = vmatpush1.bf16.msra.mxu0 0
    %4833 = vmatprep.subr.bf16.mxu0 0
    %4834 = vmatpush1.bf16.msra.mxu0 0
    %4835 = vmatprep.subr.bf16.mxu0 0
    %4836 = vmatpush1.bf16.msra.mxu0 0
    %4837 = vmatprep.subr.bf16.mxu0 0
    %4838 = vmatpush1.bf16.msra.mxu0 0
    %4839 = vmatprep.subr.bf16.mxu0 0
    %4840 = vmatpush1.bf16.msra.mxu0 0
    %4841 = vmatprep.subr.bf16.mxu0 0
    %4842 = vmatpush1.bf16.msra.mxu0 0
    %4843 = vmatprep.subr.bf16.mxu0 0
    %4844 = vmatpush1.bf16.msra.mxu0 0
    %4845 = vmatprep.subr.bf16.mxu0 0
    %4846 = vmatpush1.bf16.msra.mxu0 0
    %4847 = vmatprep.subr.bf16.mxu0 0
    %4848 = vmatpush1.bf16.msra.mxu0 0
    %4849 = vmatprep.mubr.bf16.mxu0 0
    %4850 = vmatmul.mubr.bf16.gmra.mrb[0].mxu0 %v4815
    %v4851 = vpop.f32.mrb[0].mxu0
    %v4852 = vadd.f32 0.0, %v4851
    %v4853 = vpop.f32.mrb[0].mxu0
    %v4854 = vadd.f32 0.0, %v4853
    %v4855 = vpop.f32.mrb[0].mxu0
    %v4856 = vpop.f32.mrb[0].mxu0
    %4857 = vdwg.mxu0
    %4858 = vmatprep.subr.bf16.mxu0 0
    %4859 = vmatpush1.bf16.msra.mxu0 %v4520
    %4860 = vmatprep.subr.bf16.mxu0 0
    %4861 = vmatpush1.bf16.msra.mxu0 %v4539
    %4862 = vmatprep.subr.bf16.mxu0 0
    %4863 = vmatpush1.bf16.msra.mxu0 0
    %4864 = vmatprep.subr.bf16.mxu0 0
    %4865 = vmatpush1.bf16.msra.mxu0 0
    %4866 = vmatprep.subr.bf16.mxu0 0
    %4867 = vmatpush1.bf16.msra.mxu0 0
    %4868 = vmatprep.subr.bf16.mxu0 0
    %4869 = vmatpush1.bf16.msra.mxu0 0
    %4870 = vmatprep.subr.bf16.mxu0 0
    %4871 = vmatpush1.bf16.msra.mxu0 0
    %4872 = vmatprep.subr.bf16.mxu0 0
    %4873 = vmatpush1.bf16.msra.mxu0 0
    %4874 = vmatprep.subr.bf16.mxu0 0
    %4875 = vmatpush1.bf16.msra.mxu0 0
    %4876 = vmatprep.subr.bf16.mxu0 0
    %4877 = vmatpush1.bf16.msra.mxu0 0
    %4878 = vmatprep.subr.bf16.mxu0 0
    %4879 = vmatpush1.bf16.msra.mxu0 0
    %4880 = vmatprep.subr.bf16.mxu0 0
    %4881 = vmatpush1.bf16.msra.mxu0 0
    %4882 = vmatprep.subr.bf16.mxu0 0
    %4883 = vmatpush1.bf16.msra.mxu0 0
    %4884 = vmatprep.subr.bf16.mxu0 0
    %4885 = vmatpush1.bf16.msra.mxu0 0
    %4886 = vmatprep.subr.bf16.mxu0 0
    %4887 = vmatpush1.bf16.msra.mxu0 0
    %4888 = vmatprep.subr.bf16.mxu0 0
    %4889 = vmatpush1.bf16.msra.mxu0 0
    %4890 = vmatprep.mubr.bf16.mxu0 0
    %4891 = vmatmul.mubr.bf16.gmra.mrb[0].mxu0 %v4815
    %v4892 = vpop.f32.mrb[0].mxu0
    %v4893 = vadd.f32 0.0, %v4892
    %v4894 = vpop.f32.mrb[0].mxu0
    %v4895 = vpop.f32.mrb[0].mxu0
    %v4896 = vpop.f32.mrb[0].mxu0
    %4897 = vdwg.mxu0
    %v4898 = vpack.c.bf16 %v4852, %v4852
    %v4899 = vpack.c.bf16 %v4854, %v4854
    %v4900 = vpack.c.bf16 %v4893, %v4893
    %v4901 = vld [vmem:[#allocation14 + $0x4] sm:$0x1]
    %v4903 = vsel %vm4525, %v4901, 0
    %4905 = vmatprep.subr.bf16.mxu0 %v4519
    %4906 = vmatpush1.bf16.msra.mxu0 %v4518
    %4907 = vmatprep.subr.bf16.mxu0 %v4536
    %4908 = vmatpush1.bf16.msra.mxu0 %v4533
    %4909 = vmatprep.subr.bf16.mxu0 0
    %4910 = vmatpush1.bf16.msra.mxu0 0
    %4911 = vmatprep.subr.bf16.mxu0 0
    %4912 = vmatpush1.bf16.msra.mxu0 0
    %4913 = vmatprep.subr.bf16.mxu0 0
    %4914 = vmatpush1.bf16.msra.mxu0 0
    %4915 = vmatprep.subr.bf16.mxu0 0
    %4916 = vmatpush1.bf16.msra.mxu0 0
    %4917 = vmatprep.subr.bf16.mxu0 0
    %4918 = vmatpush1.bf16.msra.mxu0 0
    %4919 = vmatprep.subr.bf16.mxu0 0
    %4920 = vmatpush1.bf16.msra.mxu0 0
    %4921 = vmatprep.subr.bf16.mxu0 0
    %4922 = vmatpush1.bf16.msra.mxu0 0
    %4923 = vmatprep.subr.bf16.mxu0 0
    %4924 = vmatpush1.bf16.msra.mxu0 0
    %4925 = vmatprep.subr.bf16.mxu0 0
    %4926 = vmatpush1.bf16.msra.mxu0 0
    %4927 = vmatprep.subr.bf16.mxu0 0
    %4928 = vmatpush1.bf16.msra.mxu0 0
    %4929 = vmatprep.subr.bf16.mxu0 0
    %4930 = vmatpush1.bf16.msra.mxu0 0
    %4931 = vmatprep.subr.bf16.mxu0 0
    %4932 = vmatpush1.bf16.msra.mxu0 0
    %4933 = vmatprep.subr.bf16.mxu0 0
    %4934 = vmatpush1.bf16.msra.mxu0 0
    %4935 = vmatprep.subr.bf16.mxu0 0
    %4936 = vmatpush1.bf16.msra.mxu0 0
    %4937 = vmatprep.mubr.bf16.mxu0 0
    %4938 = vmatmul.mubr.bf16.gmra.mrb[0].mxu0 %v4903
    %v4939 = vpop.f32.mrb[0].mxu0
    %v4940 = vadd.f32 0.0, %v4939
    %v4941 = vpop.f32.mrb[0].mxu0
    %v4942 = vadd.f32 0.0, %v4941
    %v4943 = vpop.f32.mrb[0].mxu0
    %v4944 = vpop.f32.mrb[0].mxu0
    %4945 = vdwg.mxu0
    %4946 = vmatprep.subr.bf16.mxu0 0
    %4947 = vmatpush1.bf16.msra.mxu0 %v4520
    %4948 = vmatprep.subr.bf16.mxu0 0
    %4949 = vmatpush1.bf16.msra.mxu0 %v4539
    %4950 = vmatprep.subr.bf16.mxu0 0
    %4951 = vmatpush1.bf16.msra.mxu0 0
    %4952 = vmatprep.subr.bf16.mxu0 0
    %4953 = vmatpush1.bf16.msra.mxu0 0
    %4954 = vmatprep.subr.bf16.mxu0 0
    %4955 = vmatpush1.bf16.msra.mxu0 0
    %4956 = vmatprep.subr.bf16.mxu0 0
    %4957 = vmatpush1.bf16.msra.mxu0 0
    %4958 = vmatprep.subr.bf16.mxu0 0
    %4959 = vmatpush1.bf16.msra.mxu0 0
    %4960 = vmatprep.subr.bf16.mxu0 0
    %4961 = vmatpush1.bf16.msra.mxu0 0
    %4962 = vmatprep.subr.bf16.mxu0 0
    %4963 = vmatpush1.bf16.msra.mxu0 0
    %4964 = vmatprep.subr.bf16.mxu0 0
    %4965 = vmatpush1.bf16.msra.mxu0 0
    %4966 = vmatprep.subr.bf16.mxu0 0
    %4967 = vmatpush1.bf16.msra.mxu0 0
    %4968 = vmatprep.subr.bf16.mxu0 0
    %4969 = vmatpush1.bf16.msra.mxu0 0
    %4970 = vmatprep.subr.bf16.mxu0 0
    %4971 = vmatpush1.bf16.msra.mxu0 0
    %4972 = vmatprep.subr.bf16.mxu0 0
    %4973 = vmatpush1.bf16.msra.mxu0 0
    %4974 = vmatprep.subr.bf16.mxu0 0
    %4975 = vmatpush1.bf16.msra.mxu0 0
    %4976 = vmatprep.subr.bf16.mxu0 0
    %4977 = vmatpush1.bf16.msra.mxu0 0
    %4978 = vmatprep.mubr.bf16.mxu0 0
    %4979 = vmatmul.mubr.bf16.gmra.mrb[0].mxu0 %v4903
    %v4980 = vpop.f32.mrb[0].mxu0
    %v4981 = vadd.f32 0.0, %v4980
    %v4982 = vpop.f32.mrb[0].mxu0
    %v4983 = vpop.f32.mrb[0].mxu0
    %v4984 = vpop.f32.mrb[0].mxu0
    %4985 = vdwg.mxu0
    %v4986 = vpack.c.bf16 %v4940, %v4940
    %v4987 = vpack.c.bf16 %v4942, %v4942
    %v4988 = vpack.c.bf16 %v4981, %v4981
    %v4989 = vld [vmem:[#allocation16] sm:$0xf]
    %v4990 = vld [vmem:[#allocation16 + $0x4] sm:$0xf]
    %v4991 = vld [vmem:[#allocation16 + $0x8] sm:$0xf]
    %v4992 = vld [vmem:[#allocation16 + $0xc] sm:$0xf]
    %v4993 = vld [vmem:[#allocation16 + $0x10] sm:$0xf]
    %v4994 = vld [vmem:[#allocation16 + $0x14] sm:$0xf]
    %v4995 = vld [vmem:[#allocation16 + $0x18] sm:$0xf]
    %v4996 = vld [vmem:[#allocation16 + $0x1c] sm:$0xf]
    %v4997 = vld [vmem:[#allocation16 + $0x20] sm:$0xf]
    %v4998 = vld [vmem:[#allocation16 + $0x24] sm:$0xf]
    %v4999 = vld [vmem:[#allocation16 + $0x28] sm:$0xf]
    %v5000 = vld [vmem:[#allocation16 + $0x2c] sm:$0xf]
    %v5001 = vld [vmem:[#allocation16 + $0x30] sm:$0xf]
    %v5002 = vld [vmem:[#allocation16 + $0x34] sm:$0xf]
    %v5003 = vld [vmem:[#allocation16 + $0x38] sm:$0xf]
    %v5004 = vld [vmem:[#allocation16 + $0x3c] sm:$0xf]
    %v5005 = vld [vmem:[#allocation16 + $0x40] sm:$0xf]
    %v5006 = vld [vmem:[#allocation16 + $0x44] sm:$0xf]
    %v5007 = vld [vmem:[#allocation16 + $0x48] sm:$0xf]
    %v5008 = vld [vmem:[#allocation16 + $0x4c] sm:$0xf]
    %v5009 = vld [vmem:[#allocation16 + $0x50] sm:$0xf]
    %v5010 = vld [vmem:[#allocation16 + $0x54] sm:$0xf]
    %v5011 = vld [vmem:[#allocation16 + $0x58] sm:$0xf]
    %v5012 = vld [vmem:[#allocation16 + $0x5c] sm:$0xf]
    %v5013 = vld [vmem:[#allocation16 + $0x60] sm:$0xf]
    %v5014 = vld [vmem:[#allocation16 + $0x64] sm:$0xf]
    %v5015 = vld [vmem:[#allocation16 + $0x68] sm:$0xf]
    %v5016 = vld [vmem:[#allocation16 + $0x6c] sm:$0xf]
    %v5017 = vld [vmem:[#allocation16 + $0x70] sm:$0xf]
    %v5018 = vld [vmem:[#allocation16 + $0x74] sm:$0xf]
    %v5019 = vld [vmem:[#allocation16 + $0x78] sm:$0xf]
    %v5020 = vld [vmem:[#allocation16 + $0x7c] sm:$0xf]
    %v5021 = vld [vmem:[#allocation16 + $0x80] sm:$0xf]
    %v5022 = vld [vmem:[#allocation16 + $0x84] sm:$0xf]
    %v5023 = vld [vmem:[#allocation16 + $0x88] sm:$0xf]
    %v5024 = vld [vmem:[#allocation16 + $0x8c] sm:$0xf]
    %v5025 = vld [vmem:[#allocation16 + $0x90] sm:$0xf]
    %v5026 = vld [vmem:[#allocation16 + $0x94] sm:$0xf]
    %v5027 = vld [vmem:[#allocation16 + $0x98] sm:$0xf]
    %v5028 = vld [vmem:[#allocation16 + $0x9c] sm:$0xf]
    %v5029 = vld [vmem:[#allocation16 + $0xa0] sm:$0xf]
    %v5030 = vld [vmem:[#allocation16 + $0xa4] sm:$0xf]
    %v5031 = vld [vmem:[#allocation16 + $0xa8] sm:$0xf]
    %v5032 = vld [vmem:[#allocation16 + $0xac] sm:$0xf]
    %v5033 = vld [vmem:[#allocation16 + $0xb0] sm:$0xf]
    %v5034 = vld [vmem:[#allocation16 + $0xb4] sm:$0xf]
    %v5035 = vld [vmem:[#allocation16 + $0xb8] sm:$0xf]
    %v5036 = vld [vmem:[#allocation16 + $0xbc] sm:$0xf]
    %v5037 = vld [vmem:[#allocation16 + $0xc0] sm:$0xf]
    %v5038 = vld [vmem:[#allocation16 + $0xc4] sm:$0xf]
    %v5039 = vld [vmem:[#allocation16 + $0xc8] sm:$0xf]
    %v5040 = vld [vmem:[#allocation16 + $0xcc] sm:$0xf]
    %v5041 = vld [vmem:[#allocation16 + $0xd0] sm:$0xf]
    %v5042 = vld [vmem:[#allocation16 + $0xd4] sm:$0xf]
    %v5043 = vld [vmem:[#allocation16 + $0xd8] sm:$0xf]
    %v5044 = vld [vmem:[#allocation16 + $0xdc] sm:$0xf]
    %v5045 = vld [vmem:[#allocation16 + $0xe0] sm:$0xf]
    %v5046 = vld [vmem:[#allocation16 + $0xe4] sm:$0xf]
    %v5047 = vld [vmem:[#allocation16 + $0xe8] sm:$0xf]
    %v5048 = vld [vmem:[#allocation16 + $0xec] sm:$0xf]
    %v5049 = vld [vmem:[#allocation16 + $0xf0] sm:$0xf]
    %v5050 = vld [vmem:[#allocation16 + $0xf4] sm:$0xf]
    %v5051 = vld [vmem:[#allocation16 + $0xf8] sm:$0xf]
    %v5052 = vld [vmem:[#allocation16 + $0xfc] sm:$0xf]
    %v5053 = vld [vmem:[#allocation16 + $0x100] sm:$0xf]
    %v5054 = vld [vmem:[#allocation16 + $0x104] sm:$0xf]
    %v5055 = vld [vmem:[#allocation16 + $0x108] sm:$0xf]
    %v5056 = vld [vmem:[#allocation16 + $0x10c] sm:$0xf]
    %v5057 = vld [vmem:[#allocation16 + $0x110] sm:$0xf]
    %v5058 = vld [vmem:[#allocation16 + $0x114] sm:$0xf]
    %v5059 = vld [vmem:[#allocation16 + $0x118] sm:$0xf]
    %v5060 = vld [vmem:[#allocation16 + $0x11c] sm:$0xf]
    %v5061 = vld [vmem:[#allocation16 + $0x120] sm:$0xf]
    %v5062 = vld [vmem:[#allocation16 + $0x124] sm:$0xf]
    %v5063 = vld [vmem:[#allocation16 + $0x128] sm:$0xf]
    %v5064 = vld [vmem:[#allocation16 + $0x12c] sm:$0xf]
    %v5065 = vld [vmem:[#allocation16 + $0x130] sm:$0xf]
    %v5066 = vld [vmem:[#allocation16 + $0x134] sm:$0xf]
    %v5067 = vld [vmem:[#allocation16 + $0x138] sm:$0xf]
    %v5068 = vld [vmem:[#allocation16 + $0x13c] sm:$0xf]
    %v5069 = vld [vmem:[#allocation16 + $0x140] sm:$0xf]
    %v5070 = vld [vmem:[#allocation16 + $0x144] sm:$0xf]
    %v5071 = vld [vmem:[#allocation16 + $0x148] sm:$0xf]
    %v5072 = vld [vmem:[#allocation16 + $0x14c] sm:$0xf]
    %v5073 = vld [vmem:[#allocation16 + $0x150] sm:$0xf]
    %v5074 = vld [vmem:[#allocation16 + $0x154] sm:$0xf]
    %v5075 = vld [vmem:[#allocation16 + $0x158] sm:$0xf]
    %v5076 = vld [vmem:[#allocation16 + $0x15c] sm:$0xf]
    %v5077 = vld [vmem:[#allocation16 + $0x160] sm:$0xf]
    %v5078 = vld [vmem:[#allocation16 + $0x164] sm:$0xf]
    %v5079 = vld [vmem:[#allocation16 + $0x168] sm:$0xf]
    %v5080 = vld [vmem:[#allocation16 + $0x16c] sm:$0xf]
    %v5081 = vld [vmem:[#allocation16 + $0x170] sm:$0xf]
    %v5082 = vld [vmem:[#allocation16 + $0x174] sm:$0xf]
    %v5083 = vld [vmem:[#allocation16 + $0x178] sm:$0xf]
    %v5084 = vld [vmem:[#allocation16 + $0x17c] sm:$0xf]
    %v5085 = vld [vmem:[#allocation16 + $0x180] sm:$0xf]
    %v5086 = vld [vmem:[#allocation16 + $0x184] sm:$0xf]
    %v5087 = vld [vmem:[#allocation16 + $0x188] sm:$0xf]
    %v5088 = vld [vmem:[#allocation16 + $0x18c] sm:$0xf]
    %v5089 = vld [vmem:[#allocation16 + $0x190] sm:$0xf]
    %v5090 = vld [vmem:[#allocation16 + $0x194] sm:$0xf]
    %v5091 = vld [vmem:[#allocation16 + $0x198] sm:$0xf]
    %v5092 = vld [vmem:[#allocation16 + $0x19c] sm:$0xf]
    %v5093 = vld [vmem:[#allocation16 + $0x1a0] sm:$0xf]
    %v5094 = vld [vmem:[#allocation16 + $0x1a4] sm:$0xf]
    %v5095 = vld [vmem:[#allocation16 + $0x1a8] sm:$0xf]
    %v5096 = vld [vmem:[#allocation16 + $0x1ac] sm:$0xf]
    %v5097 = vld [vmem:[#allocation16 + $0x1b0] sm:$0xf]
    %v5098 = vld [vmem:[#allocation16 + $0x1b4] sm:$0xf]
    %v5099 = vld [vmem:[#allocation16 + $0x1b8] sm:$0xf]
    %v5100 = vld [vmem:[#allocation16 + $0x1bc] sm:$0xf]
    %v5101 = vld [vmem:[#allocation16 + $0x1c0] sm:$0xf]
    %v5102 = vld [vmem:[#allocation16 + $0x1c4] sm:$0xf]
    %v5103 = vld [vmem:[#allocation16 + $0x1c8] sm:$0xf]
    %v5104 = vld [vmem:[#allocation16 + $0x1cc] sm:$0xf]
    %v5105 = vld [vmem:[#allocation16 + $0x1d0] sm:$0xf]
    %v5106 = vld [vmem:[#allocation16 + $0x1d4] sm:$0xf]
    %v5107 = vld [vmem:[#allocation16 + $0x1d8] sm:$0xf]
    %v5108 = vld [vmem:[#allocation16 + $0x1dc] sm:$0xf]
    %v5109 = vld [vmem:[#allocation16 + $0x1e0] sm:$0xf]
    %v5110 = vld [vmem:[#allocation16 + $0x1e4] sm:$0xf]
    %v5111 = vld [vmem:[#allocation16 + $0x1e8] sm:$0xf]
    %v5112 = vld [vmem:[#allocation16 + $0x1ec] sm:$0xf]
    %v5113 = vld [vmem:[#allocation16 + $0x1f0] sm:$0xf]
    %v5114 = vld [vmem:[#allocation16 + $0x1f4] sm:$0xf]
    %v5115 = vld [vmem:[#allocation16 + $0x1f8] sm:$0xf]
    %v5116 = vld [vmem:[#allocation16 + $0x1fc] sm:$0xf]
    %v5117 = vld [vmem:[#allocation16 + $0x200] sm:$0xf]
    %v5118 = vld [vmem:[#allocation16 + $0x204] sm:$0xf]
    %v5119 = vld [vmem:[#allocation16 + $0x208] sm:$0xf]
    %v5120 = vld [vmem:[#allocation16 + $0x20c] sm:$0xf]
    %v5121 = vld [vmem:[#allocation16 + $0x210] sm:$0xf]
    %v5122 = vld [vmem:[#allocation16 + $0x214] sm:$0xf]
    %v5123 = vld [vmem:[#allocation16 + $0x218] sm:$0xf]
    %v5124 = vld [vmem:[#allocation16 + $0x21c] sm:$0xf]
    %v5125 = vld [vmem:[#allocation16 + $0x220] sm:$0xf]
    %v5126 = vld [vmem:[#allocation16 + $0x224] sm:$0xf]
    %v5127 = vld [vmem:[#allocation16 + $0x228] sm:$0xf]
    %v5128 = vld [vmem:[#allocation16 + $0x22c] sm:$0xf]
    %v5129 = vld [vmem:[#allocation16 + $0x230] sm:$0xf]
    %v5130 = vld [vmem:[#allocation16 + $0x234] sm:$0xf]
    %v5131 = vld [vmem:[#allocation16 + $0x238] sm:$0xf]
    %v5132 = vld [vmem:[#allocation16 + $0x23c] sm:$0xf]
    %v5133 = vld [vmem:[#allocation16 + $0x240] sm:$0xf]
    %v5134 = vld [vmem:[#allocation16 + $0x244] sm:$0xf]
    %v5135 = vld [vmem:[#allocation16 + $0x248] sm:$0xf]
    %v5136 = vld [vmem:[#allocation16 + $0x24c] sm:$0xf]
    %v5137 = vld [vmem:[#allocation16 + $0x250] sm:$0xf]
    %v5138 = vld [vmem:[#allocation16 + $0x254] sm:$0xf]
    %v5139 = vld [vmem:[#allocation16 + $0x258] sm:$0xf]
    %v5140 = vld [vmem:[#allocation16 + $0x25c] sm:$0xf]
    %v5141 = vld [vmem:[#allocation16 + $0x260] sm:$0xf]
    %v5142 = vld [vmem:[#allocation16 + $0x264] sm:$0xf]
    %v5143 = vld [vmem:[#allocation16 + $0x268] sm:$0xf]
    %v5144 = vld [vmem:[#allocation16 + $0x26c] sm:$0xf]
    %v5145 = vld [vmem:[#allocation16 + $0x270] sm:$0xf]
    %v5146 = vld [vmem:[#allocation16 + $0x274] sm:$0xf]
    %v5147 = vld [vmem:[#allocation16 + $0x278] sm:$0xf]
    %v5148 = vld [vmem:[#allocation16 + $0x27c] sm:$0xf]
    %v5149 = vld [vmem:[#allocation16 + $0x280] sm:$0xf]
    %v5150 = vld [vmem:[#allocation16 + $0x284] sm:$0xf]
    %v5151 = vld [vmem:[#allocation16 + $0x288] sm:$0xf]
    %v5152 = vld [vmem:[#allocation16 + $0x28c] sm:$0xf]
    %v5153 = vld [vmem:[#allocation16 + $0x290] sm:$0xf]
    %v5154 = vld [vmem:[#allocation16 + $0x294] sm:$0xf]
    %v5155 = vld [vmem:[#allocation16 + $0x298] sm:$0xf]
    %v5156 = vld [vmem:[#allocation16 + $0x29c] sm:$0xf]
    %v5157 = vld [vmem:[#allocation16 + $0x2a0] sm:$0xf]
    %v5158 = vld [vmem:[#allocation16 + $0x2a4] sm:$0xf]
    %v5159 = vld [vmem:[#allocation16 + $0x2a8] sm:$0xf]
    %v5160 = vld [vmem:[#allocation16 + $0x2ac] sm:$0xf]
    %v5161 = vld [vmem:[#allocation16 + $0x2b0] sm:$0xf]
    %v5162 = vld [vmem:[#allocation16 + $0x2b4] sm:$0xf]
    %v5163 = vld [vmem:[#allocation16 + $0x2b8] sm:$0xf]
    %v5164 = vld [vmem:[#allocation16 + $0x2bc] sm:$0xf]
    %v5165 = vld [vmem:[#allocation16 + $0x2c0] sm:$0xf]
    %v5166 = vld [vmem:[#allocation16 + $0x2c4] sm:$0xf]
    %v5167 = vld [vmem:[#allocation16 + $0x2c8] sm:$0xf]
    %v5168 = vld [vmem:[#allocation16 + $0x2cc] sm:$0xf]
    %v5169 = vld [vmem:[#allocation16 + $0x2d0] sm:$0xf]
    %v5170 = vld [vmem:[#allocation16 + $0x2d4] sm:$0xf]
    %v5171 = vld [vmem:[#allocation16 + $0x2d8] sm:$0xf]
    %v5172 = vld [vmem:[#allocation16 + $0x2dc] sm:$0xf]
    %v5173 = vld [vmem:[#allocation16 + $0x2e0] sm:$0xf]
    %v5174 = vld [vmem:[#allocation16 + $0x2e4] sm:$0xf]
    %v5175 = vld [vmem:[#allocation16 + $0x2e8] sm:$0xf]
    %v5176 = vld [vmem:[#allocation16 + $0x2ec] sm:$0xf]
    %v5177 = vld [vmem:[#allocation16 + $0x2f0] sm:$0xf]
    %v5178 = vld [vmem:[#allocation16 + $0x2f4] sm:$0xf]
    %v5179 = vld [vmem:[#allocation16 + $0x2f8] sm:$0xf]
    %v5180 = vld [vmem:[#allocation16 + $0x2fc] sm:$0xf]
    %v5181 = vld [vmem:[#allocation16 + $0x300] sm:$0xf]
    %v5182 = vld [vmem:[#allocation16 + $0x304] sm:$0xf]
    %v5183 = vld [vmem:[#allocation16 + $0x308] sm:$0xf]
    %v5184 = vld [vmem:[#allocation16 + $0x30c] sm:$0xf]
    %v5185 = vld [vmem:[#allocation16 + $0x310] sm:$0xf]
    %v5186 = vld [vmem:[#allocation16 + $0x314] sm:$0xf]
    %v5187 = vld [vmem:[#allocation16 + $0x318] sm:$0xf]
    %v5188 = vld [vmem:[#allocation16 + $0x31c] sm:$0xf]
    %v5189 = vld [vmem:[#allocation16 + $0x320] sm:$0xf]
    %v5190 = vld [vmem:[#allocation16 + $0x324] sm:$0xf]
    %v5191 = vld [vmem:[#allocation16 + $0x328] sm:$0xf]
    %v5192 = vld [vmem:[#allocation16 + $0x32c] sm:$0xf]
    %v5193 = vld [vmem:[#allocation16 + $0x330] sm:$0xf]
    %v5194 = vld [vmem:[#allocation16 + $0x334] sm:$0xf]
    %v5195 = vld [vmem:[#allocation16 + $0x338] sm:$0xf]
    %v5196 = vld [vmem:[#allocation16 + $0x33c] sm:$0xf]
    %v5197 = vld [vmem:[#allocation16 + $0x340] sm:$0xf]
    %v5198 = vld [vmem:[#allocation16 + $0x344] sm:$0xf]
    %v5199 = vld [vmem:[#allocation16 + $0x348] sm:$0xf]
    %v5200 = vld [vmem:[#allocation16 + $0x34c] sm:$0xf]
    %v5201 = vld [vmem:[#allocation16 + $0x350] sm:$0xf]
    %v5202 = vld [vmem:[#allocation16 + $0x354] sm:$0xf]
    %v5203 = vld [vmem:[#allocation16 + $0x358] sm:$0xf]
    %v5204 = vld [vmem:[#allocation16 + $0x35c] sm:$0xf]
    %v5205 = vld [vmem:[#allocation16 + $0x360] sm:$0xf]
    %v5206 = vld [vmem:[#allocation16 + $0x364] sm:$0xf]
    %v5207 = vld [vmem:[#allocation16 + $0x368] sm:$0xf]
    %v5208 = vld [vmem:[#allocation16 + $0x36c] sm:$0xf]
    %v5209 = vld [vmem:[#allocation16 + $0x370] sm:$0xf]
    %v5210 = vld [vmem:[#allocation16 + $0x374] sm:$0xf]
    %v5211 = vld [vmem:[#allocation16 + $0x378] sm:$0xf]
    %v5212 = vld [vmem:[#allocation16 + $0x37c] sm:$0xf]
    %v5213 = vld [vmem:[#allocation16 + $0x380] sm:$0xf]
    %v5214 = vld [vmem:[#allocation16 + $0x384] sm:$0xf]
    %v5215 = vld [vmem:[#allocation16 + $0x388] sm:$0xf]
    %v5216 = vld [vmem:[#allocation16 + $0x38c] sm:$0xf]
    %v5217 = vld [vmem:[#allocation16 + $0x390] sm:$0xf]
    %v5218 = vld [vmem:[#allocation16 + $0x394] sm:$0xf]
    %v5219 = vld [vmem:[#allocation16 + $0x398] sm:$0xf]
    %v5220 = vld [vmem:[#allocation16 + $0x39c] sm:$0xf]
    %v5221 = vld [vmem:[#allocation16 + $0x3a0] sm:$0xf]
    %v5222 = vld [vmem:[#allocation16 + $0x3a4] sm:$0xf]
    %v5223 = vld [vmem:[#allocation16 + $0x3a8] sm:$0xf]
    %v5224 = vld [vmem:[#allocation16 + $0x3ac] sm:$0xf]
    %v5225 = vld [vmem:[#allocation16 + $0x3b0] sm:$0xf]
    %v5226 = vld [vmem:[#allocation16 + $0x3b4] sm:$0xf]
    %v5227 = vld [vmem:[#allocation16 + $0x3b8] sm:$0xf]
    %v5228 = vld [vmem:[#allocation16 + $0x3bc] sm:$0xf]
    %v5229 = vld [vmem:[#allocation17] sm:$0x1]
    %v5231 = vlaneseq
    %v5232 = vshrl.u32 %v5231, 7
    %v5233 = vsub.s32 0, %v5232
    %v5234 = vrot.slane %v5229, %v5233
    %v5476 = vunpack.c.l.b16 %v4989
    %v5477 = vunpack.c.l.b16 %v4990
    %v5478 = vunpack.c.l.b16 %v4991
    %v5479 = vunpack.c.l.b16 %v4992
    %v5480 = vunpack.c.l.b16 %v4993
    %v5481 = vunpack.c.l.b16 %v4994
    %v5482 = vunpack.c.l.b16 %v4995
    %v5483 = vunpack.c.l.b16 %v4996
    %v5484 = vunpack.c.l.b16 %v4997
    %v5485 = vunpack.c.l.b16 %v4998
    %v5486 = vunpack.c.l.b16 %v4999
    %v5487 = vunpack.c.l.b16 %v5000
    %v5488 = vunpack.c.l.b16 %v5001
    %v5489 = vunpack.c.l.b16 %v5002
    %v5490 = vunpack.c.l.b16 %v5003
    %v5491 = vunpack.c.l.b16 %v5004
    %v5492 = vunpack.c.l.b16 %v5005
    %v5493 = vunpack.c.l.b16 %v5006
    %v5494 = vunpack.c.l.b16 %v5007
    %v5495 = vunpack.c.l.b16 %v5008
    %v5496 = vunpack.c.l.b16 %v5009
    %v5497 = vunpack.c.l.b16 %v5010
    %v5498 = vunpack.c.l.b16 %v5011
    %v5499 = vunpack.c.l.b16 %v5012
    %v5500 = vunpack.c.l.b16 %v5013
    %v5501 = vunpack.c.l.b16 %v5014
    %v5502 = vunpack.c.l.b16 %v5015
    %v5503 = vunpack.c.l.b16 %v5016
    %v5504 = vunpack.c.l.b16 %v5017
    %v5505 = vunpack.c.l.b16 %v5018
    %v5506 = vunpack.c.l.b16 %v5019
    %v5507 = vunpack.c.l.b16 %v5020
    %v5508 = vunpack.c.l.b16 %v5021
    %v5509 = vunpack.c.l.b16 %v5022
    %v5510 = vunpack.c.l.b16 %v5023
    %v5511 = vunpack.c.l.b16 %v5024
    %v5512 = vunpack.c.l.b16 %v5025
    %v5513 = vunpack.c.l.b16 %v5026
    %v5514 = vunpack.c.l.b16 %v5027
    %v5515 = vunpack.c.l.b16 %v5028
    %v5516 = vunpack.c.l.b16 %v5029
    %v5517 = vunpack.c.l.b16 %v5030
    %v5518 = vunpack.c.l.b16 %v5031
    %v5519 = vunpack.c.l.b16 %v5032
    %v5520 = vunpack.c.l.b16 %v5033
    %v5521 = vunpack.c.l.b16 %v5034
    %v5522 = vunpack.c.l.b16 %v5035
    %v5523 = vunpack.c.l.b16 %v5036
    %v5524 = vunpack.c.l.b16 %v5037
    %v5525 = vunpack.c.l.b16 %v5038
    %v5526 = vunpack.c.l.b16 %v5039
    %v5527 = vunpack.c.l.b16 %v5040
    %v5528 = vunpack.c.l.b16 %v5041
    %v5529 = vunpack.c.l.b16 %v5042
    %v5530 = vunpack.c.l.b16 %v5043
    %v5531 = vunpack.c.l.b16 %v5044
    %v5532 = vunpack.c.l.b16 %v5045
    %v5533 = vunpack.c.l.b16 %v5046
    %v5534 = vunpack.c.l.b16 %v5047
    %v5535 = vunpack.c.l.b16 %v5048
    %v5536 = vunpack.c.l.b16 %v5049
    %v5537 = vunpack.c.l.b16 %v5050
    %v5538 = vunpack.c.l.b16 %v5051
    %v5539 = vunpack.c.l.b16 %v5052
    %v5540 = vunpack.c.l.b16 %v5053
    %v5541 = vunpack.c.l.b16 %v5054
    %v5542 = vunpack.c.l.b16 %v5055
    %v5543 = vunpack.c.l.b16 %v5056
    %v5544 = vunpack.c.l.b16 %v5057
    %v5545 = vunpack.c.l.b16 %v5058
    %v5546 = vunpack.c.l.b16 %v5059
    %v5547 = vunpack.c.l.b16 %v5060
    %v5548 = vunpack.c.l.b16 %v5061
    %v5549 = vunpack.c.l.b16 %v5062
    %v5550 = vunpack.c.l.b16 %v5063
    %v5551 = vunpack.c.l.b16 %v5064
    %v5552 = vunpack.c.l.b16 %v5065
    %v5553 = vunpack.c.l.b16 %v5066
    %v5554 = vunpack.c.l.b16 %v5067
    %v5555 = vunpack.c.l.b16 %v5068
    %v5556 = vunpack.c.l.b16 %v5069
    %v5557 = vunpack.c.l.b16 %v5070
    %v5558 = vunpack.c.l.b16 %v5071
    %v5559 = vunpack.c.l.b16 %v5072
    %v5560 = vunpack.c.l.b16 %v5073
    %v5561 = vunpack.c.l.b16 %v5074
    %v5562 = vunpack.c.l.b16 %v5075
    %v5563 = vunpack.c.l.b16 %v5076
    %v5564 = vunpack.c.l.b16 %v5077
    %v5565 = vunpack.c.l.b16 %v5078
    %v5566 = vunpack.c.l.b16 %v5079
    %v5567 = vunpack.c.l.b16 %v5080
    %v5568 = vunpack.c.l.b16 %v5081
    %v5569 = vunpack.c.l.b16 %v5082
    %v5570 = vunpack.c.l.b16 %v5083
    %v5571 = vunpack.c.l.b16 %v5084
    %v5572 = vunpack.c.l.b16 %v5085
    %v5573 = vunpack.c.l.b16 %v5086
    %v5574 = vunpack.c.l.b16 %v5087
    %v5575 = vunpack.c.l.b16 %v5088
    %v5576 = vunpack.c.l.b16 %v5089
    %v5577 = vunpack.c.l.b16 %v5090
    %v5578 = vunpack.c.l.b16 %v5091
    %v5579 = vunpack.c.l.b16 %v5092
    %v5580 = vunpack.c.l.b16 %v5093
    %v5581 = vunpack.c.l.b16 %v5094
    %v5582 = vunpack.c.l.b16 %v5095
    %v5583 = vunpack.c.l.b16 %v5096
    %v5584 = vunpack.c.l.b16 %v5097
    %v5585 = vunpack.c.l.b16 %v5098
    %v5586 = vunpack.c.l.b16 %v5099
    %v5587 = vunpack.c.l.b16 %v5100
    %v5588 = vunpack.c.l.b16 %v5101
    %v5589 = vunpack.c.l.b16 %v5102
    %v5590 = vunpack.c.l.b16 %v5103
    %v5591 = vunpack.c.l.b16 %v5104
    %v5592 = vunpack.c.l.b16 %v5105
    %v5593 = vunpack.c.l.b16 %v5106
    %v5594 = vunpack.c.l.b16 %v5107
    %v5595 = vunpack.c.l.b16 %v5108
    %v5596 = vunpack.c.l.b16 %v5109
    %v5597 = vunpack.c.l.b16 %v5110
    %v5598 = vunpack.c.l.b16 %v5111
    %v5599 = vunpack.c.l.b16 %v5112
    %v5600 = vunpack.c.l.b16 %v5113
    %v5601 = vunpack.c.l.b16 %v5114
    %v5602 = vunpack.c.l.b16 %v5115
    %v5603 = vunpack.c.l.b16 %v5116
    %v5604 = vunpack.c.l.b16 %v5117
    %v5605 = vunpack.c.l.b16 %v5118
    %v5606 = vunpack.c.l.b16 %v5119
    %v5607 = vunpack.c.l.b16 %v5120
    %v5608 = vunpack.c.l.b16 %v5121
    %v5609 = vunpack.c.l.b16 %v5122
    %v5610 = vunpack.c.l.b16 %v5123
    %v5611 = vunpack.c.l.b16 %v5124
    %v5612 = vunpack.c.l.b16 %v5125
    %v5613 = vunpack.c.l.b16 %v5126
    %v5614 = vunpack.c.l.b16 %v5127
    %v5615 = vunpack.c.l.b16 %v5128
    %v5616 = vunpack.c.l.b16 %v5129
    %v5617 = vunpack.c.l.b16 %v5130
    %v5618 = vunpack.c.l.b16 %v5131
    %v5619 = vunpack.c.l.b16 %v5132
    %v5620 = vunpack.c.l.b16 %v5133
    %v5621 = vunpack.c.l.b16 %v5134
    %v5622 = vunpack.c.l.b16 %v5135
    %v5623 = vunpack.c.l.b16 %v5136
    %v5624 = vunpack.c.l.b16 %v5137
    %v5625 = vunpack.c.l.b16 %v5138
    %v5626 = vunpack.c.l.b16 %v5139
    %v5627 = vunpack.c.l.b16 %v5140
    %v5628 = vunpack.c.l.b16 %v5141
    %v5629 = vunpack.c.l.b16 %v5142
    %v5630 = vunpack.c.l.b16 %v5143
    %v5631 = vunpack.c.l.b16 %v5144
    %v5632 = vunpack.c.l.b16 %v5145
    %v5633 = vunpack.c.l.b16 %v5146
    %v5634 = vunpack.c.l.b16 %v5147
    %v5635 = vunpack.c.l.b16 %v5148
    %v5636 = vunpack.c.l.b16 %v5149
    %v5637 = vunpack.c.l.b16 %v5150
    %v5638 = vunpack.c.l.b16 %v5151
    %v5639 = vunpack.c.l.b16 %v5152
    %v5640 = vunpack.c.l.b16 %v5153
    %v5641 = vunpack.c.l.b16 %v5154
    %v5642 = vunpack.c.l.b16 %v5155
    %v5643 = vunpack.c.l.b16 %v5156
    %v5644 = vunpack.c.l.b16 %v5157
    %v5645 = vunpack.c.l.b16 %v5158
    %v5646 = vunpack.c.l.b16 %v5159
    %v5647 = vunpack.c.l.b16 %v5160
    %v5648 = vunpack.c.l.b16 %v5161
    %v5649 = vunpack.c.l.b16 %v5162
    %v5650 = vunpack.c.l.b16 %v5163
    %v5651 = vunpack.c.l.b16 %v5164
    %v5652 = vunpack.c.l.b16 %v5165
    %v5653 = vunpack.c.l.b16 %v5166
    %v5654 = vunpack.c.l.b16 %v5167
    %v5655 = vunpack.c.l.b16 %v5168
    %v5656 = vunpack.c.l.b16 %v5169
    %v5657 = vunpack.c.l.b16 %v5170
    %v5658 = vunpack.c.l.b16 %v5171
    %v5659 = vunpack.c.l.b16 %v5172
    %v5660 = vunpack.c.l.b16 %v5173
    %v5661 = vunpack.c.l.b16 %v5174
    %v5662 = vunpack.c.l.b16 %v5175
    %v5663 = vunpack.c.l.b16 %v5176
    %v5664 = vunpack.c.l.b16 %v5177
    %v5665 = vunpack.c.l.b16 %v5178
    %v5666 = vunpack.c.l.b16 %v5179
    %v5667 = vunpack.c.l.b16 %v5180
    %v5668 = vunpack.c.l.b16 %v5181
    %v5669 = vunpack.c.l.b16 %v5182
    %v5670 = vunpack.c.l.b16 %v5183
    %v5671 = vunpack.c.l.b16 %v5184
    %v5672 = vunpack.c.l.b16 %v5185
    %v5673 = vunpack.c.l.b16 %v5186
    %v5674 = vunpack.c.l.b16 %v5187
    %v5675 = vunpack.c.l.b16 %v5188
    %v5676 = vunpack.c.l.b16 %v5189
    %v5677 = vunpack.c.l.b16 %v5190
    %v5678 = vunpack.c.l.b16 %v5191
    %v5679 = vunpack.c.l.b16 %v5192
    %v5680 = vunpack.c.l.b16 %v5193
    %v5681 = vunpack.c.l.b16 %v5194
    %v5682 = vunpack.c.l.b16 %v5195
    %v5683 = vunpack.c.l.b16 %v5196
    %v5684 = vunpack.c.l.b16 %v5197
    %v5685 = vunpack.c.l.b16 %v5198
    %v5686 = vunpack.c.l.b16 %v5199
    %v5687 = vunpack.c.l.b16 %v5200
    %v5688 = vunpack.c.l.b16 %v5201
    %v5689 = vunpack.c.l.b16 %v5202
    %v5690 = vunpack.c.l.b16 %v5203
    %v5691 = vunpack.c.l.b16 %v5204
    %v5692 = vunpack.c.l.b16 %v5205
    %v5693 = vunpack.c.l.b16 %v5206
    %v5694 = vunpack.c.l.b16 %v5207
    %v5695 = vunpack.c.l.b16 %v5208
    %v5696 = vunpack.c.l.b16 %v5209
    %v5697 = vunpack.c.l.b16 %v5210
    %v5698 = vunpack.c.l.b16 %v5211
    %v5699 = vunpack.c.l.b16 %v5212
    %v5700 = vunpack.c.l.b16 %v5213
    %v5701 = vunpack.c.l.b16 %v5214
    %v5702 = vunpack.c.l.b16 %v5215
    %v5703 = vunpack.c.l.b16 %v5216
    %v5704 = vunpack.c.l.b16 %v5217
    %v5705 = vunpack.c.l.b16 %v5218
    %v5706 = vunpack.c.l.b16 %v5219
    %v5707 = vunpack.c.l.b16 %v5220
    %v5708 = vunpack.c.l.b16 %v5221
    %v5709 = vunpack.c.l.b16 %v5222
    %v5710 = vunpack.c.l.b16 %v5223
    %v5711 = vunpack.c.l.b16 %v5224
    %v5712 = vunpack.c.l.b16 %v5225
    %v5713 = vunpack.c.l.b16 %v5226
    %v5714 = vunpack.c.l.b16 %v5227
    %v5715 = vunpack.c.l.b16 %v5228
    %v5716 = vpack.c.b16 %v5477, %v5476
    %v5717 = vpack.c.b16 %v5479, %v5478
    %v5718 = vpack.c.b16 %v5481, %v5480
    %v5719 = vpack.c.b16 %v5483, %v5482
    %v5720 = vpack.c.b16 %v5485, %v5484
    %v5721 = vpack.c.b16 %v5487, %v5486
    %v5722 = vpack.c.b16 %v5489, %v5488
    %v5723 = vpack.c.b16 %v5491, %v5490
    %v5724 = vpack.c.b16 %v5493, %v5492
    %v5725 = vpack.c.b16 %v5495, %v5494
    %v5726 = vpack.c.b16 %v5497, %v5496
    %v5727 = vpack.c.b16 %v5499, %v5498
    %v5728 = vpack.c.b16 %v5501, %v5500
    %v5729 = vpack.c.b16 %v5503, %v5502
    %v5730 = vpack.c.b16 %v5505, %v5504
    %v5731 = vpack.c.b16 %v5507, %v5506
    %v5732 = vpack.c.b16 %v5509, %v5508
    %v5733 = vpack.c.b16 %v5511, %v5510
    %v5734 = vpack.c.b16 %v5513, %v5512
    %v5735 = vpack.c.b16 %v5515, %v5514
    %v5736 = vpack.c.b16 %v5517, %v5516
    %v5737 = vpack.c.b16 %v5519, %v5518
    %v5738 = vpack.c.b16 %v5521, %v5520
    %v5739 = vpack.c.b16 %v5523, %v5522
    %v5740 = vpack.c.b16 %v5525, %v5524
    %v5741 = vpack.c.b16 %v5527, %v5526
    %v5742 = vpack.c.b16 %v5529, %v5528
    %v5743 = vpack.c.b16 %v5531, %v5530
    %v5744 = vpack.c.b16 %v5533, %v5532
    %v5745 = vpack.c.b16 %v5535, %v5534
    %v5746 = vpack.c.b16 %v5537, %v5536
    %v5747 = vpack.c.b16 %v5539, %v5538
    %v5748 = vpack.c.b16 %v5541, %v5540
    %v5749 = vpack.c.b16 %v5543, %v5542
    %v5750 = vpack.c.b16 %v5545, %v5544
    %v5751 = vpack.c.b16 %v5547, %v5546
    %v5752 = vpack.c.b16 %v5549, %v5548
    %v5753 = vpack.c.b16 %v5551, %v5550
    %v5754 = vpack.c.b16 %v5553, %v5552
    %v5755 = vpack.c.b16 %v5555, %v5554
    %v5756 = vpack.c.b16 %v5557, %v5556
    %v5757 = vpack.c.b16 %v5559, %v5558
    %v5758 = vpack.c.b16 %v5561, %v5560
    %v5759 = vpack.c.b16 %v5563, %v5562
    %v5760 = vpack.c.b16 %v5565, %v5564
    %v5761 = vpack.c.b16 %v5567, %v5566
    %v5762 = vpack.c.b16 %v5569, %v5568
    %v5763 = vpack.c.b16 %v5571, %v5570
    %v5764 = vpack.c.b16 %v5573, %v5572
    %v5765 = vpack.c.b16 %v5575, %v5574
    %v5766 = vpack.c.b16 %v5577, %v5576
    %v5767 = vpack.c.b16 %v5579, %v5578
    %v5768 = vpack.c.b16 %v5581, %v5580
    %v5769 = vpack.c.b16 %v5583, %v5582
    %v5770 = vpack.c.b16 %v5585, %v5584
    %v5771 = vpack.c.b16 %v5587, %v5586
    %v5772 = vpack.c.b16 %v5589, %v5588
    %v5773 = vpack.c.b16 %v5591, %v5590
    %v5774 = vpack.c.b16 %v5593, %v5592
    %v5775 = vpack.c.b16 %v5595, %v5594
    %v5776 = vpack.c.b16 %v5597, %v5596
    %v5777 = vpack.c.b16 %v5599, %v5598
    %v5778 = vpack.c.b16 %v5601, %v5600
    %v5779 = vpack.c.b16 %v5603, %v5602
    %v5780 = vpack.c.b16 %v5605, %v5604
    %v5781 = vpack.c.b16 %v5607, %v5606
    %v5782 = vpack.c.b16 %v5609, %v5608
    %v5783 = vpack.c.b16 %v5611, %v5610
    %v5784 = vpack.c.b16 %v5613, %v5612
    %v5785 = vpack.c.b16 %v5615, %v5614
    %v5786 = vpack.c.b16 %v5617, %v5616
    %v5787 = vpack.c.b16 %v5619, %v5618
    %v5788 = vpack.c.b16 %v5621, %v5620
    %v5789 = vpack.c.b16 %v5623, %v5622
    %v5790 = vpack.c.b16 %v5625, %v5624
    %v5791 = vpack.c.b16 %v5627, %v5626
    %v5792 = vpack.c.b16 %v5629, %v5628
    %v5793 = vpack.c.b16 %v5631, %v5630
    %v5794 = vpack.c.b16 %v5633, %v5632
    %v5795 = vpack.c.b16 %v5635, %v5634
    %v5796 = vpack.c.b16 %v5637, %v5636
    %v5797 = vpack.c.b16 %v5639, %v5638
    %v5798 = vpack.c.b16 %v5641, %v5640
    %v5799 = vpack.c.b16 %v5643, %v5642
    %v5800 = vpack.c.b16 %v5645, %v5644
    %v5801 = vpack.c.b16 %v5647, %v5646
    %v5802 = vpack.c.b16 %v5649, %v5648
    %v5803 = vpack.c.b16 %v5651, %v5650
    %v5804 = vpack.c.b16 %v5653, %v5652
    %v5805 = vpack.c.b16 %v5655, %v5654
    %v5806 = vpack.c.b16 %v5657, %v5656
    %v5807 = vpack.c.b16 %v5659, %v5658
    %v5808 = vpack.c.b16 %v5661, %v5660
    %v5809 = vpack.c.b16 %v5663, %v5662
    %v5810 = vpack.c.b16 %v5665, %v5664
    %v5811 = vpack.c.b16 %v5667, %v5666
    %v5812 = vpack.c.b16 %v5669, %v5668
    %v5813 = vpack.c.b16 %v5671, %v5670
    %v5814 = vpack.c.b16 %v5673, %v5672
    %v5815 = vpack.c.b16 %v5675, %v5674
    %v5816 = vpack.c.b16 %v5677, %v5676
    %v5817 = vpack.c.b16 %v5679, %v5678
    %v5818 = vpack.c.b16 %v5681, %v5680
    %v5819 = vpack.c.b16 %v5683, %v5682
    %v5820 = vpack.c.b16 %v5685, %v5684
    %v5821 = vpack.c.b16 %v5687, %v5686
    %v5822 = vpack.c.b16 %v5689, %v5688
    %v5823 = vpack.c.b16 %v5691, %v5690
    %v5824 = vpack.c.b16 %v5693, %v5692
    %v5825 = vpack.c.b16 %v5695, %v5694
    %v5826 = vpack.c.b16 %v5697, %v5696
    %v5827 = vpack.c.b16 %v5699, %v5698
    %v5828 = vpack.c.b16 %v5701, %v5700
    %v5829 = vpack.c.b16 %v5703, %v5702
    %v5830 = vpack.c.b16 %v5705, %v5704
    %v5831 = vpack.c.b16 %v5707, %v5706
    %v5832 = vpack.c.b16 %v5709, %v5708
    %v5833 = vpack.c.b16 %v5711, %v5710
    %v5834 = vpack.c.b16 %v5713, %v5712
    %v5835 = vpack.c.b16 %v5715, %v5714
    %5956 = vmatprep.subr.bf16.mxu0 0
    %5957 = vmatpush1.bf16.msra.mxu0 %v5716
    %5958 = vmatprep.subr.bf16.mxu0 0
    %5959 = vmatpush1.bf16.msra.mxu0 %v5717
    %5960 = vmatprep.subr.bf16.mxu0 0
    %5961 = vmatpush1.bf16.msra.mxu0 %v5718
    %5962 = vmatprep.subr.bf16.mxu0 0
    %5963 = vmatpush1.bf16.msra.mxu0 %v5719
    %5964 = vmatprep.subr.bf16.mxu0 0
    %5965 = vmatpush1.bf16.msra.mxu0 %v5720
    %5966 = vmatprep.subr.bf16.mxu0 0
    %5967 = vmatpush1.bf16.msra.mxu0 %v5721
    %5968 = vmatprep.subr.bf16.mxu0 0
    %5969 = vmatpush1.bf16.msra.mxu0 %v5722
    %5970 = vmatprep.subr.bf16.mxu0 0
    %5971 = vmatpush1.bf16.msra.mxu0 %v5723
    %5972 = vmatprep.subr.bf16.mxu0 0
    %5973 = vmatpush1.bf16.msra.mxu0 %v5724
    %5974 = vmatprep.subr.bf16.mxu0 0
    %5975 = vmatpush1.bf16.msra.mxu0 %v5725
    %5976 = vmatprep.subr.bf16.mxu0 0
    %5977 = vmatpush1.bf16.msra.mxu0 %v5726
    %5978 = vmatprep.subr.bf16.mxu0 0
    %5979 = vmatpush1.bf16.msra.mxu0 %v5727
    %5980 = vmatprep.subr.bf16.mxu0 0
    %5981 = vmatpush1.bf16.msra.mxu0 %v5728
    %5982 = vmatprep.subr.bf16.mxu0 0
    %5983 = vmatpush1.bf16.msra.mxu0 %v5729
    %5984 = vmatprep.subr.bf16.mxu0 0
    %5985 = vmatpush1.bf16.msra.mxu0 %v5730
    %5986 = vmatprep.subr.bf16.mxu0 0
    %5987 = vmatpush1.bf16.msra.mxu0 %v5731
    %5988 = vmatprep.mubr.bf16.mxu0 %v4623
    %5989 = vmatmul.mubr.bf16.gmra.mrb[0].mxu0 %v4622
    %v5990 = vpop.f32.mrb[0].mxu0
    %v5991 = vadd.f32 %v5234, %v5990
    %v5992 = vpop.f32.mrb[0].mxu0
    %v5993 = vpop.f32.mrb[0].mxu0
    %v5994 = vpop.f32.mrb[0].mxu0
    %5995 = vdwg.mxu0
    %5996 = vmatprep.subr.bf16.mxu0 0
    %5997 = vmatpush1.bf16.msra.mxu0 %v5732
    %5998 = vmatprep.subr.bf16.mxu0 0
    %5999 = vmatpush1.bf16.msra.mxu0 %v5733
    %6000 = vmatprep.subr.bf16.mxu0 0
    %6001 = vmatpush1.bf16.msra.mxu0 %v5734
    %6002 = vmatprep.subr.bf16.mxu0 0
    %6003 = vmatpush1.bf16.msra.mxu0 %v5735
    %6004 = vmatprep.subr.bf16.mxu0 0
    %6005 = vmatpush1.bf16.msra.mxu0 %v5736
    %6006 = vmatprep.subr.bf16.mxu0 0
    %6007 = vmatpush1.bf16.msra.mxu0 %v5737
    %6008 = vmatprep.subr.bf16.mxu0 0
    %6009 = vmatpush1.bf16.msra.mxu0 %v5738
    %6010 = vmatprep.subr.bf16.mxu0 0
    %6011 = vmatpush1.bf16.msra.mxu0 %v5739
    %6012 = vmatprep.subr.bf16.mxu0 0
    %6013 = vmatpush1.bf16.msra.mxu0 %v5740
    %6014 = vmatprep.subr.bf16.mxu0 0
    %6015 = vmatpush1.bf16.msra.mxu0 %v5741
    %6016 = vmatprep.subr.bf16.mxu0 0
    %6017 = vmatpush1.bf16.msra.mxu0 %v5742
    %6018 = vmatprep.subr.bf16.mxu0 0
    %6019 = vmatpush1.bf16.msra.mxu0 %v5743
    %6020 = vmatprep.subr.bf16.mxu0 0
    %6021 = vmatpush1.bf16.msra.mxu0 %v5744
    %6022 = vmatprep.subr.bf16.mxu0 0
    %6023 = vmatpush1.bf16.msra.mxu0 %v5745
    %6024 = vmatprep.subr.bf16.mxu0 0
    %6025 = vmatpush1.bf16.msra.mxu0 %v5746
    %6026 = vmatprep.subr.bf16.mxu0 0
    %6027 = vmatpush1.bf16.msra.mxu0 %v5747
    %6028 = vmatprep.mubr.bf16.mxu0 %v4714
    %6029 = vmatmul.mubr.bf16.gmra.mrb[0].mxu0 %v4624
    %v6030 = vpop.f32.mrb[0].mxu0
    %v6031 = vadd.f32 %v5991, %v6030
    %v6032 = vpop.f32.mrb[0].mxu0
    %v6033 = vpop.f32.mrb[0].mxu0
    %v6034 = vpop.f32.mrb[0].mxu0
    %6035 = vdwg.mxu0
    %6036 = vmatprep.subr.bf16.mxu0 0
    %6037 = vmatpush1.bf16.msra.mxu0 %v5748
    %6038 = vmatprep.subr.bf16.mxu0 0
    %6039 = vmatpush1.bf16.msra.mxu0 %v5749
    %6040 = vmatprep.subr.bf16.mxu0 0
    %6041 = vmatpush1.bf16.msra.mxu0 %v5750
    %6042 = vmatprep.subr.bf16.mxu0 0
    %6043 = vmatpush1.bf16.msra.mxu0 %v5751
    %6044 = vmatprep.subr.bf16.mxu0 0
    %6045 = vmatpush1.bf16.msra.mxu0 %v5752
    %6046 = vmatprep.subr.bf16.mxu0 0
    %6047 = vmatpush1.bf16.msra.mxu0 %v5753
    %6048 = vmatprep.subr.bf16.mxu0 0
    %6049 = vmatpush1.bf16.msra.mxu0 %v5754
    %6050 = vmatprep.subr.bf16.mxu0 0
    %6051 = vmatpush1.bf16.msra.mxu0 %v5755
    %6052 = vmatprep.subr.bf16.mxu0 0
    %6053 = vmatpush1.bf16.msra.mxu0 %v5756
    %6054 = vmatprep.subr.bf16.mxu0 0
    %6055 = vmatpush1.bf16.msra.mxu0 %v5757
    %6056 = vmatprep.subr.bf16.mxu0 0
    %6057 = vmatpush1.bf16.msra.mxu0 %v5758
    %6058 = vmatprep.subr.bf16.mxu0 0
    %6059 = vmatpush1.bf16.msra.mxu0 %v5759
    %6060 = vmatprep.subr.bf16.mxu0 0
    %6061 = vmatpush1.bf16.msra.mxu0 %v5760
    %6062 = vmatprep.subr.bf16.mxu0 0
    %6063 = vmatpush1.bf16.msra.mxu0 %v5761
    %6064 = vmatprep.subr.bf16.mxu0 0
    %6065 = vmatpush1.bf16.msra.mxu0 %v5762
    %6066 = vmatprep.subr.bf16.mxu0 0
    %6067 = vmatpush1.bf16.msra.mxu0 %v5763
    %6068 = vmatprep.mubr.bf16.mxu0 %v4716
    %6069 = vmatmul.mubr.bf16.gmra.mrb[0].mxu0 %v4715
    %v6070 = vpop.f32.mrb[0].mxu0
    %v6071 = vadd.f32 %v6031, %v6070
    %v6072 = vpop.f32.mrb[0].mxu0
    %v6073 = vpop.f32.mrb[0].mxu0
    %v6074 = vpop.f32.mrb[0].mxu0
    %6075 = vdwg.mxu0
    %6076 = vmatprep.subr.bf16.mxu0 0
    %6077 = vmatpush1.bf16.msra.mxu0 %v5764
    %6078 = vmatprep.subr.bf16.mxu0 0
    %6079 = vmatpush1.bf16.msra.mxu0 %v5765
    %6080 = vmatprep.subr.bf16.mxu0 0
    %6081 = vmatpush1.bf16.msra.mxu0 %v5766
    %6082 = vmatprep.subr.bf16.mxu0 0
    %6083 = vmatpush1.bf16.msra.mxu0 %v5767
    %6084 = vmatprep.subr.bf16.mxu0 0
    %6085 = vmatpush1.bf16.msra.mxu0 %v5768
    %6086 = vmatprep.subr.bf16.mxu0 0
    %6087 = vmatpush1.bf16.msra.mxu0 %v5769
    %6088 = vmatprep.subr.bf16.mxu0 0
    %6089 = vmatpush1.bf16.msra.mxu0 %v5770
    %6090 = vmatprep.subr.bf16.mxu0 0
    %6091 = vmatpush1.bf16.msra.mxu0 %v5771
    %6092 = vmatprep.subr.bf16.mxu0 0
    %6093 = vmatpush1.bf16.msra.mxu0 %v5772
    %6094 = vmatprep.subr.bf16.mxu0 0
    %6095 = vmatpush1.bf16.msra.mxu0 %v5773
    %6096 = vmatprep.subr.bf16.mxu0 0
    %6097 = vmatpush1.bf16.msra.mxu0 %v5774
    %6098 = vmatprep.subr.bf16.mxu0 0
    %6099 = vmatpush1.bf16.msra.mxu0 %v5775
    %6100 = vmatprep.subr.bf16.mxu0 0
    %6101 = vmatpush1.bf16.msra.mxu0 %v5776
    %6102 = vmatprep.subr.bf16.mxu0 0
    %6103 = vmatpush1.bf16.msra.mxu0 %v5777
    %6104 = vmatprep.subr.bf16.mxu0 0
    %6105 = vmatpush1.bf16.msra.mxu0 %v5778
    %6106 = vmatprep.subr.bf16.mxu0 0
    %6107 = vmatpush1.bf16.msra.mxu0 %v5779
    %6108 = vmatprep.mubr.bf16.mxu0 %v4807
    %6109 = vmatmul.mubr.bf16.gmra.mrb[0].mxu0 %v4806
    %v6110 = vpop.f32.mrb[0].mxu0
    %v6111 = vadd.f32 %v6071, %v6110
    %v6112 = vpop.f32.mrb[0].mxu0
    %v6113 = vpop.f32.mrb[0].mxu0
    %v6114 = vpop.f32.mrb[0].mxu0
    %6115 = vdwg.mxu0
    %6116 = vmatprep.subr.bf16.mxu0 0
    %6117 = vmatpush1.bf16.msra.mxu0 %v5780
    %6118 = vmatprep.subr.bf16.mxu0 0
    %6119 = vmatpush1.bf16.msra.mxu0 %v5781
    %6120 = vmatprep.subr.bf16.mxu0 0
    %6121 = vmatpush1.bf16.msra.mxu0 %v5782
    %6122 = vmatprep.subr.bf16.mxu0 0
    %6123 = vmatpush1.bf16.msra.mxu0 %v5783
    %6124 = vmatprep.subr.bf16.mxu0 0
    %6125 = vmatpush1.bf16.msra.mxu0 %v5784
    %6126 = vmatprep.subr.bf16.mxu0 0
    %6127 = vmatpush1.bf16.msra.mxu0 %v5785
    %6128 = vmatprep.subr.bf16.mxu0 0
    %6129 = vmatpush1.bf16.msra.mxu0 %v5786
    %6130 = vmatprep.subr.bf16.mxu0 0
    %6131 = vmatpush1.bf16.msra.mxu0 %v5787
    %6132 = vmatprep.subr.bf16.mxu0 0
    %6133 = vmatpush1.bf16.msra.mxu0 %v5788
    %6134 = vmatprep.subr.bf16.mxu0 0
    %6135 = vmatpush1.bf16.msra.mxu0 %v5789
    %6136 = vmatprep.subr.bf16.mxu0 0
    %6137 = vmatpush1.bf16.msra.mxu0 %v5790
    %6138 = vmatprep.subr.bf16.mxu0 0
    %6139 = vmatpush1.bf16.msra.mxu0 %v5791
    %6140 = vmatprep.subr.bf16.mxu0 0
    %6141 = vmatpush1.bf16.msra.mxu0 %v5792
    %6142 = vmatprep.subr.bf16.mxu0 0
    %6143 = vmatpush1.bf16.msra.mxu0 %v5793
    %6144 = vmatprep.subr.bf16.mxu0 0
    %6145 = vmatpush1.bf16.msra.mxu0 %v5794
    %6146 = vmatprep.subr.bf16.mxu0 0
    %6147 = vmatpush1.bf16.msra.mxu0 %v5795
    %6148 = vmatprep.mubr.bf16.mxu0 %v4898
    %6149 = vmatmul.mubr.bf16.gmra.mrb[0].mxu0 %v4808
    %v6150 = vpop.f32.mrb[0].mxu0
    %v6151 = vadd.f32 %v6111, %v6150
    %v6152 = vpop.f32.mrb[0].mxu0
    %v6153 = vpop.f32.mrb[0].mxu0
    %v6154 = vpop.f32.mrb[0].mxu0
    %6155 = vdwg.mxu0
    %6156 = vmatprep.subr.bf16.mxu0 0
    %6157 = vmatpush1.bf16.msra.mxu0 %v5796
    %6158 = vmatprep.subr.bf16.mxu0 0
    %6159 = vmatpush1.bf16.msra.mxu0 %v5797
    %6160 = vmatprep.subr.bf16.mxu0 0
    %6161 = vmatpush1.bf16.msra.mxu0 %v5798
    %6162 = vmatprep.subr.bf16.mxu0 0
    %6163 = vmatpush1.bf16.msra.mxu0 %v5799
    %6164 = vmatprep.subr.bf16.mxu0 0
    %6165 = vmatpush1.bf16.msra.mxu0 %v5800
    %6166 = vmatprep.subr.bf16.mxu0 0
    %6167 = vmatpush1.bf16.msra.mxu0 %v5801
    %6168 = vmatprep.subr.bf16.mxu0 0
    %6169 = vmatpush1.bf16.msra.mxu0 %v5802
    %6170 = vmatprep.subr.bf16.mxu0 0
    %6171 = vmatpush1.bf16.msra.mxu0 %v5803
    %6172 = vmatprep.subr.bf16.mxu0 0
    %6173 = vmatpush1.bf16.msra.mxu0 %v5804
    %6174 = vmatprep.subr.bf16.mxu0 0
    %6175 = vmatpush1.bf16.msra.mxu0 %v5805
    %6176 = vmatprep.subr.bf16.mxu0 0
    %6177 = vmatpush1.bf16.msra.mxu0 %v5806
    %6178 = vmatprep.subr.bf16.mxu0 0
    %6179 = vmatpush1.bf16.msra.mxu0 %v5807
    %6180 = vmatprep.subr.bf16.mxu0 0
    %6181 = vmatpush1.bf16.msra.mxu0 %v5808
    %6182 = vmatprep.subr.bf16.mxu0 0
    %6183 = vmatpush1.bf16.msra.mxu0 %v5809
    %6184 = vmatprep.subr.bf16.mxu0 0
    %6185 = vmatpush1.bf16.msra.mxu0 %v5810
    %6186 = vmatprep.subr.bf16.mxu0 0
    %6187 = vmatpush1.bf16.msra.mxu0 %v5811
    %6188 = vmatprep.mubr.bf16.mxu0 %v4900
    %6189 = vmatmul.mubr.bf16.gmra.mrb[0].mxu0 %v4899
    %v6190 = vpop.f32.mrb[0].mxu0
    %v6191 = vadd.f32 %v6151, %v6190
    %v6192 = vpop.f32.mrb[0].mxu0
    %v6193 = vpop.f32.mrb[0].mxu0
    %v6194 = vpop.f32.mrb[0].mxu0
    %6195 = vdwg.mxu0
    %6196 = vmatprep.subr.bf16.mxu0 0
    %6197 = vmatpush1.bf16.msra.mxu0 %v5812
    %6198 = vmatprep.subr.bf16.mxu0 0
    %6199 = vmatpush1.bf16.msra.mxu0 %v5813
    %6200 = vmatprep.subr.bf16.mxu0 0
    %6201 = vmatpush1.bf16.msra.mxu0 %v5814
    %6202 = vmatprep.subr.bf16.mxu0 0
    %6203 = vmatpush1.bf16.msra.mxu0 %v5815
    %6204 = vmatprep.subr.bf16.mxu0 0
    %6205 = vmatpush1.bf16.msra.mxu0 %v5816
    %6206 = vmatprep.subr.bf16.mxu0 0
    %6207 = vmatpush1.bf16.msra.mxu0 %v5817
    %6208 = vmatprep.subr.bf16.mxu0 0
    %6209 = vmatpush1.bf16.msra.mxu0 %v5818
    %6210 = vmatprep.subr.bf16.mxu0 0
    %6211 = vmatpush1.bf16.msra.mxu0 %v5819
    %6212 = vmatprep.subr.bf16.mxu0 0
    %6213 = vmatpush1.bf16.msra.mxu0 %v5820
    %6214 = vmatprep.subr.bf16.mxu0 0
    %6215 = vmatpush1.bf16.msra.mxu0 %v5821
    %6216 = vmatprep.subr.bf16.mxu0 0
    %6217 = vmatpush1.bf16.msra.mxu0 %v5822
    %6218 = vmatprep.subr.bf16.mxu0 0
    %6219 = vmatpush1.bf16.msra.mxu0 %v5823
    %6220 = vmatprep.subr.bf16.mxu0 0
    %6221 = vmatpush1.bf16.msra.mxu0 %v5824
    %6222 = vmatprep.subr.bf16.mxu0 0
    %6223 = vmatpush1.bf16.msra.mxu0 %v5825
    %6224 = vmatprep.subr.bf16.mxu0 0
    %6225 = vmatpush1.bf16.msra.mxu0 %v5826
    %6226 = vmatprep.subr.bf16.mxu0 0
    %6227 = vmatpush1.bf16.msra.mxu0 %v5827
    %6228 = vmatprep.mubr.bf16.mxu0 %v4987
    %6229 = vmatmul.mubr.bf16.gmra.mrb[0].mxu0 %v4986
    %v6230 = vpop.f32.mrb[0].mxu0
    %v6231 = vadd.f32 %v6191, %v6230
    %v6232 = vpop.f32.mrb[0].mxu0
    %v6233 = vpop.f32.mrb[0].mxu0
    %v6234 = vpop.f32.mrb[0].mxu0
    %6235 = vdwg.mxu0
    %6236 = vmatprep.subr.bf16.mxu0 0
    %6237 = vmatpush1.bf16.msra.mxu0 %v5828
    %6238 = vmatprep.subr.bf16.mxu0 0
    %6239 = vmatpush1.bf16.msra.mxu0 %v5829
    %6240 = vmatprep.subr.bf16.mxu0 0
    %6241 = vmatpush1.bf16.msra.mxu0 %v5830
    %6242 = vmatprep.subr.bf16.mxu0 0
    %6243 = vmatpush1.bf16.msra.mxu0 %v5831
    %6244 = vmatprep.subr.bf16.mxu0 0
    %6245 = vmatpush1.bf16.msra.mxu0 %v5832
    %6246 = vmatprep.subr.bf16.mxu0 0
    %6247 = vmatpush1.bf16.msra.mxu0 %v5833
    %6248 = vmatprep.subr.bf16.mxu0 0
    %6249 = vmatpush1.bf16.msra.mxu0 %v5834
    %6250 = vmatprep.subr.bf16.mxu0 0
    %6251 = vmatpush1.bf16.msra.mxu0 %v5835
    %6252 = vmatprep.subr.bf16.mxu0 0
    %6253 = vmatpush1.bf16.msra.mxu0 0
    %6254 = vmatprep.subr.bf16.mxu0 0
    %6255 = vmatpush1.bf16.msra.mxu0 0
    %6256 = vmatprep.subr.bf16.mxu0 0
    %6257 = vmatpush1.bf16.msra.mxu0 0
    %6258 = vmatprep.subr.bf16.mxu0 0
    %6259 = vmatpush1.bf16.msra.mxu0 0
    %6260 = vmatprep.subr.bf16.mxu0 0
    %6261 = vmatpush1.bf16.msra.mxu0 0
    %6262 = vmatprep.subr.bf16.mxu0 0
    %6263 = vmatpush1.bf16.msra.mxu0 0
    %6264 = vmatprep.subr.bf16.mxu0 0
    %6265 = vmatpush1.bf16.msra.mxu0 0
    %6266 = vmatprep.subr.bf16.mxu0 0
    %6267 = vmatpush1.bf16.msra.mxu0 0
    %6268 = vmatprep.mubr.bf16.mxu0 0
    %6269 = vmatmul.mubr.bf16.gmra.mrb[0].mxu0 %v4988
    %v6270 = vpop.f32.mrb[0].mxu0
    %v6271 = vadd.f32 %v6231, %v6270
    %v6272 = vpop.f32.mrb[0].mxu0
    %v6273 = vpop.f32.mrb[0].mxu0
    %v6274 = vpop.f32.mrb[0].mxu0
    %6275 = vdwg.mxu0
    %v6276 = vmax.f32 %v6271, 0.0
    %v6277 = vpack.c.bf16 %v6276, %v6276
    %v6278 = vld [vmem:[#allocation19] sm:$0xf]
    %v6279 = vld [vmem:[#allocation19 + $0x4] sm:$0xf]
    %v6280 = vld [vmem:[#allocation19 + $0x8] sm:$0xf]
    %v6281 = vld [vmem:[#allocation19 + $0xc] sm:$0xf]
    %v6282 = vld [vmem:[#allocation19 + $0x10] sm:$0xf]
    %v6283 = vld [vmem:[#allocation19 + $0x14] sm:$0xf]
    %v6284 = vld [vmem:[#allocation19 + $0x18] sm:$0xf]
    %v6285 = vld [vmem:[#allocation19 + $0x1c] sm:$0xf]
    %v6286 = vld [vmem:[#allocation19 + $0x20] sm:$0xf]
    %v6287 = vld [vmem:[#allocation19 + $0x24] sm:$0xf]
    %v6288 = vld [vmem:[#allocation19 + $0x28] sm:$0xf]
    %v6289 = vld [vmem:[#allocation19 + $0x2c] sm:$0xf]
    %v6290 = vld [vmem:[#allocation19 + $0x30] sm:$0xf]
    %v6291 = vld [vmem:[#allocation19 + $0x34] sm:$0xf]
    %v6292 = vld [vmem:[#allocation19 + $0x38] sm:$0xf]
    %v6293 = vld [vmem:[#allocation19 + $0x3c] sm:$0xf]
    %v6294 = vld [vmem:[#allocation20] sm:$0x1]
    %v6296 = vlaneseq
    %v6297 = vshrl.u32 %v6296, 7
    %v6298 = vsub.s32 0, %v6297
    %v6299 = vrot.slane %v6294, %v6298
    %v6317 = vunpack.c.l.b16 %v6278
    %v6318 = vunpack.c.l.b16 %v6279
    %v6319 = vunpack.c.l.b16 %v6280
    %v6320 = vunpack.c.l.b16 %v6281
    %v6321 = vunpack.c.l.b16 %v6282
    %v6322 = vunpack.c.l.b16 %v6283
    %v6323 = vunpack.c.l.b16 %v6284
    %v6324 = vunpack.c.l.b16 %v6285
    %v6325 = vunpack.c.l.b16 %v6286
    %v6326 = vunpack.c.l.b16 %v6287
    %v6327 = vunpack.c.l.b16 %v6288
    %v6328 = vunpack.c.l.b16 %v6289
    %v6329 = vunpack.c.l.b16 %v6290
    %v6330 = vunpack.c.l.b16 %v6291
    %v6331 = vunpack.c.l.b16 %v6292
    %v6332 = vunpack.c.l.b16 %v6293
    %v6333 = vpack.c.b16 %v6318, %v6317
    %v6334 = vpack.c.b16 %v6320, %v6319
    %v6335 = vpack.c.b16 %v6322, %v6321
    %v6336 = vpack.c.b16 %v6324, %v6323
    %v6337 = vpack.c.b16 %v6326, %v6325
    %v6338 = vpack.c.b16 %v6328, %v6327
    %v6339 = vpack.c.b16 %v6330, %v6329
    %v6340 = vpack.c.b16 %v6332, %v6331
    %6349 = vmatprep.subr.bf16.mxu0 0
    %6350 = vmatpush1.bf16.msra.mxu0 %v6333
    %6351 = vmatprep.subr.bf16.mxu0 0
    %6352 = vmatpush1.bf16.msra.mxu0 %v6334
    %6353 = vmatprep.subr.bf16.mxu0 0
    %6354 = vmatpush1.bf16.msra.mxu0 %v6335
    %6355 = vmatprep.subr.bf16.mxu0 0
    %6356 = vmatpush1.bf16.msra.mxu0 %v6336
    %6357 = vmatprep.subr.bf16.mxu0 0
    %6358 = vmatpush1.bf16.msra.mxu0 %v6337
    %6359 = vmatprep.subr.bf16.mxu0 0
    %6360 = vmatpush1.bf16.msra.mxu0 %v6338
    %6361 = vmatprep.subr.bf16.mxu0 0
    %6362 = vmatpush1.bf16.msra.mxu0 %v6339
    %6363 = vmatprep.subr.bf16.mxu0 0
    %6364 = vmatpush1.bf16.msra.mxu0 %v6340
    %6365 = vmatprep.subr.bf16.mxu0 0
    %6366 = vmatpush1.bf16.msra.mxu0 0
    %6367 = vmatprep.subr.bf16.mxu0 0
    %6368 = vmatpush1.bf16.msra.mxu0 0
    %6369 = vmatprep.subr.bf16.mxu0 0
    %6370 = vmatpush1.bf16.msra.mxu0 0
    %6371 = vmatprep.subr.bf16.mxu0 0
    %6372 = vmatpush1.bf16.msra.mxu0 0
    %6373 = vmatprep.subr.bf16.mxu0 0
    %6374 = vmatpush1.bf16.msra.mxu0 0
    %6375 = vmatprep.subr.bf16.mxu0 0
    %6376 = vmatpush1.bf16.msra.mxu0 0
    %6377 = vmatprep.subr.bf16.mxu0 0
    %6378 = vmatpush1.bf16.msra.mxu0 0
    %6379 = vmatprep.subr.bf16.mxu0 0
    %6380 = vmatpush1.bf16.msra.mxu0 0
    %6381 = vmatprep.mubr.bf16.mxu0 0
    %6382 = vmatmul.mubr.bf16.gmra.mrb[0].mxu0 %v6277
    %v6383 = vpop.f32.mrb[0].mxu0
    %v6384 = vadd.f32 %v6299, %v6383
    %v6385 = vpop.f32.mrb[0].mxu0
    %v6386 = vpop.f32.mrb[0].mxu0
    %v6387 = vpop.f32.mrb[0].mxu0
    %6388 = vdwg.mxu0
    %v6389 = vmax.f32 %v6384, 0.0
    %v6390 = vpack.c.bf16 %v6389, %v6389
    %v6391 = vld [vmem:[#allocation22] sm:$0xf]
    %v6392 = vld [vmem:[#allocation22 + $0x4] sm:$0xf]
    %v6393 = vld [vmem:[#allocation22 + $0x8] sm:$0xf]
    %v6394 = vld [vmem:[#allocation22 + $0xc] sm:$0xf]
    %v6395 = vld [vmem:[#allocation22 + $0x10] sm:$0xf]
    %v6396 = vld [vmem:[#allocation22 + $0x14] sm:$0xf]
    %v6397 = vld [vmem:[#allocation22 + $0x18] sm:$0xf]
    %v6398 = vld [vmem:[#allocation22 + $0x1c] sm:$0xf]
    %v6399 = vld [vmem:[#allocation22 + $0x20] sm:$0xf]
    %v6400 = vld [vmem:[#allocation22 + $0x24] sm:$0xf]
    %v6401 = vld [vmem:[#allocation22 + $0x28] sm:$0xf]
    %v6402 = vld [vmem:[#allocation22 + $0x2c] sm:$0xf]
    %v6403 = vld [vmem:[#allocation22 + $0x30] sm:$0xf]
    %v6404 = vld [vmem:[#allocation22 + $0x34] sm:$0xf]
    %v6405 = vld [vmem:[#allocation22 + $0x38] sm:$0xf]
    %v6406 = vld [vmem:[#allocation22 + $0x3c] sm:$0xf]
    %v6407 = vld [vmem:[#allocation23] sm:$0x1]
    %v6409 = vlaneseq
    %v6410 = vshrl.u32 %v6409, 7
    %v6411 = vsub.s32 0, %v6410
    %v6412 = vrot.slane %v6407, %v6411
    %v6430 = vunpack.c.l.b16 %v6391
    %v6431 = vunpack.c.l.b16 %v6392
    %v6432 = vunpack.c.l.b16 %v6393
    %v6433 = vunpack.c.l.b16 %v6394
    %v6434 = vunpack.c.l.b16 %v6395
    %v6435 = vunpack.c.l.b16 %v6396
    %v6436 = vunpack.c.l.b16 %v6397
    %v6437 = vunpack.c.l.b16 %v6398
    %v6438 = vunpack.c.l.b16 %v6399
    %v6439 = vunpack.c.l.b16 %v6400
    %v6440 = vunpack.c.l.b16 %v6401
    %v6441 = vunpack.c.l.b16 %v6402
    %v6442 = vunpack.c.l.b16 %v6403
    %v6443 = vunpack.c.l.b16 %v6404
    %v6444 = vunpack.c.l.b16 %v6405
    %v6445 = vunpack.c.l.b16 %v6406
    %v6446 = vpack.c.b16 %v6431, %v6430
    %v6447 = vpack.c.b16 %v6433, %v6432
    %v6448 = vpack.c.b16 %v6435, %v6434
    %v6449 = vpack.c.b16 %v6437, %v6436
    %v6450 = vpack.c.b16 %v6439, %v6438
    %v6451 = vpack.c.b16 %v6441, %v6440
    %v6452 = vpack.c.b16 %v6443, %v6442
    %v6453 = vpack.c.b16 %v6445, %v6444
    %6462 = vmatprep.subr.bf16.mxu0 0
    %6463 = vmatpush1.bf16.msra.mxu0 %v6446
    %6464 = vmatprep.subr.bf16.mxu0 0
    %6465 = vmatpush1.bf16.msra.mxu0 %v6447
    %6466 = vmatprep.subr.bf16.mxu0 0
    %6467 = vmatpush1.bf16.msra.mxu0 %v6448
    %6468 = vmatprep.subr.bf16.mxu0 0
    %6469 = vmatpush1.bf16.msra.mxu0 %v6449
    %6470 = vmatprep.subr.bf16.mxu0 0
    %6471 = vmatpush1.bf16.msra.mxu0 %v6450
    %6472 = vmatprep.subr.bf16.mxu0 0
    %6473 = vmatpush1.bf16.msra.mxu0 %v6451
    %6474 = vmatprep.subr.bf16.mxu0 0
    %6475 = vmatpush1.bf16.msra.mxu0 %v6452
    %6476 = vmatprep.subr.bf16.mxu0 0
    %6477 = vmatpush1.bf16.msra.mxu0 %v6453
    %6478 = vmatprep.subr.bf16.mxu0 0
    %6479 = vmatpush1.bf16.msra.mxu0 0
    %6480 = vmatprep.subr.bf16.mxu0 0
    %6481 = vmatpush1.bf16.msra.mxu0 0
    %6482 = vmatprep.subr.bf16.mxu0 0
    %6483 = vmatpush1.bf16.msra.mxu0 0
    %6484 = vmatprep.subr.bf16.mxu0 0
    %6485 = vmatpush1.bf16.msra.mxu0 0
    %6486 = vmatprep.subr.bf16.mxu0 0
    %6487 = vmatpush1.bf16.msra.mxu0 0
    %6488 = vmatprep.subr.bf16.mxu0 0
    %6489 = vmatpush1.bf16.msra.mxu0 0
    %6490 = vmatprep.subr.bf16.mxu0 0
    %6491 = vmatpush1.bf16.msra.mxu0 0
    %6492 = vmatprep.subr.bf16.mxu0 0
    %6493 = vmatpush1.bf16.msra.mxu0 0
    %6494 = vmatprep.mubr.bf16.mxu0 0
    %6495 = vmatmul.mubr.bf16.gmra.mrb[0].mxu0 %v6390
    %v6496 = vpop.f32.mrb[0].mxu0
    %v6497 = vadd.f32 %v6412, %v6496
    %v6498 = vpop.f32.mrb[0].mxu0
    %v6499 = vpop.f32.mrb[0].mxu0
    %v6500 = vpop.f32.mrb[0].mxu0
    %6501 = vdwg.mxu0
    %v6502 = vmax.f32 %v6497, 0.0
    %v6503 = vpack.c.bf16 %v6502, %v6502
    %v6504 = vld [vmem:[#allocation25] sm:$0xf]
    %v6505 = vld [vmem:[#allocation25 + $0x4] sm:$0xf]
    %v6506 = vld [vmem:[#allocation25 + $0x8] sm:$0xf]
    %v6507 = vld [vmem:[#allocation25 + $0xc] sm:$0xf]
    %v6508 = vld [vmem:[#allocation25 + $0x10] sm:$0xf]
    %v6509 = vld [vmem:[#allocation25 + $0x14] sm:$0xf]
    %v6510 = vld [vmem:[#allocation25 + $0x18] sm:$0xf]
    %v6511 = vld [vmem:[#allocation25 + $0x1c] sm:$0xf]
    %v6512 = vld [vmem:[#allocation25 + $0x20] sm:$0xf]
    %v6513 = vld [vmem:[#allocation25 + $0x24] sm:$0xf]
    %v6514 = vld [vmem:[#allocation25 + $0x28] sm:$0xf]
    %v6515 = vld [vmem:[#allocation25 + $0x2c] sm:$0xf]
    %v6516 = vld [vmem:[#allocation25 + $0x30] sm:$0xf]
    %v6517 = vld [vmem:[#allocation25 + $0x34] sm:$0xf]
    %v6518 = vld [vmem:[#allocation25 + $0x38] sm:$0xf]
    %v6519 = vld [vmem:[#allocation25 + $0x3c] sm:$0xf]
    %v6520 = vld [vmem:[#allocation26] sm:$0x1]
    %v6522 = vlaneseq
    %v6523 = vshrl.u32 %v6522, 7
    %v6524 = vsub.s32 0, %v6523
    %v6525 = vrot.slane %v6520, %v6524
    %v6543 = vunpack.c.l.b16 %v6504
    %v6544 = vunpack.c.l.b16 %v6505
    %v6545 = vunpack.c.l.b16 %v6506
    %v6546 = vunpack.c.l.b16 %v6507
    %v6547 = vunpack.c.l.b16 %v6508
    %v6548 = vunpack.c.l.b16 %v6509
    %v6549 = vunpack.c.l.b16 %v6510
    %v6550 = vunpack.c.l.b16 %v6511
    %v6551 = vunpack.c.l.b16 %v6512
    %v6552 = vunpack.c.l.b16 %v6513
    %v6553 = vunpack.c.l.b16 %v6514
    %v6554 = vunpack.c.l.b16 %v6515
    %v6555 = vunpack.c.l.b16 %v6516
    %v6556 = vunpack.c.l.b16 %v6517
    %v6557 = vunpack.c.l.b16 %v6518
    %v6558 = vunpack.c.l.b16 %v6519
    %v6559 = vpack.c.b16 %v6544, %v6543
    %v6560 = vpack.c.b16 %v6546, %v6545
    %v6561 = vpack.c.b16 %v6548, %v6547
    %v6562 = vpack.c.b16 %v6550, %v6549
    %v6563 = vpack.c.b16 %v6552, %v6551
    %v6564 = vpack.c.b16 %v6554, %v6553
    %v6565 = vpack.c.b16 %v6556, %v6555
    %v6566 = vpack.c.b16 %v6558, %v6557
    %6575 = vmatprep.subr.bf16.mxu0 0
    %6576 = vmatpush1.bf16.msra.mxu0 %v6559
    %6577 = vmatprep.subr.bf16.mxu0 0
    %6578 = vmatpush1.bf16.msra.mxu0 %v6560
    %6579 = vmatprep.subr.bf16.mxu0 0
    %6580 = vmatpush1.bf16.msra.mxu0 %v6561
    %6581 = vmatprep.subr.bf16.mxu0 0
    %6582 = vmatpush1.bf16.msra.mxu0 %v6562
    %6583 = vmatprep.subr.bf16.mxu0 0
    %6584 = vmatpush1.bf16.msra.mxu0 %v6563
    %6585 = vmatprep.subr.bf16.mxu0 0
    %6586 = vmatpush1.bf16.msra.mxu0 %v6564
    %6587 = vmatprep.subr.bf16.mxu0 0
    %6588 = vmatpush1.bf16.msra.mxu0 %v6565
    %6589 = vmatprep.subr.bf16.mxu0 0
    %6590 = vmatpush1.bf16.msra.mxu0 %v6566
    %6591 = vmatprep.subr.bf16.mxu0 0
    %6592 = vmatpush1.bf16.msra.mxu0 0
    %6593 = vmatprep.subr.bf16.mxu0 0
    %6594 = vmatpush1.bf16.msra.mxu0 0
    %6595 = vmatprep.subr.bf16.mxu0 0
    %6596 = vmatpush1.bf16.msra.mxu0 0
    %6597 = vmatprep.subr.bf16.mxu0 0
    %6598 = vmatpush1.bf16.msra.mxu0 0
    %6599 = vmatprep.subr.bf16.mxu0 0
    %6600 = vmatpush1.bf16.msra.mxu0 0
    %6601 = vmatprep.subr.bf16.mxu0 0
    %6602 = vmatpush1.bf16.msra.mxu0 0
    %6603 = vmatprep.subr.bf16.mxu0 0
    %6604 = vmatpush1.bf16.msra.mxu0 0
    %6605 = vmatprep.subr.bf16.mxu0 0
    %6606 = vmatpush1.bf16.msra.mxu0 0
    %6607 = vmatprep.mubr.bf16.mxu0 0
    %6608 = vmatmul.mubr.bf16.gmra.mrb[0].mxu0 %v6503
    %v6609 = vpop.f32.mrb[0].mxu0
    %v6610 = vadd.f32 %v6525, %v6609
    %v6611 = vpop.f32.mrb[0].mxu0
    %v6612 = vpop.f32.mrb[0].mxu0
    %v6613 = vpop.f32.mrb[0].mxu0
    %6614 = vdwg.mxu0
    %v6615 = vsel %vm1620, %v6610, -inf
    %6616 = vmax.xlane.f32.xlu0 %v6615
    %v6617 = vpop.xlane.xlu0 %6616
    %v6618 = vsub.f32 %v6610, %v6617
    %v6619 = vmul.f32 %v6618, 1.442695
    %v6620 = vpow.pop %v6619
    %v6621 = vsel %vm1620, %v6620, 0.0
    %6622 = vadd.xlane.f32.xlu0 %v6621
    %v6623 = vpop.xlane.xlu0 %6622
    %v6624 = vlog2.pop %v6623
    %v6625 = vmul.f32 %v6624, 0.6931472
    %v6626 = vsub.f32 %v6618, %v6625
    %6627 = vst [vmem:[#allocation28] sm:$0x3] %v6626
    // Predicated region
    $region134: #{cnn_forward.1} parent=1 // pred_check
      _
    $region135: #{cnn_forward.1} parent=1 // pred_check_branch
      %6629 = sbr.rel (0) target = $region137
    $region136: #{cnn_forward.1} parent=1 // pred_region
      %s6631 = ssub.s32 32, 32
      %6632 = vsyncadd [#allocation4], %s6631
      %s6634 = sshll.u32 [#allocation28], 4
      %s6635 = int_to_ptr.vmem [resolvable:$true] %s6634
      %6637 = dma.vmem_to_hbm [thread:$0]  %s6635, 32, %s17, [#allocation4]
    $region137: #{cnn_forward.1} parent=1 // pred_fallthru
      _
    // Predicated region
    $region138: #{cnn_forward.1} parent=1 // pred_check
      _
    $region139: #{cnn_forward.1} parent=1 // pred_check_branch
      %6639 = sbr.rel (0) target = $region141
    $region140: #{cnn_forward.1} parent=1 // pred_region
      %6640 = dma.done [#allocation4], 32
    $region141: #{cnn_forward.1} parent=1 // pred_fallthru
      _
    %6641 = vsyncpa [#allocation3], 1
    %6642 = vsyncpa [#allocation6], 1
    %6643 = vsyncpa [#allocation9], 1
    %6644 = vsyncpa [#allocation12], 1
    %6645 = vsyncpa [#allocation15], 1
    %6646 = vsyncpa [#allocation18], 1
    %6647 = vsyncpa [#allocation21], 1
    %6648 = vsyncpa [#allocation24], 1
    %6649 = vsyncpa [#allocation27], 1
    %6650 = vsyncpa [#allocation4], 1

</llo_original>
